<compile_context>
chip_gen: v7x
topology: tpu7x:2x2x1
jax: 0.10.0
libtpu: 0.0.40
codegen_flags: <defaults>
</compile_context>

<pallas_src>
import jax
import jax.numpy as jnp
from jax.experimental import pallas as pl
from jax.experimental.pallas import tpu as pltpu

EPS = 1e-5                      # nn.BatchNorm2d default eps
LANES = 128
_VMEM_LIMIT = 32 * 1024 * 1024  # safe on every generation (v7x has 64 MiB physical)


def _round_up(x, m):
    return (x + m - 1) // m * m


def _compiler_params():
    # grid axis = images; every step writes disjoint blocks -> "parallel"
    # (lets v7x shard the batch over its 2 TensorCores; neutral on v5e/v6e).
    return pltpu.CompilerParams(dimension_semantics=("parallel",),
                                vmem_limit_bytes=_VMEM_LIMIT)


def _affine_from_stats(st, g, be, cnt):
    """Combine per-image (sum, sum-of-squares) stats -> BN scale/shift, once per tensor."""
    s = jnp.sum(st, axis=0)                               # (2, Cpad)
    mean = s[0:1, :] / cnt
    var = jnp.maximum(s[1:2, :] / cnt - mean * mean, 0.0)  # clamp: E[x^2]-E[x]^2 cancel
    scale = g * jax.lax.rsqrt(var + EPS)
    shift = be - mean * scale
    return scale, shift


# ---------------------------------------------------------------------------
# Pass 1: conv1 (single K=9*Cin MXU matmul) + BN1 stats  [+ 1x1 identity stats]
# ---------------------------------------------------------------------------
def _conv1_stats_kernel_factory(fuse_identity):
    def kernel(*refs):
        if fuse_identity:
            (xc_ref, w_ref, mask_ref, xid_ref, wi_ref,
             y_ref, st_ref, stid_ref) = refs
        else:
            xc_ref, w_ref, mask_ref, y_ref, st_ref = refs

        m = mask_ref[...]                                          # (Mext, 1)
        acc = jnp.dot(xc_ref[0], w_ref[...],
                      preferred_element_type=jnp.float32)          # (Mext, Cpad) f32
        y_ref[0] = acc.astype(y_ref.dtype)                         # bf16 to HBM
        ym = acc * m                                               # mask wrapped cols
        st_ref[0, 0:1, :] = jnp.sum(ym, axis=0, keepdims=True)
        st_ref[0, 1:2, :] = jnp.sum(ym * acc, axis=0, keepdims=True)

        if fuse_identity:
            # 1x1 identity-conv statistics; xid's wrapped columns are exactly the
            # horizontal zero padding, so yid is already zero there -> no mask needed.
            yid = jnp.dot(xid_ref[0], wi_ref[...],
                          preferred_element_type=jnp.float32)
            stid_ref[0, 0:1, :] = jnp.sum(yid, axis=0, keepdims=True)
            stid_ref[0, 1:2, :] = jnp.sum(yid * yid, axis=0, keepdims=True)
    return kernel


def _conv1_stats(x1col, w1, mask, xid=None, wi=None):
    N, Mext, K1 = x1col.shape
    Cpad = w1.shape[-1]
    fuse = xid is not None
    kernel = _conv1_stats_kernel_factory(fuse)

    in_specs = [pl.BlockSpec((1, Mext, K1), lambda n: (n, 0, 0)),
                pl.BlockSpec(w1.shape, lambda n: (0, 0)),
                pl.BlockSpec(mask.shape, lambda n: (0, 0))]
    inputs = [x1col, w1, mask]
    if fuse:
        in_specs += [pl.BlockSpec((1, Mext, xid.shape[-1]), lambda n: (n, 0, 0)),
                     pl.BlockSpec(wi.shape, lambda n: (0, 0))]
        inputs += [xid, wi]

    out_shape = [jax.ShapeDtypeStruct((N, Mext, Cpad), jnp.bfloat16),
                 jax.ShapeDtypeStruct((N, 2, Cpad), jnp.float32)]
    out_specs = [pl.BlockSpec((1, Mext, Cpad), lambda n: (n, 0, 0)),
                 pl.BlockSpec((1, 2, Cpad), lambda n: (n, 0, 0))]
    if fuse:
        out_shape.append(jax.ShapeDtypeStruct((N, 2, Cpad), jnp.float32))
        out_specs.append(pl.BlockSpec((1, 2, Cpad), lambda n: (n, 0, 0)))

    flops = 2 * N * Mext * K1 * Cpad
    if fuse:
        flops += 2 * N * Mext * xid.shape[-1] * Cpad
    in_bytes = sum(int(a.size) * a.dtype.itemsize for a in inputs)
    out_bytes = sum(int(jnp.dtype(s.dtype).itemsize) * s.shape[0] * s.shape[1] * s.shape[2]
                    for s in out_shape)
    cost = pl.CostEstimate(flops=int(flops), transcendentals=0,
                           bytes_accessed=int(in_bytes + out_bytes))

    return pl.pallas_call(
        kernel, grid=(N,),
        in_specs=in_specs,
        out_specs=tuple(out_specs),
        out_shape=tuple(out_shape),
        compiler_params=_compiler_params(),
        cost_estimate=cost,
    )(*inputs)


# ---------------------------------------------------------------------------
# Pass 2: fused BN1-affine + ReLU + zero-pad (VMEM scratch, no HBM round trip)
#         + conv2 as ONE K=9*Cpad MXU matmul (in-VMEM im2col) + BN2 stats
# ---------------------------------------------------------------------------
def _bn1_conv2_kernel_factory(Wp, Mext, H, L, Cpad):
    pad_top = Wp + 1
    pad_bot = (H + 1) * Wp + 1

    def kernel(y1_ref, sc_ref, sh_ref, mask_ref, w_ref, y2_ref, st_ref,
               pad_scr, col_scr):
        m = mask_ref[...]
        # fused BN1 affine + ReLU; the mask zeroes the wrapped columns so they land
        # exactly on the horizontal padding positions of the rebuilt padded image.
        h = jnp.maximum(y1_ref[0].astype(jnp.float32) * sc_ref[...] + sh_ref[...],
                        0.0) * m

        # conv2's zero-padded input, built entirely in VMEM; only the padding rows
        # are zeroed (the interior is overwritten every image).
        pad_scr[0:pad_top, :] = jnp.zeros((pad_top, Cpad), jnp.float32)
        pad_scr[pad_bot:L, :] = jnp.zeros((L - pad_bot, Cpad), jnp.float32)
        pad_scr[pl.ds(pad_top, Mext), :] = h

        # in-VMEM im2col: 9 lane-aligned column blocks -> one K = 9*Cpad matmul
        # (no 8 f32 vector adds, no Python-level accumulator live across taps).
        for t in range(9):
            dy, dx = divmod(t, 3)
            col_scr[:, t * Cpad:(t + 1) * Cpad] = (
                pad_scr[pl.ds(dy * Wp + dx, Mext), :].astype(jnp.bfloat16))

        acc = jnp.dot(col_scr[...], w_ref[...],
                      preferred_element_type=jnp.float32)          # (Mext, Cpad) f32
        y2_ref[0] = acc.astype(y2_ref.dtype)                       # bf16 to HBM
        ym = acc * m
        st_ref[0, 0:1, :] = jnp.sum(ym, axis=0, keepdims=True)
        st_ref[0, 1:2, :] = jnp.sum(ym * acc, axis=0, keepdims=True)
    return kernel


def _bn1_conv2_stats(y1, sc1, sh1, mask, w2, *, Wp, H, L):
    N, Mext, Cpad = y1.shape
    kernel = _bn1_conv2_kernel_factory(Wp, Mext, H, L, Cpad)

    flops = 2 * N * Mext * (9 * Cpad) * Cpad + 8 * N * Mext * Cpad
    bytes_acc = (int(y1.size) * y1.dtype.itemsize + int(w2.size) * w2.dtype.itemsize
                 + 2 * N * Mext * Cpad + 4 * N * 2 * Cpad)
    cost = pl.CostEstimate(flops=int(flops), transcendentals=0,
                           bytes_accessed=int(bytes_acc))

    return pl.pallas_call(
        kernel, grid=(N,),
        in_specs=[pl.BlockSpec((1, Mext, Cpad), lambda n: (n, 0, 0)),
                  pl.BlockSpec((1, Cpad), lambda n: (0, 0)),
                  pl.BlockSpec((1, Cpad), lambda n: (0, 0)),
                  pl.BlockSpec(mask.shape, lambda n: (0, 0)),
                  pl.BlockSpec(w2.shape, lambda n: (0, 0))],
        out_specs=(pl.BlockSpec((1, Mext, Cpad), lambda n: (n, 0, 0)),
                   pl.BlockSpec((1, 2, Cpad), lambda n: (n, 0, 0))),
        out_shape=(jax.ShapeDtypeStruct((N, Mext, Cpad), jnp.bfloat16),
                   jax.ShapeDtypeStruct((N, 2, Cpad), jnp.float32)),
        scratch_shapes=[pltpu.VMEM((L, Cpad), jnp.float32),
                        pltpu.VMEM((Mext, 9 * Cpad), jnp.bfloat16)],
        compiler_params=_compiler_params(),
        cost_estimate=cost,
    )(y1, sc1, sh1, mask, w2)


# ---------------------------------------------------------------------------
# Pass 3: BN2-affine + residual (f32 pass-through, or 1x1 conv + BN) + ReLU
# ---------------------------------------------------------------------------
def _bn2_residual_relu_kernel_factory(Cin, Cpad, Mext, is_dash):
    def kernel(*refs):
        if is_dash:
            (y2_ref, sc_ref, sh_ref, xid_ref, wi_ref,
             sci_ref, shi_ref, out_ref) = refs
        else:
            y2_ref, sc_ref, sh_ref, xres_ref, out_ref = refs

        ybn = y2_ref[0].astype(jnp.float32) * sc_ref[...] + sh_ref[...]

        if is_dash:
            yid = jnp.dot(xid_ref[0], wi_ref[...],
                          preferred_element_type=jnp.float32)
            ident = yid * sci_ref[...] + shi_ref[...]
        else:
            # residual stays in f32 on the VPU (no identity-matrix MXU matmul);
            # pad lanes are discarded by the wrapper's final channel slice.
            xr = xres_ref[0]
            if Cpad > Cin:
                ident = jnp.concatenate(
                    [xr, jnp.zeros((Mext, Cpad - Cin), jnp.float32)], axis=-1)
            else:
                ident = xr

        out_ref[0] = jnp.maximum(ybn + ident, 0.0).astype(out_ref.dtype)
    return kernel


def _bn2_residual_relu(y2, sc2, sh2, *, xres=None, xid=None, wi=None,
                       sci=None, shi=None):
    N, Mext, Cpad = y2.shape
    is_dash = xid is not None
    Cin = (xid if is_dash else xres).shape[-1]
    kernel = _bn2_residual_relu_kernel_factory(Cin, Cpad, Mext, is_dash)

    in_specs = [pl.BlockSpec((1, Mext, Cpad), lambda n: (n, 0, 0)),
                pl.BlockSpec((1, Cpad), lambda n: (0, 0)),
                pl.BlockSpec((1, Cpad), lambda n: (0, 0))]
    if is_dash:
        in_specs += [pl.BlockSpec((1, Mext, Cin), lambda n: (n, 0, 0)),
                     pl.BlockSpec(wi.shape, lambda n: (0, 0)),
                     pl.BlockSpec((1, Cpad), lambda n: (0, 0)),
                     pl.BlockSpec((1, Cpad), lambda n: (0, 0))]
        inputs = [y2, sc2, sh2, xid, wi, sci, shi]
    else:
        in_specs += [pl.BlockSpec((1, Mext, Cin), lambda n: (n, 0, 0))]
        inputs = [y2, sc2, sh2, xres]

    flops = 6 * N * Mext * Cpad + (2 * N * Mext * Cin * Cpad if is_dash else 0)
    bytes_acc = sum(int(a.size) * a.dtype.itemsize for a in inputs) + 2 * N * Mext * Cpad
    cost = pl.CostEstimate(flops=int(flops), transcendentals=0,
                           bytes_accessed=int(bytes_acc))

    return pl.pallas_call(
        kernel, grid=(N,),
        in_specs=in_specs,
        out_specs=pl.BlockSpec((1, Mext, Cpad), lambda n: (n, 0, 0)),
        out_shape=jax.ShapeDtypeStruct((N, Mext, Cpad), jnp.bfloat16),
        compiler_params=_compiler_params(),
        cost_estimate=cost,
    )(*inputs)


# ---------------------------------------------------------------------------
# The ResNet `block.forward` built from the fused Pallas kernels.
# ---------------------------------------------------------------------------
def block_forward(x_nchw, params, *, is_dash=False):
    """x_nchw: (N, Cin, H, W) float32 (PyTorch layout) -> (N, Cout, H, W)."""
    N, Cin, H, W = x_nchw.shape
    Cout = params['w1'].shape[-1]
    Cpad = _round_up(Cout, LANES)        # lane-dense channel axis inside the kernels
    Hp, Wp = H + 2, W + 2
    Mext = H * Wp                        # extended output grid (2 wrapped cols / row)
    L = Hp * Wp + 2                      # +2 rows so every shifted tap slice is in-bounds
    cnt = float(N * H * W)               # BatchNorm count (valid positions only)

    # boundary glue (layout only): NCHW -> zero-padded NHWC-flat; the 9-tap concat for
    # conv1 is tiny (9*Cin lanes) and built here — conv2's im2col never touches HBM.
    x = jnp.transpose(x_nchw, (0, 2, 3, 1)).astype(jnp.float32)
    xpad = jnp.pad(x, ((0, 0), (1, 1), (1, 1), (0, 0))).reshape(N, Hp * Wp, Cin)
    xpad = jnp.pad(xpad, ((0, 0), (0, L - Hp * Wp), (0, 0)))
    x1col = jnp.concatenate(
        [xpad[:, dy * Wp + dx: dy * Wp + dx + Mext, :]
         for dy in range(3) for dx in range(3)], axis=-1).astype(jnp.bfloat16)
    xres = xpad[:, Wp + 1: Wp + 1 + Mext, :]             # (N, Mext, Cin) f32 interior

    mask = ((jnp.arange(Mext) % Wp) < W).astype(jnp.float32).reshape(Mext, 1)

    def pad_c(v):                        # pad channel (last) dim Cout -> Cpad with zeros
        return jnp.pad(v, [(0, 0)] * (v.ndim - 1) + [(0, Cpad - Cout)])

    # weights flattened tap-major for the single-K matmuls; conv biases dropped
    # (they cancel exactly under batch-stat BN).
    w1 = pad_c(params['w1']).reshape(9 * Cin, Cpad).astype(jnp.bfloat16)
    w2 = jnp.pad(pad_c(params['w2']), ((0, 0), (0, 0), (0, Cpad - Cout), (0, 0)))
    w2 = w2.reshape(9 * Cpad, Cpad).astype(jnp.bfloat16)
    g1, be1 = pad_c(params['g1']).reshape(1, Cpad), pad_c(params['be1']).reshape(1, Cpad)
    g2, be2 = pad_c(params['g2']).reshape(1, Cpad), pad_c(params['be2']).reshape(1, Cpad)

    if is_dash:
        wi = pad_c(params['wi']).reshape(Cin, Cpad).astype(jnp.bfloat16)
        gi, bei = pad_c(params['gi']).reshape(1, Cpad), pad_c(params['bei']).reshape(1, Cpad)
        xid = xres.astype(jnp.bfloat16)
        y1, st1, stid = _conv1_stats(x1col, w1, mask, xid=xid, wi=wi)
        sci, shi = _affine_from_stats(stid, gi, bei, cnt)
    else:
        y1, st1 = _conv1_stats(x1col, w1, mask)

    sc1, sh1 = _affine_from_stats(st1, g1, be1, cnt)        # hoisted out of the grid
    y2, st2 = _bn1_conv2_stats(y1, sc1, sh1, mask, w2, Wp=Wp, H=H, L=L)
    sc2, sh2 = _affine_from_stats(st2, g2, be2, cnt)

    if is_dash:
        out_ext = _bn2_residual_relu(y2, sc2, sh2, xid=xid, wi=wi, sci=sci, shi=shi)
    else:
        out_ext = _bn2_residual_relu(y2, sc2, sh2, xres=xres)

    # boundary glue: extended grid -> NCHW (drop wrapped columns and channel padding)
    out = out_ext.reshape(N, H, Wp, Cpad)[:, :, :W, :Cout].astype(jnp.float32)
    return jnp.transpose(out, (0, 3, 1, 2))


# ---------------------------------------------------------------------------
# Pure-JAX reference (same math as the PyTorch module in training mode).
# ---------------------------------------------------------------------------
def _ref_block_nchw(x_nchw, p, *, is_dash, eps=EPS):
    x = jnp.transpose(x_nchw, (0, 2, 3, 1)).astype(jnp.float32)

    def conv(inp, w, b, pad):
        out = jax.lax.conv_general_dilated(
            inp, w, window_strides=(1, 1),
            padding=((pad, pad), (pad, pad)),
            dimension_numbers=('NHWC', 'HWIO', 'NHWC'),
            precision=jax.lax.Precision.HIGHEST)
        return out + b.reshape(1, 1, 1, -1)

    def bn(t, g, be):
        mean = jnp.mean(t, axis=(0, 1, 2), keepdims=True)
        var = jnp.mean((t - mean) ** 2, axis=(0, 1, 2), keepdims=True)
        return ((t - mean) * jax.lax.rsqrt(var + eps) * g.reshape(1, 1, 1, -1)
                + be.reshape(1, 1, 1, -1))

    h = jax.nn.relu(bn(conv(x, p['w1'], p['b1'], 1), p['g1'], p['be1']))
    h = bn(conv(h, p['w2'], p['b2'], 1), p['g2'], p['be2'])
    ident = bn(conv(x, p['wi'], p['bi'], 0), p['gi'], p['bei']) if is_dash else x
    out = jax.nn.relu(ident + h)
    return jnp.transpose(out, (0, 3, 1, 2))


def make_block_params(key, cin, cout, is_dash):
    ks = jax.random.split(key, 12)

    def n(k, shape, scale=0.1):
        return scale * jax.random.normal(k, shape, jnp.float32)

    p = {
        'w1': n(ks[0], (3, 3, cin, cout)),   # HWIO
        'b1': n(ks[1], (cout,)),
        'g1': 1.0 + n(ks[2], (cout,)),
        'be1': n(ks[3], (cout,)),
        'w2': n(ks[4], (3, 3, cout, cout)),
        'b2': n(ks[5], (cout,)),
        'g2': 1.0 + n(ks[6], (cout,)),
        'be2': n(ks[7], (cout,)),
    }
    if is_dash:
        p.update({
            'wi': n(ks[8], (1, 1, cin, cout)),
            'bi': n(ks[9], (cout,)),
            'gi': 1.0 + n(ks[10], (cout,)),
            'bei': n(ks[11], (cout,)),
        })
    return p


if __name__ == "__main__":
    root = jax.random.PRNGKey(0)
    kx1, kp1, kx2, kp2 = jax.random.split(root, 4)
    N, H, W = 2, 16, 16
    TOL = 5e-2   # bf16 MXU inputs / bf16 intermediates (vs HIGHEST-precision f32 ref)

    fwd = jax.jit(block_forward, static_argnames=("is_dash",))

    # Case 1: default block(in=8, out=8, is_dash=False)
    cin = cout = 8
    p1 = make_block_params(kp1, cin, cout, is_dash=False)
    x1 = jax.random.normal(kx1, (N, cin, H, W), jnp.float32)
    y1 = jax.block_until_ready(fwd(x1, p1, is_dash=False))
    r1 = _ref_block_nchw(x1, p1, is_dash=False)
    assert y1.shape == (N, cout, H, W)
    assert jnp.allclose(y1, r1, atol=TOL, rtol=TOL), float(jnp.max(jnp.abs(y1 - r1)))

    # Case 2: block(in=4, out=8, is_dash=True) (stride=1)
    cin2, cout2 = 4, 8
    p2 = make_block_params(kp2, cin2, cout2, is_dash=True)
    x2 = jax.random.normal(kx2, (N, cin2, H, W), jnp.float32)
    y2 = jax.block_until_ready(fwd(x2, p2, is_dash=True))
    r2 = _ref_block_nchw(x2, p2, is_dash=True)
    assert y2.shape == (N, cout2, H, W)
    assert jnp.allclose(y2, r2, atol=TOL, rtol=TOL), float(jnp.max(jnp.abs(y2 - r2)))

    print("KERNEL_OK")
</pallas_src>

<mosaic_0001>
module attributes {stable_mosaic.version = 11 : i64} {
  func.func @kernel(%arg0: i32, %arg1: memref<1x288x72xbf16, #tpu.memory_space<vmem>>, %arg2: memref<72x128xbf16, #tpu.memory_space<vmem>>, %arg3: memref<288x1xf32, #tpu.memory_space<vmem>>, %arg4: memref<1x288x128xbf16, #tpu.memory_space<vmem>>, %arg5: memref<1x2x128xf32, #tpu.memory_space<vmem>>) attributes {dimension_semantics = [#tpu.dimension_semantics<parallel>], iteration_bounds = array<i64: 2>, scalar_prefetch = 0 : i64, scratch_operands = 0 : i64, tpu.core_type = #tpu.core_type<tc>, window_params = [{transform_indices = @transform_0, window_bounds = array<i64: 1, 288, 72>}, {pipeline_mode = #tpu.pipeline_mode<synchronous>, transform_indices = @transform_1, window_bounds = array<i64: 72, 128>}, {pipeline_mode = #tpu.pipeline_mode<synchronous>, transform_indices = @transform_2, window_bounds = array<i64: 288, 1>}, {transform_indices = @transform_3, window_bounds = array<i64: 1, 288, 128>}, {transform_indices = @transform_4, window_bounds = array<i64: 1, 2, 128>}]} {
    %c0 = arith.constant 0 : index
    %c0_0 = arith.constant 0 : index
    %0 = vector.load %arg3[%c0, %c0_0] : memref<288x1xf32, #tpu.memory_space<vmem>>, vector<288x1xf32>
    %c0_1 = arith.constant 0 : index
    %c0_2 = arith.constant 0 : index
    %c0_3 = arith.constant 0 : index
    %1 = vector.load %arg1[%c0_1, %c0_2, %c0_3] : memref<1x288x72xbf16, #tpu.memory_space<vmem>>, vector<1x288x72xbf16>
    %2 = vector.shape_cast %1 : vector<1x288x72xbf16> to vector<288x72xbf16>
    %c0_4 = arith.constant 0 : index
    %c0_5 = arith.constant 0 : index
    %3 = vector.load %arg2[%c0_4, %c0_5] : memref<72x128xbf16, #tpu.memory_space<vmem>>, vector<72x128xbf16>
    %cst = arith.constant dense<0.000000e+00> : vector<288x128xf32>
    %4 = tpu.matmul %2, %3, %cst {dimension_numbers = #tpu.dot_dimension_numbers<[1], [0], [0], [1], [0, 0, 1, 1], [], []>} : vector<288x72xbf16>, vector<72x128xbf16>, vector<288x128xf32> -> vector<288x128xf32>
    %5 = arith.truncf %4 : vector<288x128xf32> to vector<288x128xbf16>
    %c0_6 = arith.constant 0 : index
    %c0_7 = arith.constant 0 : index
    %c0_8 = arith.constant 0 : index
    %6 = vector.load %arg4[%c0_6, %c0_7, %c0_8] : memref<1x288x128xbf16, #tpu.memory_space<vmem>>, vector<1x288x128xbf16>
    %7 = vector.shape_cast %6 : vector<1x288x128xbf16> to vector<288x128xbf16>
    %8 = vector.shape_cast %5 : vector<288x128xbf16> to vector<1x288x128xbf16>
    tpu.vector_store %arg4[%c0_6, %c0_7, %c0_8], %8 {strides = array<i32>} : memref<1x288x128xbf16, #tpu.memory_space<vmem>>, vector<1x288x128xbf16>,
    %9 = vector.broadcast %0 : vector<288x1xf32> to vector<288x128xf32>
    %10 = arith.mulf %4, %9 : vector<288x128xf32>
    %cst_9 = arith.constant dense<0.000000e+00> : vector<128xf32>
    %11 = vector.multi_reduction <add>, %10, %cst_9 [0] : vector<288x128xf32> to vector<128xf32>
    %12 = vector.shape_cast %11 : vector<128xf32> to vector<1x128xf32>
    %c0_10 = arith.constant 0 : index
    %c0_11 = arith.constant 0 : index
    %c0_12 = arith.constant 0 : index
    %13 = vector.load %arg5[%c0_10, %c0_11, %c0_12] : memref<1x2x128xf32, #tpu.memory_space<vmem>>, vector<1x1x128xf32>
    %14 = vector.shape_cast %13 : vector<1x1x128xf32> to vector<1x128xf32>
    %15 = vector.shape_cast %12 : vector<1x128xf32> to vector<1x1x128xf32>
    tpu.vector_store %arg5[%c0_10, %c0_11, %c0_12], %15 {strides = array<i32>} : memref<1x2x128xf32, #tpu.memory_space<vmem>>, vector<1x1x128xf32>,
    %16 = arith.mulf %10, %4 : vector<288x128xf32>
    %cst_13 = arith.constant dense<0.000000e+00> : vector<128xf32>
    %17 = vector.multi_reduction <add>, %16, %cst_13 [0] : vector<288x128xf32> to vector<128xf32>
    %18 = vector.shape_cast %17 : vector<128xf32> to vector<1x128xf32>
    %c0_14 = arith.constant 0 : index
    %c1 = arith.constant 1 : index
    %c0_15 = arith.constant 0 : index
    %19 = vector.load %arg5[%c0_14, %c1, %c0_15] : memref<1x2x128xf32, #tpu.memory_space<vmem>>, vector<1x1x128xf32>
    %20 = vector.shape_cast %19 : vector<1x1x128xf32> to vector<1x128xf32>
    %21 = vector.shape_cast %18 : vector<1x128xf32> to vector<1x1x128xf32>
    tpu.vector_store %arg5[%c0_14, %c1, %c0_15], %21 {strides = array<i32>} : memref<1x2x128xf32, #tpu.memory_space<vmem>>, vector<1x1x128xf32>,
    return
  }
  func.func @transform_0(%arg0: i32) -> (i32, i32, i32) {
    %c0_i32 = arith.constant 0 : i32
    %c0_i32_0 = arith.constant 0 : i32
    %c0_i32_1 = arith.constant 0 : i32
    return %arg0, %c0_i32, %c0_i32_0 : i32, i32, i32
  }
  func.func @transform_1(%arg0: i32) -> (i32, i32) {
    %c0_i32 = arith.constant 0 : i32
    %c0_i32_0 = arith.constant 0 : i32
    %c0_i32_1 = arith.constant 0 : i32
    return %c0_i32, %c0_i32_0 : i32, i32
  }
  func.func @transform_2(%arg0: i32) -> (i32, i32) {
    %c0_i32 = arith.constant 0 : i32
    %c0_i32_0 = arith.constant 0 : i32
    %c0_i32_1 = arith.constant 0 : i32
    return %c0_i32, %c0_i32_0 : i32, i32
  }
  func.func @transform_3(%arg0: i32) -> (i32, i32, i32) {
    %c0_i32 = arith.constant 0 : i32
    %c0_i32_0 = arith.constant 0 : i32
    %c0_i32_1 = arith.constant 0 : i32
    return %arg0, %c0_i32, %c0_i32_0 : i32, i32, i32
  }
  func.func @transform_4(%arg0: i32) -> (i32, i32, i32) {
    %c0_i32 = arith.constant 0 : i32
    %c0_i32_0 = arith.constant 0 : i32
    %c0_i32_1 = arith.constant 0 : i32
    return %arg0, %c0_i32, %c0_i32_0 : i32, i32, i32
  }
}

module attributes {stable_mosaic.version = 11 : i64} {
  func.func @kernel(%arg0: i32, %arg1: memref<1x288x128xbf16, #tpu.memory_space<vmem>>, %arg2: memref<1x128xf32, #tpu.memory_space<vmem>>, %arg3: memref<1x128xf32, #tpu.memory_space<vmem>>, %arg4: memref<288x1xf32, #tpu.memory_space<vmem>>, %arg5: memref<1152x128xbf16, #tpu.memory_space<vmem>>, %arg6: memref<1x288x128xbf16, #tpu.memory_space<vmem>>, %arg7: memref<1x2x128xf32, #tpu.memory_space<vmem>>, %arg8: memref<326x128xf32, #tpu.memory_space<vmem>>, %arg9: memref<288x1152xbf16, #tpu.memory_space<vmem>>) attributes {dimension_semantics = [#tpu.dimension_semantics<parallel>], iteration_bounds = array<i64: 2>, scalar_prefetch = 0 : i64, scratch_operands = 2 : i64, tpu.core_type = #tpu.core_type<tc>, window_params = [{transform_indices = @transform_0, window_bounds = array<i64: 1, 288, 128>}, {pipeline_mode = #tpu.pipeline_mode<synchronous>, transform_indices = @transform_1, window_bounds = array<i64: 1, 128>}, {pipeline_mode = #tpu.pipeline_mode<synchronous>, transform_indices = @transform_2, window_bounds = array<i64: 1, 128>}, {pipeline_mode = #tpu.pipeline_mode<synchronous>, transform_indices = @transform_3, window_bounds = array<i64: 288, 1>}, {pipeline_mode = #tpu.pipeline_mode<synchronous>, transform_indices = @transform_4, window_bounds = array<i64: 1152, 128>}, {transform_indices = @transform_5, window_bounds = array<i64: 1, 288, 128>}, {transform_indices = @transform_6, window_bounds = array<i64: 1, 2, 128>}]} {
    %c0 = arith.constant 0 : index
    %c0_0 = arith.constant 0 : index
    %0 = vector.load %arg4[%c0, %c0_0] : memref<288x1xf32, #tpu.memory_space<vmem>>, vector<288x1xf32>
    %c0_1 = arith.constant 0 : index
    %c0_2 = arith.constant 0 : index
    %c0_3 = arith.constant 0 : index
    %1 = vector.load %arg1[%c0_1, %c0_2, %c0_3] : memref<1x288x128xbf16, #tpu.memory_space<vmem>>, vector<1x288x128xbf16>
    %2 = vector.shape_cast %1 : vector<1x288x128xbf16> to vector<288x128xbf16>
    %3 = arith.extf %2 : vector<288x128xbf16> to vector<288x128xf32>
    %c0_4 = arith.constant 0 : index
    %c0_5 = arith.constant 0 : index
    %4 = vector.load %arg2[%c0_4, %c0_5] : memref<1x128xf32, #tpu.memory_space<vmem>>, vector<1x128xf32>
    %5 = vector.broadcast %4 : vector<1x128xf32> to vector<288x128xf32>
    %6 = arith.mulf %3, %5 : vector<288x128xf32>
    %c0_6 = arith.constant 0 : index
    %c0_7 = arith.constant 0 : index
    %7 = vector.load %arg3[%c0_6, %c0_7] : memref<1x128xf32, #tpu.memory_space<vmem>>, vector<1x128xf32>
    %8 = vector.broadcast %7 : vector<1x128xf32> to vector<288x128xf32>
    %9 = arith.addf %6, %8 : vector<288x128xf32>
    %cst = arith.constant 0.000000e+00 : f32
    %10 = vector.broadcast %cst : f32 to vector<288x128xf32>
    %11 = arith.maximumf %9, %10 : vector<288x128xf32>
    %12 = vector.broadcast %0 : vector<288x1xf32> to vector<288x128xf32>
    %13 = arith.mulf %11, %12 : vector<288x128xf32>
    %cst_8 = arith.constant 0.000000e+00 : f32
    %14 = vector.broadcast %cst_8 : f32 to vector<19x128xf32>
    %c0_9 = arith.constant 0 : index
    %c0_10 = arith.constant 0 : index
    %15 = vector.load %arg8[%c0_9, %c0_10] : memref<326x128xf32, #tpu.memory_space<vmem>>, vector<19x128xf32>
    tpu.vector_store %arg8[%c0_9, %c0_10], %14 {strides = array<i32>} : memref<326x128xf32, #tpu.memory_space<vmem>>, vector<19x128xf32>,
    %cst_11 = arith.constant 0.000000e+00 : f32
    %16 = vector.broadcast %cst_11 : f32 to vector<19x128xf32>
    %c307 = arith.constant 307 : index
    %c0_12 = arith.constant 0 : index
    %17 = vector.load %arg8[%c307, %c0_12] : memref<326x128xf32, #tpu.memory_space<vmem>>, vector<19x128xf32>
    tpu.vector_store %arg8[%c307, %c0_12], %16 {strides = array<i32>} : memref<326x128xf32, #tpu.memory_space<vmem>>, vector<19x128xf32>,
    %c19 = arith.constant 19 : index
    %c0_13 = arith.constant 0 : index
    %18 = vector.load %arg8[%c19, %c0_13] : memref<326x128xf32, #tpu.memory_space<vmem>>, vector<288x128xf32>
    tpu.vector_store %arg8[%c19, %c0_13], %13 {strides = array<i32>} : memref<326x128xf32, #tpu.memory_space<vmem>>, vector<288x128xf32>,
    %c0_14 = arith.constant 0 : index
    %c0_15 = arith.constant 0 : index
    %19 = vector.load %arg8[%c0_14, %c0_15] : memref<326x128xf32, #tpu.memory_space<vmem>>, vector<288x128xf32>
    %20 = arith.truncf %19 : vector<288x128xf32> to vector<288x128xbf16>
    %c0_16 = arith.constant 0 : index
    %c0_17 = arith.constant 0 : index
    %21 = vector.load %arg9[%c0_16, %c0_17] : memref<288x1152xbf16, #tpu.memory_space<vmem>>, vector<288x128xbf16>
    tpu.vector_store %arg9[%c0_16, %c0_17], %20 {strides = array<i32>} : memref<288x1152xbf16, #tpu.memory_space<vmem>>, vector<288x128xbf16>,
    %c1 = arith.constant 1 : index
    %c0_18 = arith.constant 0 : index
    %22 = vector.load %arg8[%c1, %c0_18] : memref<326x128xf32, #tpu.memory_space<vmem>>, vector<288x128xf32>
    %23 = arith.truncf %22 : vector<288x128xf32> to vector<288x128xbf16>
    %c0_19 = arith.constant 0 : index
    %c128 = arith.constant 128 : index
    %24 = vector.load %arg9[%c0_19, %c128] : memref<288x1152xbf16, #tpu.memory_space<vmem>>, vector<288x128xbf16>
    tpu.vector_store %arg9[%c0_19, %c128], %23 {strides = array<i32>} : memref<288x1152xbf16, #tpu.memory_space<vmem>>, vector<288x128xbf16>,
    %c2 = arith.constant 2 : index
    %c0_20 = arith.constant 0 : index
    %25 = vector.load %arg8[%c2, %c0_20] : memref<326x128xf32, #tpu.memory_space<vmem>>, vector<288x128xf32>
    %26 = arith.truncf %25 : vector<288x128xf32> to vector<288x128xbf16>
    %c0_21 = arith.constant 0 : index
    %c256 = arith.constant 256 : index
    %27 = vector.load %arg9[%c0_21, %c256] : memref<288x1152xbf16, #tpu.memory_space<vmem>>, vector<288x128xbf16>
    tpu.vector_store %arg9[%c0_21, %c256], %26 {strides = array<i32>} : memref<288x1152xbf16, #tpu.memory_space<vmem>>, vector<288x128xbf16>,
    %c18 = arith.constant 18 : index
    %c0_22 = arith.constant 0 : index
    %28 = vector.load %arg8[%c18, %c0_22] : memref<326x128xf32, #tpu.memory_space<vmem>>, vector<288x128xf32>
    %29 = arith.truncf %28 : vector<288x128xf32> to vector<288x128xbf16>
    %c0_23 = arith.constant 0 : index
    %c384 = arith.constant 384 : index
    %30 = vector.load %arg9[%c0_23, %c384] : memref<288x1152xbf16, #tpu.memory_space<vmem>>, vector<288x128xbf16>
    tpu.vector_store %arg9[%c0_23, %c384], %29 {strides = array<i32>} : memref<288x1152xbf16, #tpu.memory_space<vmem>>, vector<288x128xbf16>,
    %c19_24 = arith.constant 19 : index
    %c0_25 = arith.constant 0 : index
    %31 = vector.load %arg8[%c19_24, %c0_25] : memref<326x128xf32, #tpu.memory_space<vmem>>, vector<288x128xf32>
    %32 = arith.truncf %31 : vector<288x128xf32> to vector<288x128xbf16>
    %c0_26 = arith.constant 0 : index
    %c512 = arith.constant 512 : index
    %33 = vector.load %arg9[%c0_26, %c512] : memref<288x1152xbf16, #tpu.memory_space<vmem>>, vector<288x128xbf16>
    tpu.vector_store %arg9[%c0_26, %c512], %32 {strides = array<i32>} : memref<288x1152xbf16, #tpu.memory_space<vmem>>, vector<288x128xbf16>,
    %c20 = arith.constant 20 : index
    %c0_27 = arith.constant 0 : index
    %34 = vector.load %arg8[%c20, %c0_27] : memref<326x128xf32, #tpu.memory_space<vmem>>, vector<288x128xf32>
    %35 = arith.truncf %34 : vector<288x128xf32> to vector<288x128xbf16>
    %c0_28 = arith.constant 0 : index
    %c640 = arith.constant 640 : index
    %36 = vector.load %arg9[%c0_28, %c640] : memref<288x1152xbf16, #tpu.memory_space<vmem>>, vector<288x128xbf16>
    tpu.vector_store %arg9[%c0_28, %c640], %35 {strides = array<i32>} : memref<288x1152xbf16, #tpu.memory_space<vmem>>, vector<288x128xbf16>,
    %c36 = arith.constant 36 : index
    %c0_29 = arith.constant 0 : index
    %37 = vector.load %arg8[%c36, %c0_29] : memref<326x128xf32, #tpu.memory_space<vmem>>, vector<288x128xf32>
    %38 = arith.truncf %37 : vector<288x128xf32> to vector<288x128xbf16>
    %c0_30 = arith.constant 0 : index
    %c768 = arith.constant 768 : index
    %39 = vector.load %arg9[%c0_30, %c768] : memref<288x1152xbf16, #tpu.memory_space<vmem>>, vector<288x128xbf16>
    tpu.vector_store %arg9[%c0_30, %c768], %38 {strides = array<i32>} : memref<288x1152xbf16, #tpu.memory_space<vmem>>, vector<288x128xbf16>,
    %c37 = arith.constant 37 : index
    %c0_31 = arith.constant 0 : index
    %40 = vector.load %arg8[%c37, %c0_31] : memref<326x128xf32, #tpu.memory_space<vmem>>, vector<288x128xf32>
    %41 = arith.truncf %40 : vector<288x128xf32> to vector<288x128xbf16>
    %c0_32 = arith.constant 0 : index
    %c896 = arith.constant 896 : index
    %42 = vector.load %arg9[%c0_32, %c896] : memref<288x1152xbf16, #tpu.memory_space<vmem>>, vector<288x128xbf16>
    tpu.vector_store %arg9[%c0_32, %c896], %41 {strides = array<i32>} : memref<288x1152xbf16, #tpu.memory_space<vmem>>, vector<288x128xbf16>,
    %c38 = arith.constant 38 : index
    %c0_33 = arith.constant 0 : index
    %43 = vector.load %arg8[%c38, %c0_33] : memref<326x128xf32, #tpu.memory_space<vmem>>, vector<288x128xf32>
    %44 = arith.truncf %43 : vector<288x128xf32> to vector<288x128xbf16>
    %c0_34 = arith.constant 0 : index
    %c1024 = arith.constant 1024 : index
    %45 = vector.load %arg9[%c0_34, %c1024] : memref<288x1152xbf16, #tpu.memory_space<vmem>>, vector<288x128xbf16>
    tpu.vector_store %arg9[%c0_34, %c1024], %44 {strides = array<i32>} : memref<288x1152xbf16, #tpu.memory_space<vmem>>, vector<288x128xbf16>,
    %c0_35 = arith.constant 0 : index
    %c0_36 = arith.constant 0 : index
    %46 = vector.load %arg9[%c0_35, %c0_36] : memref<288x1152xbf16, #tpu.memory_space<vmem>>, vector<288x1152xbf16>
    %c0_37 = arith.constant 0 : index
    %c0_38 = arith.constant 0 : index
    %47 = vector.load %arg5[%c0_37, %c0_38] : memref<1152x128xbf16, #tpu.memory_space<vmem>>, vector<1152x128xbf16>
    %cst_39 = arith.constant dense<0.000000e+00> : vector<288x128xf32>
    %48 = tpu.matmul %46, %47, %cst_39 {dimension_numbers = #tpu.dot_dimension_numbers<[1], [0], [0], [1], [0, 0, 1, 1], [], []>} : vector<288x1152xbf16>, vector<1152x128xbf16>, vector<288x128xf32> -> vector<288x128xf32>
    %49 = arith.truncf %48 : vector<288x128xf32> to vector<288x128xbf16>
    %c0_40 = arith.constant 0 : index
    %c0_41 = arith.constant 0 : index
    %c0_42 = arith.constant 0 : index
    %50 = vector.load %arg6[%c0_40, %c0_41, %c0_42] : memref<1x288x128xbf16, #tpu.memory_space<vmem>>, vector<1x288x128xbf16>
    %51 = vector.shape_cast %50 : vector<1x288x128xbf16> to vector<288x128xbf16>
    %52 = vector.shape_cast %49 : vector<288x128xbf16> to vector<1x288x128xbf16>
    tpu.vector_store %arg6[%c0_40, %c0_41, %c0_42], %52 {strides = array<i32>} : memref<1x288x128xbf16, #tpu.memory_space<vmem>>, vector<1x288x128xbf16>,
    %53 = vector.broadcast %0 : vector<288x1xf32> to vector<288x128xf32>
    %54 = arith.mulf %48, %53 : vector<288x128xf32>
    %cst_43 = arith.constant dense<0.000000e+00> : vector<128xf32>
    %55 = vector.multi_reduction <add>, %54, %cst_43 [0] : vector<288x128xf32> to vector<128xf32>
    %56 = vector.shape_cast %55 : vector<128xf32> to vector<1x128xf32>
    %c0_44 = arith.constant 0 : index
    %c0_45 = arith.constant 0 : index
    %c0_46 = arith.constant 0 : index
    %57 = vector.load %arg7[%c0_44, %c0_45, %c0_46] : memref<1x2x128xf32, #tpu.memory_space<vmem>>, vector<1x1x128xf32>
    %58 = vector.shape_cast %57 : vector<1x1x128xf32> to vector<1x128xf32>
    %59 = vector.shape_cast %56 : vector<1x128xf32> to vector<1x1x128xf32>
    tpu.vector_store %arg7[%c0_44, %c0_45, %c0_46], %59 {strides = array<i32>} : memref<1x2x128xf32, #tpu.memory_space<vmem>>, vector<1x1x128xf32>,
    %60 = arith.mulf %54, %48 : vector<288x128xf32>
    %cst_47 = arith.constant dense<0.000000e+00> : vector<128xf32>
    %61 = vector.multi_reduction <add>, %60, %cst_47 [0] : vector<288x128xf32> to vector<128xf32>
    %62 = vector.shape_cast %61 : vector<128xf32> to vector<1x128xf32>
    %c0_48 = arith.constant 0 : index
    %c1_49 = arith.constant 1 : index
    %c0_50 = arith.constant 0 : index
    %63 = vector.load %arg7[%c0_48, %c1_49, %c0_50] : memref<1x2x128xf32, #tpu.memory_space<vmem>>, vector<1x1x128xf32>
    %64 = vector.shape_cast %63 : vector<1x1x128xf32> to vector<1x128xf32>
    %65 = vector.shape_cast %62 : vector<1x128xf32> to vector<1x1x128xf32>
    tpu.vector_store %arg7[%c0_48, %c1_49, %c0_50], %65 {strides = array<i32>} : memref<1x2x128xf32, #tpu.memory_space<vmem>>, vector<1x1x128xf32>,
    return
  }
  func.func @transform_0(%arg0: i32) -> (i32, i32, i32) {
    %c0_i32 = arith.constant 0 : i32
    %c0_i32_0 = arith.constant 0 : i32
    %c0_i32_1 = arith.constant 0 : i32
    return %arg0, %c0_i32, %c0_i32_0 : i32, i32, i32
  }
  func.func @transform_1(%arg0: i32) -> (i32, i32) {
    %c0_i32 = arith.constant 0 : i32
    %c0_i32_0 = arith.constant 0 : i32
    %c0_i32_1 = arith.constant 0 : i32
    return %c0_i32, %c0_i32_0 : i32, i32
  }
  func.func @transform_2(%arg0: i32) -> (i32, i32) {
    %c0_i32 = arith.constant 0 : i32
    %c0_i32_0 = arith.constant 0 : i32
    %c0_i32_1 = arith.constant 0 : i32
    return %c0_i32, %c0_i32_0 : i32, i32
  }
  func.func @transform_3(%arg0: i32) -> (i32, i32) {
    %c0_i32 = arith.constant 0 : i32
    %c0_i32_0 = arith.constant 0 : i32
    %c0_i32_1 = arith.constant 0 : i32
    return %c0_i32, %c0_i32_0 : i32, i32
  }
  func.func @transform_4(%arg0: i32) -> (i32, i32) {
    %c0_i32 = arith.constant 0 : i32
    %c0_i32_0 = arith.constant 0 : i32
    %c0_i32_1 = arith.constant 0 : i32
    return %c0_i32, %c0_i32_0 : i32, i32
  }
  func.func @transform_5(%arg0: i32) -> (i32, i32, i32) {
    %c0_i32 = arith.constant 0 : i32
    %c0_i32_0 = arith.constant 0 : i32
    %c0_i32_1 = arith.constant 0 : i32
    return %arg0, %c0_i32, %c0_i32_0 : i32, i32, i32
  }
  func.func @transform_6(%arg0: i32) -> (i32, i32, i32) {
    %c0_i32 = arith.constant 0 : i32
    %c0_i32_0 = arith.constant 0 : i32
    %c0_i32_1 = arith.constant 0 : i32
    return %arg0, %c0_i32, %c0_i32_0 : i32, i32, i32
  }
}

module attributes {stable_mosaic.version = 11 : i64} {
  func.func @kernel(%arg0: i32, %arg1: memref<1x288x128xbf16, #tpu.memory_space<vmem>>, %arg2: memref<1x128xf32, #tpu.memory_space<vmem>>, %arg3: memref<1x128xf32, #tpu.memory_space<vmem>>, %arg4: memref<1x288x8xf32, #tpu.memory_space<vmem>>, %arg5: memref<1x288x128xbf16, #tpu.memory_space<vmem>>) attributes {dimension_semantics = [#tpu.dimension_semantics<parallel>], iteration_bounds = array<i64: 2>, scalar_prefetch = 0 : i64, scratch_operands = 0 : i64, tpu.core_type = #tpu.core_type<tc>, window_params = [{transform_indices = @transform_0, window_bounds = array<i64: 1, 288, 128>}, {pipeline_mode = #tpu.pipeline_mode<synchronous>, transform_indices = @transform_1, window_bounds = array<i64: 1, 128>}, {pipeline_mode = #tpu.pipeline_mode<synchronous>, transform_indices = @transform_2, window_bounds = array<i64: 1, 128>}, {transform_indices = @transform_3, window_bounds = array<i64: 1, 288, 8>}, {transform_indices = @transform_4, window_bounds = array<i64: 1, 288, 128>}]} {
    %c0 = arith.constant 0 : index
    %c0_0 = arith.constant 0 : index
    %c0_1 = arith.constant 0 : index
    %0 = vector.load %arg1[%c0, %c0_0, %c0_1] : memref<1x288x128xbf16, #tpu.memory_space<vmem>>, vector<1x288x128xbf16>
    %1 = vector.shape_cast %0 : vector<1x288x128xbf16> to vector<288x128xbf16>
    %2 = arith.extf %1 : vector<288x128xbf16> to vector<288x128xf32>
    %c0_2 = arith.constant 0 : index
    %c0_3 = arith.constant 0 : index
    %3 = vector.load %arg2[%c0_2, %c0_3] : memref<1x128xf32, #tpu.memory_space<vmem>>, vector<1x128xf32>
    %4 = vector.broadcast %3 : vector<1x128xf32> to vector<288x128xf32>
    %5 = arith.mulf %2, %4 : vector<288x128xf32>
    %c0_4 = arith.constant 0 : index
    %c0_5 = arith.constant 0 : index
    %6 = vector.load %arg3[%c0_4, %c0_5] : memref<1x128xf32, #tpu.memory_space<vmem>>, vector<1x128xf32>
    %7 = vector.broadcast %6 : vector<1x128xf32> to vector<288x128xf32>
    %8 = arith.addf %5, %7 : vector<288x128xf32>
    %c0_6 = arith.constant 0 : index
    %c0_7 = arith.constant 0 : index
    %c0_8 = arith.constant 0 : index
    %9 = vector.load %arg4[%c0_6, %c0_7, %c0_8] : memref<1x288x8xf32, #tpu.memory_space<vmem>>, vector<1x288x8xf32>
    %10 = vector.shape_cast %9 : vector<1x288x8xf32> to vector<288x8xf32>
    %cst = arith.constant 0.000000e+00 : f32
    %11 = vector.broadcast %cst : f32 to vector<288x120xf32>
    %12 = tpu.concatenate %10, %11 in 1 : vector<288x8xf32>, vector<288x120xf32> -> vector<288x128xf32>
    %13 = arith.addf %8, %12 : vector<288x128xf32>
    %cst_9 = arith.constant 0.000000e+00 : f32
    %14 = vector.broadcast %cst_9 : f32 to vector<288x128xf32>
    %15 = arith.maximumf %13, %14 : vector<288x128xf32>
    %16 = arith.truncf %15 : vector<288x128xf32> to vector<288x128xbf16>
    %c0_10 = arith.constant 0 : index
    %c0_11 = arith.constant 0 : index
    %c0_12 = arith.constant 0 : index
    %17 = vector.load %arg5[%c0_10, %c0_11, %c0_12] : memref<1x288x128xbf16, #tpu.memory_space<vmem>>, vector<1x288x128xbf16>
    %18 = vector.shape_cast %17 : vector<1x288x128xbf16> to vector<288x128xbf16>
    %19 = vector.shape_cast %16 : vector<288x128xbf16> to vector<1x288x128xbf16>
    tpu.vector_store %arg5[%c0_10, %c0_11, %c0_12], %19 {strides = array<i32>} : memref<1x288x128xbf16, #tpu.memory_space<vmem>>, vector<1x288x128xbf16>,
    return
  }
  func.func @transform_0(%arg0: i32) -> (i32, i32, i32) {
    %c0_i32 = arith.constant 0 : i32
    %c0_i32_0 = arith.constant 0 : i32
    %c0_i32_1 = arith.constant 0 : i32
    return %arg0, %c0_i32, %c0_i32_0 : i32, i32, i32
  }
  func.func @transform_1(%arg0: i32) -> (i32, i32) {
    %c0_i32 = arith.constant 0 : i32
    %c0_i32_0 = arith.constant 0 : i32
    %c0_i32_1 = arith.constant 0 : i32
    return %c0_i32, %c0_i32_0 : i32, i32
  }
  func.func @transform_2(%arg0: i32) -> (i32, i32) {
    %c0_i32 = arith.constant 0 : i32
    %c0_i32_0 = arith.constant 0 : i32
    %c0_i32_1 = arith.constant 0 : i32
    return %c0_i32, %c0_i32_0 : i32, i32
  }
  func.func @transform_3(%arg0: i32) -> (i32, i32, i32) {
    %c0_i32 = arith.constant 0 : i32
    %c0_i32_0 = arith.constant 0 : i32
    %c0_i32_1 = arith.constant 0 : i32
    return %arg0, %c0_i32, %c0_i32_0 : i32, i32, i32
  }
  func.func @transform_4(%arg0: i32) -> (i32, i32, i32) {
    %c0_i32 = arith.constant 0 : i32
    %c0_i32_0 = arith.constant 0 : i32
    %c0_i32_1 = arith.constant 0 : i32
    return %arg0, %c0_i32, %c0_i32_0 : i32, i32, i32
  }
}

</mosaic_0001>

<llo_original>
// kernel: block_forward.3
$region0: #{block_forward.3}
  #allocation0 [shape = 'u32[]', space=smem, size = 0x4, offset = 0x4, fixed_abs, tag = 'smem constant byte address 0x4 - core index']
  #allocation1 [shape = 'u32[144,128]{1,0:T(1,128)}', space=vmem, size = 0x12000, scoped, tag = 'internal scratch']
  %s0 = inlined_call_operand.vmem [shape: bf16[2,288,72], index: 0, kind: input, shape index: {}]
  %s1 = inlined_call_operand.vmem [shape: bf16[72,128], index: 1, kind: input, shape index: {}]
  %s2 = inlined_call_operand.vmem [shape: f32[288,1], index: 2, kind: input, shape index: {}]
  %s3 = inlined_call_operand.vmem [shape: bf16[2,288,128], index: 3, kind: output, shape index: {0}]
  %s4 = inlined_call_operand.vmem [shape: f32[2,2,128], index: 4, kind: output, shape index: {1}]
  %5 = xla_tuple %s3, %s4
  %s6 = sld [smem:[#allocation0]]
  $region53: #{block_forward.3} parent=0
    _
  %s8 = ssub.s32 1, %s6
  %s9 = scalar_select 0, %s8, %s6
  loop: start=0, step=1, limit=4
  $region2: #{block_forward.3} parent=0 // loop_pre_header
    _
  $region3: #{block_forward.3} parent=0 // loop_header
    %s11 = sphi 0, %s15
    %p12 = scmp.ge.s32.totalorder %s11, 4
    %s21 = sphi 0, %s23
    %s24 = sphi 0, %s21
    %s25 = sphi 0, %s24
    %s41 = sphi 0, %s25
    %s45 = sphi 0, %s45
    %s47 = sphi 0, %s45
    %s48 = sphi 0, %s47
    %s62 = sphi 0, %s48
    %s66 = sphi 0, %s66
    %s68 = sphi 0, %s66
    %s69 = sphi 0, %s68
    %s83 = sphi 0, %s69
    %s89 = sphi 0, %s91
    %s92 = sphi 0, %s89
    %s93 = sphi 0, %s92
    %s109 = sphi 0, %s93
    %s115 = sphi 0, %s117
    %s118 = sphi 0, %s115
    %s119 = sphi 0, %s118
    %s135 = sphi 0, %s119
  $region4: #{block_forward.3} parent=0 // loop_header_branch
    %14 = sbr.rel (%p12) target = $region8
  $region5: #{block_forward.3} parent=0 // loop_body
    %s16 = ssub.s32 %s11, 1
    %s17 = ssub.s32 %s11, 2
    %s18 = sadd.s32 %s11, 1
    %s19 = ssub.s32 %s11, %s18
    %p20 = scmp.eq.s32.totalorder %s19, 0
    %s22 = sadd.s32 %s21, 1
    %s23 = scalar_select %p20, %s21, %s22
    %p26 = pneg %p20
    %p27 = scmp.eq.s32.totalorder %s11, 1
    %p28 = por %p26, %p27
    %p29 = scmp.ne.s32.totalorder %s21, %s24
    %p30 = scmp.eq.s32.totalorder %s11, 0
    %p31 = por %p29, %p30
    %p32 = scmp.ne.s32.totalorder %s21, %s24
    %p33 = scmp.eq.s32.totalorder %s16, 1
    %p34 = por %p32, %p33
    %p35 = scmp.ne.s32.totalorder %s24, %s25
    %p36 = scmp.eq.s32.totalorder %s16, 0
    %p37 = por %p35, %p36
    %p38 = scmp.ne.s32.totalorder %s24, %s25
    %p39 = scmp.eq.s32.totalorder %s17, 1
    %p40 = por %p38, %p39
    %p42 = scmp.ne.s32.totalorder %s25, %s41
    %p43 = scmp.eq.s32.totalorder %s17, 0
    %p44 = por %p42, %p43
    %s46 = sadd.s32 %s45, 1
    %p49 = scmp.eq.s32.totalorder %s11, 1
    %p50 = scmp.ne.s32.totalorder %s45, %s47
    %p51 = scmp.eq.s32.totalorder %s11, 0
    %p52 = por %p50, %p51
    %p53 = scmp.ne.s32.totalorder %s45, %s47
    %p54 = scmp.eq.s32.totalorder %s16, 1
    %p55 = por %p53, %p54
    %p56 = scmp.ne.s32.totalorder %s47, %s48
    %p57 = scmp.eq.s32.totalorder %s16, 0
    %p58 = por %p56, %p57
    %p59 = scmp.ne.s32.totalorder %s47, %s48
    %p60 = scmp.eq.s32.totalorder %s17, 1
    %p61 = por %p59, %p60
    %p63 = scmp.ne.s32.totalorder %s48, %s62
    %p64 = scmp.eq.s32.totalorder %s17, 0
    %p65 = por %p63, %p64
    %s67 = sadd.s32 %s66, 1
    %p70 = scmp.eq.s32.totalorder %s11, 1
    %p71 = scmp.ne.s32.totalorder %s66, %s68
    %p72 = scmp.eq.s32.totalorder %s11, 0
    %p73 = por %p71, %p72
    %p74 = scmp.ne.s32.totalorder %s66, %s68
    %p75 = scmp.eq.s32.totalorder %s16, 1
    %p76 = por %p74, %p75
    %p77 = scmp.ne.s32.totalorder %s68, %s69
    %p78 = scmp.eq.s32.totalorder %s16, 0
    %p79 = por %p77, %p78
    %p80 = scmp.ne.s32.totalorder %s68, %s69
    %p81 = scmp.eq.s32.totalorder %s17, 1
    %p82 = por %p80, %p81
    %p84 = scmp.ne.s32.totalorder %s69, %s83
    %p85 = scmp.eq.s32.totalorder %s17, 0
    %p86 = por %p84, %p85
    %s87 = ssub.s32 %s11, %s18
    %p88 = scmp.eq.s32.totalorder %s87, 0
    %s90 = sadd.s32 %s89, 1
    %s91 = scalar_select %p88, %s89, %s90
    %p94 = pneg %p88
    %p95 = scmp.eq.s32.totalorder %s11, 1
    %p96 = por %p94, %p95
    %p97 = scmp.ne.s32.totalorder %s89, %s92
    %p98 = scmp.eq.s32.totalorder %s11, 0
    %p99 = por %p97, %p98
    %p100 = scmp.ne.s32.totalorder %s89, %s92
    %p101 = scmp.eq.s32.totalorder %s16, 1
    %p102 = por %p100, %p101
    %p103 = scmp.ne.s32.totalorder %s92, %s93
    %p104 = scmp.eq.s32.totalorder %s16, 0
    %p105 = por %p103, %p104
    %p106 = scmp.ne.s32.totalorder %s92, %s93
    %p107 = scmp.eq.s32.totalorder %s17, 1
    %p108 = por %p106, %p107
    %p110 = scmp.ne.s32.totalorder %s93, %s109
    %p111 = scmp.eq.s32.totalorder %s17, 0
    %p112 = por %p110, %p111
    %s113 = ssub.s32 %s11, %s18
    %p114 = scmp.eq.s32.totalorder %s113, 0
    %s116 = sadd.s32 %s115, 1
    %s117 = scalar_select %p114, %s115, %s116
    %p120 = pneg %p114
    %p121 = scmp.eq.s32.totalorder %s11, 1
    %p122 = por %p120, %p121
    %p123 = scmp.ne.s32.totalorder %s115, %s118
    %p124 = scmp.eq.s32.totalorder %s11, 0
    %p125 = por %p123, %p124
    %p126 = scmp.ne.s32.totalorder %s115, %s118
    %p127 = scmp.eq.s32.totalorder %s16, 1
    %p128 = por %p126, %p127
    %p129 = scmp.ne.s32.totalorder %s118, %s119
    %p130 = scmp.eq.s32.totalorder %s16, 0
    %p131 = por %p129, %p130
    %p132 = scmp.ne.s32.totalorder %s118, %s119
    %p133 = scmp.eq.s32.totalorder %s17, 1
    %p134 = por %p132, %p133
    %p136 = scmp.ne.s32.totalorder %s119, %s135
    %p137 = scmp.eq.s32.totalorder %s17, 0
    %p138 = por %p136, %p137
    %p139 = scmp.le.s32.totalorder 1, %s11
    %p140 = scmp.lt.s32.totalorder %s11, 3
    %p141 = pnand %p139, %p140
    %p142 = pneg %p141
    // Predicated region
    $region9: #{block_forward.3} parent=5 // pred_check
      _
    $region10: #{block_forward.3} parent=5 // pred_check_branch
      %144 = sbr.rel (%p141) target = $region12
    $region11: #{block_forward.3} parent=5 // pred_region
      %s145 = ssub.s32 %s11, 1
      // Predicated region
      $region13: #{block_forward.3} parent=11 // pred_check
        %p146 = pneg %p58
      $region14: #{block_forward.3} parent=11 // pred_check_branch
        %148 = sbr.rel (%p146) target = $region16
      $region15: #{block_forward.3} parent=11 // pred_region
        _
      $region16: #{block_forward.3} parent=11 // pred_fallthru
        _
      // Predicated region
      $region17: #{block_forward.3} parent=11 // pred_check
        %p149 = pneg %p79
      $region18: #{block_forward.3} parent=11 // pred_check_branch
        %151 = sbr.rel (%p149) target = $region20
      $region19: #{block_forward.3} parent=11 // pred_region
        _
      $region20: #{block_forward.3} parent=11 // pred_fallthru
        _
    $region12: #{block_forward.3} parent=5 // pred_fallthru
      _
    %p152 = scmp.lt.s32.totalorder %s11, 2
    // Predicated region
    $region21: #{block_forward.3} parent=5 // pred_check
      %p153 = pneg %p152
    $region22: #{block_forward.3} parent=5 // pred_check_branch
      %155 = sbr.rel (%p153) target = $region24
    $region23: #{block_forward.3} parent=5 // pred_region
      // Predicated region
      $region25: #{block_forward.3} parent=23 // pred_check
        %p156 = pneg %p31
      $region26: #{block_forward.3} parent=23 // pred_check_branch
        %158 = sbr.rel (%p156) target = $region28
      $region27: #{block_forward.3} parent=23 // pred_region
        %p159 = scmp.lt.s32.totalorder %s11, 1
        %s160 = scalar_select %p159, %s11, 1
        %s161 = smul.addr %s160, 36
        %s162 = smul.addr %s161, 4
        %s163 = scalar_lea.vmem %s0, %s162
      $region28: #{block_forward.3} parent=23 // pred_fallthru
        _
    $region24: #{block_forward.3} parent=5 // pred_fallthru
      _
    %p164 = scmp.le.s32.totalorder 1, %s11
    %p165 = scmp.lt.s32.totalorder %s11, 3
    %p166 = pnand %p164, %p165
    %p167 = pneg %p166
    // Predicated region
    $region29: #{block_forward.3} parent=5 // pred_check
      _
    $region30: #{block_forward.3} parent=5 // pred_check_branch
      %169 = sbr.rel (%p166) target = $region32
    $region31: #{block_forward.3} parent=5 // pred_region
      %s170 = ssub.s32 %s11, 1
      %p171 = scmp.lt.s32.totalorder %s16, 1
      %s172 = scalar_select %p171, %s16, 1
      %s173 = smul.addr %s172, 36
      %s174 = smul.addr %s173, 4
      %s175 = scalar_lea.vmem %s0, %s174
      %p176 = pneg %p37
      %p177 = pneg %p34
      %p178 = pneg %p58
      %p179 = pneg %p55
      %p180 = pneg %p79
      %p181 = pneg %p76
      %p182 = pneg %p105
      %p183 = pneg %p102
      %p184 = scmp.lt.s32.totalorder %s16, 1
      %s185 = scalar_select %p184, %s16, 1
      %s186 = smul.addr %s185, 36
      %s187 = smul.addr %s186, 4
      %s188 = scalar_lea.vmem %s3, %s187
      %p189 = pneg %p131
      %p190 = pneg %p128
      %p191 = scmp.lt.s32.totalorder %s16, 1
      %s192 = scalar_select %p191, %s16, 1
      %s193 = smul.addr %s192, 2
      %s194 = scalar_lea.vmem %s4, %s193
      %p195 = scmp.lt.s32.totalorder %s16, 1
      %s196 = scalar_select %p195, %s16, 1
      %s197 = smul.addr %s196, 36
      %s198 = smul.addr %s197, 4
      %s199 = scalar_lea.vmem %s0, %s198
      %p200 = scmp.lt.s32.totalorder %s16, 1
      %s201 = scalar_select %p200, %s16, 1
      %s202 = smul.addr %s201, 36
      %s203 = smul.addr %s202, 4
      %s204 = scalar_lea.vmem %s3, %s203
      %p205 = scmp.lt.s32.totalorder %s16, 1
      %s206 = scalar_select %p205, %s16, 1
      %s207 = smul.addr %s206, 2
      %s208 = scalar_lea.vmem %s4, %s207
      %v210 = vld [vmem:[%s2] sm:$0xff]
      %v211 = vld [vmem:[%s2 + $0x8] sm:$0xff]
      %v212 = vld [vmem:[%s2 + $0x10] sm:$0xff]
      %v213 = vld [vmem:[%s2 + $0x18] sm:$0xff]
      %v214 = vld [vmem:[%s2 + $0x20] sm:$0xff]
      %v215 = vld [vmem:[%s2 + $0x28] sm:$0xff]
      %v216 = vld [vmem:[%s2 + $0x30] sm:$0xff]
      %v217 = vld [vmem:[%s2 + $0x38] sm:$0xff]
      %v218 = vld [vmem:[%s2 + $0x40] sm:$0xff]
      %v219 = vld [vmem:[%s2 + $0x48] sm:$0xff]
      %v220 = vld [vmem:[%s2 + $0x50] sm:$0xff]
      %v221 = vld [vmem:[%s2 + $0x58] sm:$0xff]
      %v222 = vld [vmem:[%s2 + $0x60] sm:$0xff]
      %v223 = vld [vmem:[%s2 + $0x68] sm:$0xff]
      %v224 = vld [vmem:[%s2 + $0x70] sm:$0xff]
      %v225 = vld [vmem:[%s2 + $0x78] sm:$0xff]
      %v226 = vld [vmem:[%s2 + $0x80] sm:$0xff]
      %v227 = vld [vmem:[%s2 + $0x88] sm:$0xff]
      %v228 = vld [vmem:[%s2 + $0x90] sm:$0xff]
      %v229 = vld [vmem:[%s2 + $0x98] sm:$0xff]
      %v230 = vld [vmem:[%s2 + $0xa0] sm:$0xff]
      %v231 = vld [vmem:[%s2 + $0xa8] sm:$0xff]
      %v232 = vld [vmem:[%s2 + $0xb0] sm:$0xff]
      %v233 = vld [vmem:[%s2 + $0xb8] sm:$0xff]
      %v234 = vld [vmem:[%s2 + $0xc0] sm:$0xff]
      %v235 = vld [vmem:[%s2 + $0xc8] sm:$0xff]
      %v236 = vld [vmem:[%s2 + $0xd0] sm:$0xff]
      %v237 = vld [vmem:[%s2 + $0xd8] sm:$0xff]
      %v238 = vld [vmem:[%s2 + $0xe0] sm:$0xff]
      %v239 = vld [vmem:[%s2 + $0xe8] sm:$0xff]
      %v240 = vld [vmem:[%s2 + $0xf0] sm:$0xff]
      %v241 = vld [vmem:[%s2 + $0xf8] sm:$0xff]
      %v242 = vld [vmem:[%s2 + $0x100] sm:$0xff]
      %v243 = vld [vmem:[%s2 + $0x108] sm:$0xff]
      %v244 = vld [vmem:[%s2 + $0x110] sm:$0xff]
      %v245 = vld [vmem:[%s2 + $0x118] sm:$0xff]
      %v246 = vld [vmem:[%s199] sm:$0xf]
      %v247 = vld [vmem:[%s199 + $0x4] sm:$0xf]
      %v248 = vld [vmem:[%s199 + $0x8] sm:$0xf]
      %v249 = vld [vmem:[%s199 + $0xc] sm:$0xf]
      %v250 = vld [vmem:[%s199 + $0x10] sm:$0xf]
      %v251 = vld [vmem:[%s199 + $0x14] sm:$0xf]
      %v252 = vld [vmem:[%s199 + $0x18] sm:$0xf]
      %v253 = vld [vmem:[%s199 + $0x1c] sm:$0xf]
      %v254 = vld [vmem:[%s199 + $0x20] sm:$0xf]
      %v255 = vld [vmem:[%s199 + $0x24] sm:$0xf]
      %v256 = vld [vmem:[%s199 + $0x28] sm:$0xf]
      %v257 = vld [vmem:[%s199 + $0x2c] sm:$0xf]
      %v258 = vld [vmem:[%s199 + $0x30] sm:$0xf]
      %v259 = vld [vmem:[%s199 + $0x34] sm:$0xf]
      %v260 = vld [vmem:[%s199 + $0x38] sm:$0xf]
      %v261 = vld [vmem:[%s199 + $0x3c] sm:$0xf]
      %v262 = vld [vmem:[%s199 + $0x40] sm:$0xf]
      %v263 = vld [vmem:[%s199 + $0x44] sm:$0xf]
      %v264 = vld [vmem:[%s199 + $0x48] sm:$0xf]
      %v265 = vld [vmem:[%s199 + $0x4c] sm:$0xf]
      %v266 = vld [vmem:[%s199 + $0x50] sm:$0xf]
      %v267 = vld [vmem:[%s199 + $0x54] sm:$0xf]
      %v268 = vld [vmem:[%s199 + $0x58] sm:$0xf]
      %v269 = vld [vmem:[%s199 + $0x5c] sm:$0xf]
      %v270 = vld [vmem:[%s199 + $0x60] sm:$0xf]
      %v271 = vld [vmem:[%s199 + $0x64] sm:$0xf]
      %v272 = vld [vmem:[%s199 + $0x68] sm:$0xf]
      %v273 = vld [vmem:[%s199 + $0x6c] sm:$0xf]
      %v274 = vld [vmem:[%s199 + $0x70] sm:$0xf]
      %v275 = vld [vmem:[%s199 + $0x74] sm:$0xf]
      %v276 = vld [vmem:[%s199 + $0x78] sm:$0xf]
      %v277 = vld [vmem:[%s199 + $0x7c] sm:$0xf]
      %v278 = vld [vmem:[%s199 + $0x80] sm:$0xf]
      %v279 = vld [vmem:[%s199 + $0x84] sm:$0xf]
      %v280 = vld [vmem:[%s199 + $0x88] sm:$0xf]
      %v281 = vld [vmem:[%s199 + $0x8c] sm:$0xf]
      %v282 = vld [vmem:[%s1] sm:$0xf]
      %v283 = vld [vmem:[%s1 + $0x4] sm:$0xf]
      %v284 = vld [vmem:[%s1 + $0x8] sm:$0xf]
      %v285 = vld [vmem:[%s1 + $0xc] sm:$0xf]
      %v286 = vld [vmem:[%s1 + $0x10] sm:$0xf]
      %v287 = vld [vmem:[%s1 + $0x14] sm:$0xf]
      %v288 = vld [vmem:[%s1 + $0x18] sm:$0xf]
      %v289 = vld [vmem:[%s1 + $0x1c] sm:$0xf]
      %v290 = vld [vmem:[%s1 + $0x20] sm:$0xf]
      %v327 = vunpack.c.l.b16 %v246
      %v328 = vunpack.c.l.b16 %v247
      %v329 = vunpack.c.l.b16 %v248
      %v330 = vunpack.c.l.b16 %v249
      %v331 = vunpack.c.l.b16 %v250
      %v332 = vunpack.c.l.b16 %v251
      %v333 = vunpack.c.l.b16 %v252
      %v334 = vunpack.c.l.b16 %v253
      %v335 = vunpack.c.l.b16 %v254
      %v336 = vunpack.c.l.b16 %v255
      %v337 = vunpack.c.l.b16 %v256
      %v338 = vunpack.c.l.b16 %v257
      %v339 = vunpack.c.l.b16 %v258
      %v340 = vunpack.c.l.b16 %v259
      %v341 = vunpack.c.l.b16 %v260
      %v342 = vunpack.c.l.b16 %v261
      %v343 = vunpack.c.l.b16 %v262
      %v344 = vunpack.c.l.b16 %v263
      %v345 = vunpack.c.l.b16 %v264
      %v346 = vunpack.c.l.b16 %v265
      %v347 = vunpack.c.l.b16 %v266
      %v348 = vunpack.c.l.b16 %v267
      %v349 = vunpack.c.l.b16 %v268
      %v350 = vunpack.c.l.b16 %v269
      %v351 = vunpack.c.l.b16 %v270
      %v352 = vunpack.c.l.b16 %v271
      %v353 = vunpack.c.l.b16 %v272
      %v354 = vunpack.c.l.b16 %v273
      %v355 = vunpack.c.l.b16 %v274
      %v356 = vunpack.c.l.b16 %v275
      %v357 = vunpack.c.l.b16 %v276
      %v358 = vunpack.c.l.b16 %v277
      %v359 = vunpack.c.l.b16 %v278
      %v360 = vunpack.c.l.b16 %v279
      %v361 = vunpack.c.l.b16 %v280
      %v362 = vunpack.c.l.b16 %v281
      %v363 = vpack.c.b16 %v328, %v327
      %v364 = vpack.c.b16 %v330, %v329
      %v365 = vpack.c.b16 %v332, %v331
      %v366 = vpack.c.b16 %v334, %v333
      %v367 = vpack.c.b16 %v336, %v335
      %v368 = vpack.c.b16 %v338, %v337
      %v369 = vpack.c.b16 %v340, %v339
      %v370 = vpack.c.b16 %v342, %v341
      %v371 = vpack.c.b16 %v344, %v343
      %v372 = vpack.c.b16 %v346, %v345
      %v373 = vpack.c.b16 %v348, %v347
      %v374 = vpack.c.b16 %v350, %v349
      %v375 = vpack.c.b16 %v352, %v351
      %v376 = vpack.c.b16 %v354, %v353
      %v377 = vpack.c.b16 %v356, %v355
      %v378 = vpack.c.b16 %v358, %v357
      %v379 = vpack.c.b16 %v360, %v359
      %v380 = vpack.c.b16 %v362, %v361
      %v390 = vunpack.c.l.b16 %v282
      %v391 = vunpack.c.l.b16 %v283
      %v392 = vunpack.c.l.b16 %v284
      %v393 = vunpack.c.l.b16 %v285
      %v394 = vunpack.c.l.b16 %v286
      %v395 = vunpack.c.l.b16 %v287
      %v396 = vunpack.c.l.b16 %v288
      %v397 = vunpack.c.l.b16 %v289
      %v398 = vunpack.c.l.b16 %v290
      %v399 = vpack.c.b16 %v391, %v390
      %v400 = vpack.c.b16 %v393, %v392
      %v401 = vpack.c.b16 %v395, %v394
      %v402 = vpack.c.b16 %v397, %v396
      %v403 = vpack.c.b16 %v398, %v398
      %vm408 = vcmask 588800
      %v410 = vsel %vm408, %v363, 0
      %v413 = vsel %vm408, %v364, 0
      %v416 = vsel %vm408, %v365, 0
      %v419 = vsel %vm408, %v366, 0
      %v422 = vsel %vm408, %v367, 0
      %v425 = vsel %vm408, %v368, 0
      %v428 = vsel %vm408, %v369, 0
      %v431 = vsel %vm408, %v370, 0
      %v434 = vsel %vm408, %v371, 0
      %v437 = vsel %vm408, %v372, 0
      %v440 = vsel %vm408, %v373, 0
      %v443 = vsel %vm408, %v374, 0
      %v446 = vsel %vm408, %v375, 0
      %v449 = vsel %vm408, %v376, 0
      %v452 = vsel %vm408, %v377, 0
      %v455 = vsel %vm408, %v378, 0
      %v458 = vsel %vm408, %v379, 0
      %v461 = vsel %vm408, %v380, 0
      %vm463 = vcmask 1043456
      %v465 = vsel %vm463, %v403, 0
      %467 = vmatprep.subr.bf16.mxu0 0
      %468 = vmatpush1.bf16.msra.mxu0 %v399
      %469 = vmatprep.subr.bf16.mxu0 0
      %470 = vmatpush1.bf16.msra.mxu0 %v400
      %471 = vmatprep.subr.bf16.mxu0 0
      %472 = vmatpush1.bf16.msra.mxu0 %v401
      %473 = vmatprep.subr.bf16.mxu0 0
      %474 = vmatpush1.bf16.msra.mxu0 %v402
      %475 = vmatprep.subr.bf16.mxu0 0
      %476 = vmatpush1.bf16.msra.mxu0 %v465
      %477 = vmatprep.subr.bf16.mxu0 0
      %478 = vmatpush1.bf16.msra.mxu0 0
      %479 = vmatprep.subr.bf16.mxu0 0
      %480 = vmatpush1.bf16.msra.mxu0 0
      %481 = vmatprep.subr.bf16.mxu0 0
      %482 = vmatpush1.bf16.msra.mxu0 0
      %483 = vmatprep.subr.bf16.mxu0 0
      %484 = vmatpush1.bf16.msra.mxu0 0
      %485 = vmatprep.subr.bf16.mxu0 0
      %486 = vmatpush1.bf16.msra.mxu0 0
      %487 = vmatprep.subr.bf16.mxu0 0
      %488 = vmatpush1.bf16.msra.mxu0 0
      %489 = vmatprep.subr.bf16.mxu0 0
      %490 = vmatpush1.bf16.msra.mxu0 0
      %491 = vmatprep.subr.bf16.mxu0 0
      %492 = vmatpush1.bf16.msra.mxu0 0
      %493 = vmatprep.subr.bf16.mxu0 0
      %494 = vmatpush1.bf16.msra.mxu0 0
      %495 = vmatprep.subr.bf16.mxu0 0
      %496 = vmatpush1.bf16.msra.mxu0 0
      %497 = vmatprep.subr.bf16.mxu0 0
      %498 = vmatpush1.bf16.msra.mxu0 0
      %499 = vmatprep.mubr.bf16.mxu0 0
      %500 = vmatmul.mubr.bf16.gmra.mrb[0].mxu0 %v410
      %v501 = vpop.f32.mrb[0].mxu0
      %v502 = vadd.f32 0.0, %v501
      %v503 = vpop.f32.mrb[0].mxu0
      %v504 = vpop.f32.mrb[0].mxu0
      %v505 = vadd.f32 0.0, %v504
      %v506 = vpop.f32.mrb[0].mxu0
      %507 = vmatprep.mubr.bf16.mxu0 0
      %508 = vmatmul.mubr.bf16.gmra.mrb[0].mxu0 %v413
      %v509 = vpop.f32.mrb[0].mxu0
      %v510 = vadd.f32 0.0, %v509
      %v511 = vpop.f32.mrb[0].mxu0
      %v512 = vpop.f32.mrb[0].mxu0
      %v513 = vadd.f32 0.0, %v512
      %v514 = vpop.f32.mrb[0].mxu0
      %515 = vmatprep.mubr.bf16.mxu0 0
      %516 = vmatmul.mubr.bf16.gmra.mrb[0].mxu0 %v416
      %v517 = vpop.f32.mrb[0].mxu0
      %v518 = vadd.f32 0.0, %v517
      %v519 = vpop.f32.mrb[0].mxu0
      %v520 = vpop.f32.mrb[0].mxu0
      %v521 = vadd.f32 0.0, %v520
      %v522 = vpop.f32.mrb[0].mxu0
      %523 = vmatprep.mubr.bf16.mxu0 0
      %524 = vmatmul.mubr.bf16.gmra.mrb[0].mxu0 %v419
      %v525 = vpop.f32.mrb[0].mxu0
      %v526 = vadd.f32 0.0, %v525
      %v527 = vpop.f32.mrb[0].mxu0
      %v528 = vpop.f32.mrb[0].mxu0
      %v529 = vadd.f32 0.0, %v528
      %v530 = vpop.f32.mrb[0].mxu0
      %531 = vmatprep.mubr.bf16.mxu0 0
      %532 = vmatmul.mubr.bf16.gmra.mrb[0].mxu0 %v422
      %v533 = vpop.f32.mrb[0].mxu0
      %v534 = vadd.f32 0.0, %v533
      %v535 = vpop.f32.mrb[0].mxu0
      %v536 = vpop.f32.mrb[0].mxu0
      %v537 = vadd.f32 0.0, %v536
      %v538 = vpop.f32.mrb[0].mxu0
      %539 = vmatprep.mubr.bf16.mxu0 0
      %540 = vmatmul.mubr.bf16.gmra.mrb[0].mxu0 %v425
      %v541 = vpop.f32.mrb[0].mxu0
      %v542 = vadd.f32 0.0, %v541
      %v543 = vpop.f32.mrb[0].mxu0
      %v544 = vpop.f32.mrb[0].mxu0
      %v545 = vadd.f32 0.0, %v544
      %v546 = vpop.f32.mrb[0].mxu0
      %547 = vmatprep.mubr.bf16.mxu0 0
      %548 = vmatmul.mubr.bf16.gmra.mrb[0].mxu0 %v428
      %v549 = vpop.f32.mrb[0].mxu0
      %v550 = vadd.f32 0.0, %v549
      %v551 = vpop.f32.mrb[0].mxu0
      %v552 = vpop.f32.mrb[0].mxu0
      %v553 = vadd.f32 0.0, %v552
      %v554 = vpop.f32.mrb[0].mxu0
      %555 = vmatprep.mubr.bf16.mxu0 0
      %556 = vmatmul.mubr.bf16.gmra.mrb[0].mxu0 %v431
      %v557 = vpop.f32.mrb[0].mxu0
      %v558 = vadd.f32 0.0, %v557
      %v559 = vpop.f32.mrb[0].mxu0
      %v560 = vpop.f32.mrb[0].mxu0
      %v561 = vadd.f32 0.0, %v560
      %v562 = vpop.f32.mrb[0].mxu0
      %563 = vmatprep.mubr.bf16.mxu0 0
      %564 = vmatmul.mubr.bf16.gmra.mrb[0].mxu0 %v434
      %v565 = vpop.f32.mrb[0].mxu0
      %v566 = vadd.f32 0.0, %v565
      %v567 = vpop.f32.mrb[0].mxu0
      %v568 = vpop.f32.mrb[0].mxu0
      %v569 = vadd.f32 0.0, %v568
      %v570 = vpop.f32.mrb[0].mxu0
      %571 = vmatprep.mubr.bf16.mxu0 0
      %572 = vmatmul.mubr.bf16.gmra.mrb[0].mxu0 %v437
      %v573 = vpop.f32.mrb[0].mxu0
      %v574 = vadd.f32 0.0, %v573
      %v575 = vpop.f32.mrb[0].mxu0
      %v576 = vpop.f32.mrb[0].mxu0
      %v577 = vadd.f32 0.0, %v576
      %v578 = vpop.f32.mrb[0].mxu0
      %579 = vmatprep.mubr.bf16.mxu0 0
      %580 = vmatmul.mubr.bf16.gmra.mrb[0].mxu0 %v440
      %v581 = vpop.f32.mrb[0].mxu0
      %v582 = vadd.f32 0.0, %v581
      %v583 = vpop.f32.mrb[0].mxu0
      %v584 = vpop.f32.mrb[0].mxu0
      %v585 = vadd.f32 0.0, %v584
      %v586 = vpop.f32.mrb[0].mxu0
      %587 = vmatprep.mubr.bf16.mxu0 0
      %588 = vmatmul.mubr.bf16.gmra.mrb[0].mxu0 %v443
      %v589 = vpop.f32.mrb[0].mxu0
      %v590 = vadd.f32 0.0, %v589
      %v591 = vpop.f32.mrb[0].mxu0
      %v592 = vpop.f32.mrb[0].mxu0
      %v593 = vadd.f32 0.0, %v592
      %v594 = vpop.f32.mrb[0].mxu0
      %595 = vmatprep.mubr.bf16.mxu0 0
      %596 = vmatmul.mubr.bf16.gmra.mrb[0].mxu0 %v446
      %v597 = vpop.f32.mrb[0].mxu0
      %v598 = vadd.f32 0.0, %v597
      %v599 = vpop.f32.mrb[0].mxu0
      %v600 = vpop.f32.mrb[0].mxu0
      %v601 = vadd.f32 0.0, %v600
      %v602 = vpop.f32.mrb[0].mxu0
      %603 = vmatprep.mubr.bf16.mxu0 0
      %604 = vmatmul.mubr.bf16.gmra.mrb[0].mxu0 %v449
      %v605 = vpop.f32.mrb[0].mxu0
      %v606 = vadd.f32 0.0, %v605
      %v607 = vpop.f32.mrb[0].mxu0
      %v608 = vpop.f32.mrb[0].mxu0
      %v609 = vadd.f32 0.0, %v608
      %v610 = vpop.f32.mrb[0].mxu0
      %611 = vmatprep.mubr.bf16.mxu0 0
      %612 = vmatmul.mubr.bf16.gmra.mrb[0].mxu0 %v452
      %v613 = vpop.f32.mrb[0].mxu0
      %v614 = vadd.f32 0.0, %v613
      %v615 = vpop.f32.mrb[0].mxu0
      %v616 = vpop.f32.mrb[0].mxu0
      %v617 = vadd.f32 0.0, %v616
      %v618 = vpop.f32.mrb[0].mxu0
      %619 = vmatprep.mubr.bf16.mxu0 0
      %620 = vmatmul.mubr.bf16.gmra.mrb[0].mxu0 %v455
      %v621 = vpop.f32.mrb[0].mxu0
      %v622 = vadd.f32 0.0, %v621
      %v623 = vpop.f32.mrb[0].mxu0
      %v624 = vpop.f32.mrb[0].mxu0
      %v625 = vadd.f32 0.0, %v624
      %v626 = vpop.f32.mrb[0].mxu0
      %627 = vmatprep.mubr.bf16.mxu0 0
      %628 = vmatmul.mubr.bf16.gmra.mrb[0].mxu0 %v458
      %v629 = vpop.f32.mrb[0].mxu0
      %v630 = vadd.f32 0.0, %v629
      %v631 = vpop.f32.mrb[0].mxu0
      %v632 = vpop.f32.mrb[0].mxu0
      %v633 = vadd.f32 0.0, %v632
      %v634 = vpop.f32.mrb[0].mxu0
      %635 = vmatprep.mubr.bf16.mxu0 0
      %636 = vmatmul.mubr.bf16.gmra.mrb[0].mxu0 %v461
      %v637 = vpop.f32.mrb[0].mxu0
      %v638 = vadd.f32 0.0, %v637
      %v639 = vpop.f32.mrb[0].mxu0
      %v640 = vpop.f32.mrb[0].mxu0
      %v641 = vadd.f32 0.0, %v640
      %v642 = vpop.f32.mrb[0].mxu0
      %643 = vdwg.mxu0
      %v644 = vpack.c.bf16 %v505, %v502
      %v645 = vpack.c.bf16 %v513, %v510
      %v646 = vpack.c.bf16 %v521, %v518
      %v647 = vpack.c.bf16 %v529, %v526
      %v648 = vpack.c.bf16 %v537, %v534
      %v649 = vpack.c.bf16 %v545, %v542
      %v650 = vpack.c.bf16 %v553, %v550
      %v651 = vpack.c.bf16 %v561, %v558
      %v652 = vpack.c.bf16 %v569, %v566
      %v653 = vpack.c.bf16 %v577, %v574
      %v654 = vpack.c.bf16 %v585, %v582
      %v655 = vpack.c.bf16 %v593, %v590
      %v656 = vpack.c.bf16 %v601, %v598
      %v657 = vpack.c.bf16 %v609, %v606
      %v658 = vpack.c.bf16 %v617, %v614
      %v659 = vpack.c.bf16 %v625, %v622
      %v660 = vpack.c.bf16 %v633, %v630
      %v661 = vpack.c.bf16 %v641, %v638
      %v680 = vunpack.c.l.b16 %v644
      %v681 = vunpack.c.h.b16 %v644
      %v682 = vunpack.c.l.b16 %v645
      %v683 = vunpack.c.h.b16 %v645
      %v684 = vunpack.c.l.b16 %v646
      %v685 = vunpack.c.h.b16 %v646
      %v686 = vunpack.c.l.b16 %v647
      %v687 = vunpack.c.h.b16 %v647
      %v688 = vunpack.c.l.b16 %v648
      %v689 = vunpack.c.h.b16 %v648
      %v690 = vunpack.c.l.b16 %v649
      %v691 = vunpack.c.h.b16 %v649
      %v692 = vunpack.c.l.b16 %v650
      %v693 = vunpack.c.h.b16 %v650
      %v694 = vunpack.c.l.b16 %v651
      %v695 = vunpack.c.h.b16 %v651
      %v696 = vunpack.c.l.b16 %v652
      %v697 = vunpack.c.h.b16 %v652
      %v698 = vunpack.c.l.b16 %v653
      %v699 = vunpack.c.h.b16 %v653
      %v700 = vunpack.c.l.b16 %v654
      %v701 = vunpack.c.h.b16 %v654
      %v702 = vunpack.c.l.b16 %v655
      %v703 = vunpack.c.h.b16 %v655
      %v704 = vunpack.c.l.b16 %v656
      %v705 = vunpack.c.h.b16 %v656
      %v706 = vunpack.c.l.b16 %v657
      %v707 = vunpack.c.h.b16 %v657
      %v708 = vunpack.c.l.b16 %v658
      %v709 = vunpack.c.h.b16 %v658
      %v710 = vunpack.c.l.b16 %v659
      %v711 = vunpack.c.h.b16 %v659
      %v712 = vunpack.c.l.b16 %v660
      %v713 = vunpack.c.h.b16 %v660
      %v714 = vunpack.c.l.b16 %v661
      %v715 = vunpack.c.h.b16 %v661
      %v716 = vpack.c.b16 %v680, %v680
      %v717 = vpack.c.b16 %v681, %v681
      %v718 = vpack.c.b16 %v682, %v682
      %v719 = vpack.c.b16 %v683, %v683
      %v720 = vpack.c.b16 %v684, %v684
      %v721 = vpack.c.b16 %v685, %v685
      %v722 = vpack.c.b16 %v686, %v686
      %v723 = vpack.c.b16 %v687, %v687
      %v724 = vpack.c.b16 %v688, %v688
      %v725 = vpack.c.b16 %v689, %v689
      %v726 = vpack.c.b16 %v690, %v690
      %v727 = vpack.c.b16 %v691, %v691
      %v728 = vpack.c.b16 %v692, %v692
      %v729 = vpack.c.b16 %v693, %v693
      %v730 = vpack.c.b16 %v694, %v694
      %v731 = vpack.c.b16 %v695, %v695
      %v732 = vpack.c.b16 %v696, %v696
      %v733 = vpack.c.b16 %v697, %v697
      %v734 = vpack.c.b16 %v698, %v698
      %v735 = vpack.c.b16 %v699, %v699
      %v736 = vpack.c.b16 %v700, %v700
      %v737 = vpack.c.b16 %v701, %v701
      %v738 = vpack.c.b16 %v702, %v702
      %v739 = vpack.c.b16 %v703, %v703
      %v740 = vpack.c.b16 %v704, %v704
      %v741 = vpack.c.b16 %v705, %v705
      %v742 = vpack.c.b16 %v706, %v706
      %v743 = vpack.c.b16 %v707, %v707
      %v744 = vpack.c.b16 %v708, %v708
      %v745 = vpack.c.b16 %v709, %v709
      %v746 = vpack.c.b16 %v710, %v710
      %v747 = vpack.c.b16 %v711, %v711
      %v748 = vpack.c.b16 %v712, %v712
      %v749 = vpack.c.b16 %v713, %v713
      %v750 = vpack.c.b16 %v714, %v714
      %v751 = vpack.c.b16 %v715, %v715
      %788 = vst [vmem:[%s204] sm:$0xf] %v716
      %789 = vst [vmem:[%s204 + $0x4] sm:$0xf] %v717
      %790 = vst [vmem:[%s204 + $0x8] sm:$0xf] %v718
      %791 = vst [vmem:[%s204 + $0xc] sm:$0xf] %v719
      %792 = vst [vmem:[%s204 + $0x10] sm:$0xf] %v720
      %793 = vst [vmem:[%s204 + $0x14] sm:$0xf] %v721
      %794 = vst [vmem:[%s204 + $0x18] sm:$0xf] %v722
      %795 = vst [vmem:[%s204 + $0x1c] sm:$0xf] %v723
      %796 = vst [vmem:[%s204 + $0x20] sm:$0xf] %v724
      %797 = vst [vmem:[%s204 + $0x24] sm:$0xf] %v725
      %798 = vst [vmem:[%s204 + $0x28] sm:$0xf] %v726
      %799 = vst [vmem:[%s204 + $0x2c] sm:$0xf] %v727
      %800 = vst [vmem:[%s204 + $0x30] sm:$0xf] %v728
      %801 = vst [vmem:[%s204 + $0x34] sm:$0xf] %v729
      %802 = vst [vmem:[%s204 + $0x38] sm:$0xf] %v730
      %803 = vst [vmem:[%s204 + $0x3c] sm:$0xf] %v731
      %804 = vst [vmem:[%s204 + $0x40] sm:$0xf] %v732
      %805 = vst [vmem:[%s204 + $0x44] sm:$0xf] %v733
      %806 = vst [vmem:[%s204 + $0x48] sm:$0xf] %v734
      %807 = vst [vmem:[%s204 + $0x4c] sm:$0xf] %v735
      %808 = vst [vmem:[%s204 + $0x50] sm:$0xf] %v736
      %809 = vst [vmem:[%s204 + $0x54] sm:$0xf] %v737
      %810 = vst [vmem:[%s204 + $0x58] sm:$0xf] %v738
      %811 = vst [vmem:[%s204 + $0x5c] sm:$0xf] %v739
      %812 = vst [vmem:[%s204 + $0x60] sm:$0xf] %v740
      %813 = vst [vmem:[%s204 + $0x64] sm:$0xf] %v741
      %814 = vst [vmem:[%s204 + $0x68] sm:$0xf] %v742
      %815 = vst [vmem:[%s204 + $0x6c] sm:$0xf] %v743
      %816 = vst [vmem:[%s204 + $0x70] sm:$0xf] %v744
      %817 = vst [vmem:[%s204 + $0x74] sm:$0xf] %v745
      %818 = vst [vmem:[%s204 + $0x78] sm:$0xf] %v746
      %819 = vst [vmem:[%s204 + $0x7c] sm:$0xf] %v747
      %820 = vst [vmem:[%s204 + $0x80] sm:$0xf] %v748
      %821 = vst [vmem:[%s204 + $0x84] sm:$0xf] %v749
      %822 = vst [vmem:[%s204 + $0x88] sm:$0xf] %v750
      %823 = vst [vmem:[%s204 + $0x8c] sm:$0xf] %v751
      %825 = vset.pattern.permute.xlu0 0
      %826 = vperm.xlu0 %825, %v210
      %v827 = vpop.permute.xlu0 %826
      %830 = vset.pattern.permute.xlu0 0
      %831 = vperm.xlu0 %830, %v211
      %v832 = vpop.permute.xlu0 %831
      %835 = vset.pattern.permute.xlu0 0
      %836 = vperm.xlu0 %835, %v212
      %v837 = vpop.permute.xlu0 %836
      %840 = vset.pattern.permute.xlu0 0
      %841 = vperm.xlu0 %840, %v213
      %v842 = vpop.permute.xlu0 %841
      %845 = vset.pattern.permute.xlu0 0
      %846 = vperm.xlu0 %845, %v214
      %v847 = vpop.permute.xlu0 %846
      %850 = vset.pattern.permute.xlu0 0
      %851 = vperm.xlu0 %850, %v215
      %v852 = vpop.permute.xlu0 %851
      %855 = vset.pattern.permute.xlu0 0
      %856 = vperm.xlu0 %855, %v216
      %v857 = vpop.permute.xlu0 %856
      %860 = vset.pattern.permute.xlu0 0
      %861 = vperm.xlu0 %860, %v217
      %v862 = vpop.permute.xlu0 %861
      %865 = vset.pattern.permute.xlu0 0
      %866 = vperm.xlu0 %865, %v218
      %v867 = vpop.permute.xlu0 %866
      %870 = vset.pattern.permute.xlu0 0
      %871 = vperm.xlu0 %870, %v219
      %v872 = vpop.permute.xlu0 %871
      %875 = vset.pattern.permute.xlu0 0
      %876 = vperm.xlu0 %875, %v220
      %v877 = vpop.permute.xlu0 %876
      %880 = vset.pattern.permute.xlu0 0
      %881 = vperm.xlu0 %880, %v221
      %v882 = vpop.permute.xlu0 %881
      %885 = vset.pattern.permute.xlu0 0
      %886 = vperm.xlu0 %885, %v222
      %v887 = vpop.permute.xlu0 %886
      %890 = vset.pattern.permute.xlu0 0
      %891 = vperm.xlu0 %890, %v223
      %v892 = vpop.permute.xlu0 %891
      %895 = vset.pattern.permute.xlu0 0
      %896 = vperm.xlu0 %895, %v224
      %v897 = vpop.permute.xlu0 %896
      %900 = vset.pattern.permute.xlu0 0
      %901 = vperm.xlu0 %900, %v225
      %v902 = vpop.permute.xlu0 %901
      %905 = vset.pattern.permute.xlu0 0
      %906 = vperm.xlu0 %905, %v226
      %v907 = vpop.permute.xlu0 %906
      %910 = vset.pattern.permute.xlu0 0
      %911 = vperm.xlu0 %910, %v227
      %v912 = vpop.permute.xlu0 %911
      %915 = vset.pattern.permute.xlu0 0
      %916 = vperm.xlu0 %915, %v228
      %v917 = vpop.permute.xlu0 %916
      %920 = vset.pattern.permute.xlu0 0
      %921 = vperm.xlu0 %920, %v229
      %v922 = vpop.permute.xlu0 %921
      %925 = vset.pattern.permute.xlu0 0
      %926 = vperm.xlu0 %925, %v230
      %v927 = vpop.permute.xlu0 %926
      %930 = vset.pattern.permute.xlu0 0
      %931 = vperm.xlu0 %930, %v231
      %v932 = vpop.permute.xlu0 %931
      %935 = vset.pattern.permute.xlu0 0
      %936 = vperm.xlu0 %935, %v232
      %v937 = vpop.permute.xlu0 %936
      %940 = vset.pattern.permute.xlu0 0
      %941 = vperm.xlu0 %940, %v233
      %v942 = vpop.permute.xlu0 %941
      %945 = vset.pattern.permute.xlu0 0
      %946 = vperm.xlu0 %945, %v234
      %v947 = vpop.permute.xlu0 %946
      %950 = vset.pattern.permute.xlu0 0
      %951 = vperm.xlu0 %950, %v235
      %v952 = vpop.permute.xlu0 %951
      %955 = vset.pattern.permute.xlu0 0
      %956 = vperm.xlu0 %955, %v236
      %v957 = vpop.permute.xlu0 %956
      %960 = vset.pattern.permute.xlu0 0
      %961 = vperm.xlu0 %960, %v237
      %v962 = vpop.permute.xlu0 %961
      %965 = vset.pattern.permute.xlu0 0
      %966 = vperm.xlu0 %965, %v238
      %v967 = vpop.permute.xlu0 %966
      %970 = vset.pattern.permute.xlu0 0
      %971 = vperm.xlu0 %970, %v239
      %v972 = vpop.permute.xlu0 %971
      %975 = vset.pattern.permute.xlu0 0
      %976 = vperm.xlu0 %975, %v240
      %v977 = vpop.permute.xlu0 %976
      %980 = vset.pattern.permute.xlu0 0
      %981 = vperm.xlu0 %980, %v241
      %v982 = vpop.permute.xlu0 %981
      %985 = vset.pattern.permute.xlu0 0
      %986 = vperm.xlu0 %985, %v242
      %v987 = vpop.permute.xlu0 %986
      %990 = vset.pattern.permute.xlu0 0
      %991 = vperm.xlu0 %990, %v243
      %v992 = vpop.permute.xlu0 %991
      %995 = vset.pattern.permute.xlu0 0
      %996 = vperm.xlu0 %995, %v244
      %v997 = vpop.permute.xlu0 %996
      %1000 = vset.pattern.permute.xlu0 0
      %1001 = vperm.xlu0 %1000, %v245
      %v1002 = vpop.permute.xlu0 %1001
      %v1004 = vmul.f32 %v502, %v827
      %v1005 = vmul.f32 %v505, %v832
      %v1006 = vmul.f32 %v510, %v837
      %v1007 = vmul.f32 %v513, %v842
      %v1008 = vmul.f32 %v518, %v847
      %v1009 = vmul.f32 %v521, %v852
      %v1010 = vmul.f32 %v526, %v857
      %v1011 = vmul.f32 %v529, %v862
      %v1012 = vmul.f32 %v534, %v867
      %v1013 = vmul.f32 %v537, %v872
      %v1014 = vmul.f32 %v542, %v877
      %v1015 = vmul.f32 %v545, %v882
      %v1016 = vmul.f32 %v550, %v887
      %v1017 = vmul.f32 %v553, %v892
      %v1018 = vmul.f32 %v558, %v897
      %v1019 = vmul.f32 %v561, %v902
      %v1020 = vmul.f32 %v566, %v907
      %v1021 = vmul.f32 %v569, %v912
      %v1022 = vmul.f32 %v574, %v917
      %v1023 = vmul.f32 %v577, %v922
      %v1024 = vmul.f32 %v582, %v927
      %v1025 = vmul.f32 %v585, %v932
      %v1026 = vmul.f32 %v590, %v937
      %v1027 = vmul.f32 %v593, %v942
      %v1028 = vmul.f32 %v598, %v947
      %v1029 = vmul.f32 %v601, %v952
      %v1030 = vmul.f32 %v606, %v957
      %v1031 = vmul.f32 %v609, %v962
      %v1032 = vmul.f32 %v614, %v967
      %v1033 = vmul.f32 %v617, %v972
      %v1034 = vmul.f32 %v622, %v977
      %v1035 = vmul.f32 %v625, %v982
      %v1036 = vmul.f32 %v630, %v987
      %v1037 = vmul.f32 %v633, %v992
      %v1038 = vmul.f32 %v638, %v997
      %v1039 = vmul.f32 %v641, %v1002
      %v1040 = vadd.f32 %v1004, %v1005
      %v1041 = vadd.f32 %v1040, %v1006
      %v1042 = vadd.f32 %v1041, %v1007
      %v1043 = vadd.f32 %v1042, %v1008
      %v1044 = vadd.f32 %v1043, %v1009
      %v1045 = vadd.f32 %v1044, %v1010
      %v1046 = vadd.f32 %v1045, %v1011
      %v1047 = vadd.f32 %v1046, %v1012
      %v1048 = vadd.f32 %v1047, %v1013
      %v1049 = vadd.f32 %v1048, %v1014
      %v1050 = vadd.f32 %v1049, %v1015
      %v1051 = vadd.f32 %v1050, %v1016
      %v1052 = vadd.f32 %v1051, %v1017
      %v1053 = vadd.f32 %v1052, %v1018
      %v1054 = vadd.f32 %v1053, %v1019
      %v1055 = vadd.f32 %v1054, %v1020
      %v1056 = vadd.f32 %v1055, %v1021
      %v1057 = vadd.f32 %v1056, %v1022
      %v1058 = vadd.f32 %v1057, %v1023
      %v1059 = vadd.f32 %v1058, %v1024
      %v1060 = vadd.f32 %v1059, %v1025
      %v1061 = vadd.f32 %v1060, %v1026
      %v1062 = vadd.f32 %v1061, %v1027
      %v1063 = vadd.f32 %v1062, %v1028
      %v1064 = vadd.f32 %v1063, %v1029
      %v1065 = vadd.f32 %v1064, %v1030
      %v1066 = vadd.f32 %v1065, %v1031
      %v1067 = vadd.f32 %v1066, %v1032
      %v1068 = vadd.f32 %v1067, %v1033
      %v1069 = vadd.f32 %v1068, %v1034
      %v1070 = vadd.f32 %v1069, %v1035
      %v1071 = vadd.f32 %v1070, %v1036
      %v1072 = vadd.f32 %v1071, %v1037
      %v1073 = vadd.f32 %v1072, %v1038
      %v1074 = vadd.f32 %v1073, %v1039
      %v1075 = vrot.slane %v1074, 4
      %v1076 = vadd.f32 %v1074, %v1075
      %v1077 = vrot.slane %v1076, 2
      %v1078 = vadd.f32 %v1076, %v1077
      %v1079 = vrot.slane %v1078, 1
      %v1080 = vadd.f32 %v1078, %v1079
      %1081 = vst [vmem:[%s208] sm:$0x1] %v1080
      %v1082 = vmul.f32 %v1004, %v502
      %v1083 = vmul.f32 %v1005, %v505
      %v1084 = vmul.f32 %v1006, %v510
      %v1085 = vmul.f32 %v1007, %v513
      %v1086 = vmul.f32 %v1008, %v518
      %v1087 = vmul.f32 %v1009, %v521
      %v1088 = vmul.f32 %v1010, %v526
      %v1089 = vmul.f32 %v1011, %v529
      %v1090 = vmul.f32 %v1012, %v534
      %v1091 = vmul.f32 %v1013, %v537
      %v1092 = vmul.f32 %v1014, %v542
      %v1093 = vmul.f32 %v1015, %v545
      %v1094 = vmul.f32 %v1016, %v550
      %v1095 = vmul.f32 %v1017, %v553
      %v1096 = vmul.f32 %v1018, %v558
      %v1097 = vmul.f32 %v1019, %v561
      %v1098 = vmul.f32 %v1020, %v566
      %v1099 = vmul.f32 %v1021, %v569
      %v1100 = vmul.f32 %v1022, %v574
      %v1101 = vmul.f32 %v1023, %v577
      %v1102 = vmul.f32 %v1024, %v582
      %v1103 = vmul.f32 %v1025, %v585
      %v1104 = vmul.f32 %v1026, %v590
      %v1105 = vmul.f32 %v1027, %v593
      %v1106 = vmul.f32 %v1028, %v598
      %v1107 = vmul.f32 %v1029, %v601
      %v1108 = vmul.f32 %v1030, %v606
      %v1109 = vmul.f32 %v1031, %v609
      %v1110 = vmul.f32 %v1032, %v614
      %v1111 = vmul.f32 %v1033, %v617
      %v1112 = vmul.f32 %v1034, %v622
      %v1113 = vmul.f32 %v1035, %v625
      %v1114 = vmul.f32 %v1036, %v630
      %v1115 = vmul.f32 %v1037, %v633
      %v1116 = vmul.f32 %v1038, %v638
      %v1117 = vmul.f32 %v1039, %v641
      %v1118 = vadd.f32 %v1082, %v1083
      %v1119 = vadd.f32 %v1118, %v1084
      %v1120 = vadd.f32 %v1119, %v1085
      %v1121 = vadd.f32 %v1120, %v1086
      %v1122 = vadd.f32 %v1121, %v1087
      %v1123 = vadd.f32 %v1122, %v1088
      %v1124 = vadd.f32 %v1123, %v1089
      %v1125 = vadd.f32 %v1124, %v1090
      %v1126 = vadd.f32 %v1125, %v1091
      %v1127 = vadd.f32 %v1126, %v1092
      %v1128 = vadd.f32 %v1127, %v1093
      %v1129 = vadd.f32 %v1128, %v1094
      %v1130 = vadd.f32 %v1129, %v1095
      %v1131 = vadd.f32 %v1130, %v1096
      %v1132 = vadd.f32 %v1131, %v1097
      %v1133 = vadd.f32 %v1132, %v1098
      %v1134 = vadd.f32 %v1133, %v1099
      %v1135 = vadd.f32 %v1134, %v1100
      %v1136 = vadd.f32 %v1135, %v1101
      %v1137 = vadd.f32 %v1136, %v1102
      %v1138 = vadd.f32 %v1137, %v1103
      %v1139 = vadd.f32 %v1138, %v1104
      %v1140 = vadd.f32 %v1139, %v1105
      %v1141 = vadd.f32 %v1140, %v1106
      %v1142 = vadd.f32 %v1141, %v1107
      %v1143 = vadd.f32 %v1142, %v1108
      %v1144 = vadd.f32 %v1143, %v1109
      %v1145 = vadd.f32 %v1144, %v1110
      %v1146 = vadd.f32 %v1145, %v1111
      %v1147 = vadd.f32 %v1146, %v1112
      %v1148 = vadd.f32 %v1147, %v1113
      %v1149 = vadd.f32 %v1148, %v1114
      %v1150 = vadd.f32 %v1149, %v1115
      %v1151 = vadd.f32 %v1150, %v1116
      %v1152 = vadd.f32 %v1151, %v1117
      %v1153 = vrot.slane %v1152, 4
      %v1154 = vadd.f32 %v1152, %v1153
      %v1155 = vrot.slane %v1154, 2
      %v1156 = vadd.f32 %v1154, %v1155
      %v1157 = vrot.slane %v1156, 1
      %v1158 = vadd.f32 %v1156, %v1157
      %1159 = vst [vmem:[%s208 + $0x1] sm:$0x1] %v1158
      %p1160 = scmp.lt.s32.totalorder %s16, 1
      %s1161 = scalar_select %p1160, %s16, 1
      %s1162 = smul.addr %s1161, 36
      %s1163 = smul.addr %s1162, 4
      %s1164 = scalar_lea.vmem %s3, %s1163
      %p1165 = scmp.lt.s32.totalorder %s16, 1
      %s1166 = scalar_select %p1165, %s16, 1
      %s1167 = smul.addr %s1166, 2
      %s1168 = scalar_lea.vmem %s4, %s1167
      // Predicated region
      $region33: #{block_forward.3} parent=31 // pred_check
        %p1169 = pneg %p102
      $region34: #{block_forward.3} parent=31 // pred_check_branch
        %1171 = sbr.rel (%p1169) target = $region36
      $region35: #{block_forward.3} parent=31 // pred_region
        _
      $region36: #{block_forward.3} parent=31 // pred_fallthru
        _
      // Predicated region
      $region37: #{block_forward.3} parent=31 // pred_check
        %p1172 = pneg %p128
      $region38: #{block_forward.3} parent=31 // pred_check_branch
        %1174 = sbr.rel (%p1172) target = $region40
      $region39: #{block_forward.3} parent=31 // pred_region
        _
      $region40: #{block_forward.3} parent=31 // pred_fallthru
        _
    $region32: #{block_forward.3} parent=5 // pred_fallthru
      _
    %p1175 = scmp.le.s32.totalorder 2, %s11
    // Predicated region
    $region41: #{block_forward.3} parent=5 // pred_check
      %p1176 = pneg %p1175
    $region42: #{block_forward.3} parent=5 // pred_check_branch
      %1178 = sbr.rel (%p1176) target = $region44
    $region43: #{block_forward.3} parent=5 // pred_region
      %s1179 = ssub.s32 %s11, 2
      // Predicated region
      $region45: #{block_forward.3} parent=43 // pred_check
        %p1180 = pneg %p108
      $region46: #{block_forward.3} parent=43 // pred_check_branch
        %1182 = sbr.rel (%p1180) target = $region48
      $region47: #{block_forward.3} parent=43 // pred_region
        %p1183 = scmp.lt.s32.totalorder %s17, 1
        %s1184 = scalar_select %p1183, %s17, 1
        %s1185 = smul.addr %s1184, 36
        %s1186 = smul.addr %s1185, 4
        %s1187 = scalar_lea.vmem %s3, %s1186
      $region48: #{block_forward.3} parent=43 // pred_fallthru
        _
      // Predicated region
      $region49: #{block_forward.3} parent=43 // pred_check
        %p1188 = pneg %p134
      $region50: #{block_forward.3} parent=43 // pred_check_branch
        %1190 = sbr.rel (%p1188) target = $region52
      $region51: #{block_forward.3} parent=43 // pred_region
        %p1191 = scmp.lt.s32.totalorder %s17, 1
        %s1192 = scalar_select %p1191, %s17, 1
        %s1193 = smul.addr %s1192, 2
        %s1194 = scalar_lea.vmem %s4, %s1193
      $region52: #{block_forward.3} parent=43 // pred_fallthru
        _
    $region44: #{block_forward.3} parent=5 // pred_fallthru
      _
  $region6: #{block_forward.3} parent=0 // loop_footer
    %s15 = sadd.s32 1, %s11
  $region7: #{block_forward.3} parent=0 // loop_footer_branch
    %10 = sbr.rel target = $region3
  $region8: #{block_forward.3} parent=0 // loop_exit
    _

// kernel: block_forward.5
$region0: #{block_forward.5}
  #allocation0 [shape = 'u32[]', space=smem, size = 0x4, offset = 0x4, fixed_abs, tag = 'smem constant byte address 0x4 - core index']
  #allocation1 [shape = 'u32[144,128]{1,0:T(1,128)}', space=vmem, size = 0x12000, scoped, tag = 'internal scratch']
  %s0 = inlined_call_operand.vmem [shape: bf16[2,288,128], index: 0, kind: input, shape index: {}]
  %s1 = inlined_call_operand.vmem [shape: f32[1,128], index: 1, kind: input, shape index: {}]
  %s2 = inlined_call_operand.vmem [shape: f32[1,128], index: 2, kind: input, shape index: {}]
  %s3 = inlined_call_operand.vmem [shape: f32[2,288,8], index: 3, kind: input, shape index: {}]
  %s4 = inlined_call_operand.vmem [shape: bf16[2,288,128], index: 4, kind: output, shape index: {}]
  %s5 = sld [smem:[#allocation0]]
  $region49: #{block_forward.5} parent=0
    _
  %s7 = ssub.s32 1, %s5
  %s8 = scalar_select 0, %s7, %s5
  loop: start=0, step=1, limit=4
  $region2: #{block_forward.5} parent=0 // loop_pre_header
    _
  $region3: #{block_forward.5} parent=0 // loop_header
    %s10 = sphi 0, %s14
    %p11 = scmp.ge.s32.totalorder %s10, 4
    %s20 = sphi 0, %s22
    %s23 = sphi 0, %s20
    %s24 = sphi 0, %s23
    %s40 = sphi 0, %s24
    %s44 = sphi 0, %s44
    %s46 = sphi 0, %s44
    %s47 = sphi 0, %s46
    %s61 = sphi 0, %s47
    %s65 = sphi 0, %s65
    %s67 = sphi 0, %s65
    %s68 = sphi 0, %s67
    %s82 = sphi 0, %s68
    %s88 = sphi 0, %s90
    %s91 = sphi 0, %s88
    %s92 = sphi 0, %s91
    %s108 = sphi 0, %s92
    %s114 = sphi 0, %s116
    %s117 = sphi 0, %s114
    %s118 = sphi 0, %s117
    %s134 = sphi 0, %s118
  $region4: #{block_forward.5} parent=0 // loop_header_branch
    %13 = sbr.rel (%p11) target = $region8
  $region5: #{block_forward.5} parent=0 // loop_body
    %s15 = ssub.s32 %s10, 1
    %s16 = ssub.s32 %s10, 2
    %s17 = sadd.s32 %s10, 1
    %s18 = ssub.s32 %s10, %s17
    %p19 = scmp.eq.s32.totalorder %s18, 0
    %s21 = sadd.s32 %s20, 1
    %s22 = scalar_select %p19, %s20, %s21
    %p25 = pneg %p19
    %p26 = scmp.eq.s32.totalorder %s10, 1
    %p27 = por %p25, %p26
    %p28 = scmp.ne.s32.totalorder %s20, %s23
    %p29 = scmp.eq.s32.totalorder %s10, 0
    %p30 = por %p28, %p29
    %p31 = scmp.ne.s32.totalorder %s20, %s23
    %p32 = scmp.eq.s32.totalorder %s15, 1
    %p33 = por %p31, %p32
    %p34 = scmp.ne.s32.totalorder %s23, %s24
    %p35 = scmp.eq.s32.totalorder %s15, 0
    %p36 = por %p34, %p35
    %p37 = scmp.ne.s32.totalorder %s23, %s24
    %p38 = scmp.eq.s32.totalorder %s16, 1
    %p39 = por %p37, %p38
    %p41 = scmp.ne.s32.totalorder %s24, %s40
    %p42 = scmp.eq.s32.totalorder %s16, 0
    %p43 = por %p41, %p42
    %s45 = sadd.s32 %s44, 1
    %p48 = scmp.eq.s32.totalorder %s10, 1
    %p49 = scmp.ne.s32.totalorder %s44, %s46
    %p50 = scmp.eq.s32.totalorder %s10, 0
    %p51 = por %p49, %p50
    %p52 = scmp.ne.s32.totalorder %s44, %s46
    %p53 = scmp.eq.s32.totalorder %s15, 1
    %p54 = por %p52, %p53
    %p55 = scmp.ne.s32.totalorder %s46, %s47
    %p56 = scmp.eq.s32.totalorder %s15, 0
    %p57 = por %p55, %p56
    %p58 = scmp.ne.s32.totalorder %s46, %s47
    %p59 = scmp.eq.s32.totalorder %s16, 1
    %p60 = por %p58, %p59
    %p62 = scmp.ne.s32.totalorder %s47, %s61
    %p63 = scmp.eq.s32.totalorder %s16, 0
    %p64 = por %p62, %p63
    %s66 = sadd.s32 %s65, 1
    %p69 = scmp.eq.s32.totalorder %s10, 1
    %p70 = scmp.ne.s32.totalorder %s65, %s67
    %p71 = scmp.eq.s32.totalorder %s10, 0
    %p72 = por %p70, %p71
    %p73 = scmp.ne.s32.totalorder %s65, %s67
    %p74 = scmp.eq.s32.totalorder %s15, 1
    %p75 = por %p73, %p74
    %p76 = scmp.ne.s32.totalorder %s67, %s68
    %p77 = scmp.eq.s32.totalorder %s15, 0
    %p78 = por %p76, %p77
    %p79 = scmp.ne.s32.totalorder %s67, %s68
    %p80 = scmp.eq.s32.totalorder %s16, 1
    %p81 = por %p79, %p80
    %p83 = scmp.ne.s32.totalorder %s68, %s82
    %p84 = scmp.eq.s32.totalorder %s16, 0
    %p85 = por %p83, %p84
    %s86 = ssub.s32 %s10, %s17
    %p87 = scmp.eq.s32.totalorder %s86, 0
    %s89 = sadd.s32 %s88, 1
    %s90 = scalar_select %p87, %s88, %s89
    %p93 = pneg %p87
    %p94 = scmp.eq.s32.totalorder %s10, 1
    %p95 = por %p93, %p94
    %p96 = scmp.ne.s32.totalorder %s88, %s91
    %p97 = scmp.eq.s32.totalorder %s10, 0
    %p98 = por %p96, %p97
    %p99 = scmp.ne.s32.totalorder %s88, %s91
    %p100 = scmp.eq.s32.totalorder %s15, 1
    %p101 = por %p99, %p100
    %p102 = scmp.ne.s32.totalorder %s91, %s92
    %p103 = scmp.eq.s32.totalorder %s15, 0
    %p104 = por %p102, %p103
    %p105 = scmp.ne.s32.totalorder %s91, %s92
    %p106 = scmp.eq.s32.totalorder %s16, 1
    %p107 = por %p105, %p106
    %p109 = scmp.ne.s32.totalorder %s92, %s108
    %p110 = scmp.eq.s32.totalorder %s16, 0
    %p111 = por %p109, %p110
    %s112 = ssub.s32 %s10, %s17
    %p113 = scmp.eq.s32.totalorder %s112, 0
    %s115 = sadd.s32 %s114, 1
    %s116 = scalar_select %p113, %s114, %s115
    %p119 = pneg %p113
    %p120 = scmp.eq.s32.totalorder %s10, 1
    %p121 = por %p119, %p120
    %p122 = scmp.ne.s32.totalorder %s114, %s117
    %p123 = scmp.eq.s32.totalorder %s10, 0
    %p124 = por %p122, %p123
    %p125 = scmp.ne.s32.totalorder %s114, %s117
    %p126 = scmp.eq.s32.totalorder %s15, 1
    %p127 = por %p125, %p126
    %p128 = scmp.ne.s32.totalorder %s117, %s118
    %p129 = scmp.eq.s32.totalorder %s15, 0
    %p130 = por %p128, %p129
    %p131 = scmp.ne.s32.totalorder %s117, %s118
    %p132 = scmp.eq.s32.totalorder %s16, 1
    %p133 = por %p131, %p132
    %p135 = scmp.ne.s32.totalorder %s118, %s134
    %p136 = scmp.eq.s32.totalorder %s16, 0
    %p137 = por %p135, %p136
    %p138 = scmp.le.s32.totalorder 1, %s10
    %p139 = scmp.lt.s32.totalorder %s10, 3
    %p140 = pnand %p138, %p139
    %p141 = pneg %p140
    // Predicated region
    $region9: #{block_forward.5} parent=5 // pred_check
      _
    $region10: #{block_forward.5} parent=5 // pred_check_branch
      %143 = sbr.rel (%p140) target = $region12
    $region11: #{block_forward.5} parent=5 // pred_region
      %s144 = ssub.s32 %s10, 1
      // Predicated region
      $region13: #{block_forward.5} parent=11 // pred_check
        %p145 = pneg %p57
      $region14: #{block_forward.5} parent=11 // pred_check_branch
        %147 = sbr.rel (%p145) target = $region16
      $region15: #{block_forward.5} parent=11 // pred_region
        _
      $region16: #{block_forward.5} parent=11 // pred_fallthru
        _
      // Predicated region
      $region17: #{block_forward.5} parent=11 // pred_check
        %p148 = pneg %p78
      $region18: #{block_forward.5} parent=11 // pred_check_branch
        %150 = sbr.rel (%p148) target = $region20
      $region19: #{block_forward.5} parent=11 // pred_region
        _
      $region20: #{block_forward.5} parent=11 // pred_fallthru
        _
    $region12: #{block_forward.5} parent=5 // pred_fallthru
      _
    %p151 = scmp.lt.s32.totalorder %s10, 2
    // Predicated region
    $region21: #{block_forward.5} parent=5 // pred_check
      %p152 = pneg %p151
    $region22: #{block_forward.5} parent=5 // pred_check_branch
      %154 = sbr.rel (%p152) target = $region24
    $region23: #{block_forward.5} parent=5 // pred_region
      // Predicated region
      $region25: #{block_forward.5} parent=23 // pred_check
        %p155 = pneg %p30
      $region26: #{block_forward.5} parent=23 // pred_check_branch
        %157 = sbr.rel (%p155) target = $region28
      $region27: #{block_forward.5} parent=23 // pred_region
        %p158 = scmp.lt.s32.totalorder %s10, 1
        %s159 = scalar_select %p158, %s10, 1
        %s160 = smul.addr %s159, 36
        %s161 = smul.addr %s160, 4
        %s162 = scalar_lea.vmem %s0, %s161
      $region28: #{block_forward.5} parent=23 // pred_fallthru
        _
      // Predicated region
      $region29: #{block_forward.5} parent=23 // pred_check
        %p163 = pneg %p98
      $region30: #{block_forward.5} parent=23 // pred_check_branch
        %165 = sbr.rel (%p163) target = $region32
      $region31: #{block_forward.5} parent=23 // pred_region
        %p166 = scmp.lt.s32.totalorder %s10, 1
        %s167 = scalar_select %p166, %s10, 1
        %s168 = smul.addr %s167, 36
        %s169 = smul.addr %s168, 8
        %s170 = scalar_lea.vmem %s3, %s169
      $region32: #{block_forward.5} parent=23 // pred_fallthru
        _
    $region24: #{block_forward.5} parent=5 // pred_fallthru
      _
    %p171 = scmp.le.s32.totalorder 1, %s10
    %p172 = scmp.lt.s32.totalorder %s10, 3
    %p173 = pnand %p171, %p172
    %p174 = pneg %p173
    // Predicated region
    $region33: #{block_forward.5} parent=5 // pred_check
      _
    $region34: #{block_forward.5} parent=5 // pred_check_branch
      %176 = sbr.rel (%p173) target = $region36
    $region35: #{block_forward.5} parent=5 // pred_region
      %s177 = ssub.s32 %s10, 1
      %p178 = scmp.lt.s32.totalorder %s15, 1
      %s179 = scalar_select %p178, %s15, 1
      %s180 = smul.addr %s179, 36
      %s181 = smul.addr %s180, 4
      %s182 = scalar_lea.vmem %s0, %s181
      %p183 = pneg %p36
      %p184 = pneg %p33
      %p185 = pneg %p57
      %p186 = pneg %p54
      %p187 = pneg %p78
      %p188 = pneg %p75
      %p189 = scmp.lt.s32.totalorder %s15, 1
      %s190 = scalar_select %p189, %s15, 1
      %s191 = smul.addr %s190, 36
      %s192 = smul.addr %s191, 8
      %s193 = scalar_lea.vmem %s3, %s192
      %p194 = pneg %p104
      %p195 = pneg %p101
      %p196 = pneg %p130
      %p197 = pneg %p127
      %p198 = scmp.lt.s32.totalorder %s15, 1
      %s199 = scalar_select %p198, %s15, 1
      %s200 = smul.addr %s199, 36
      %s201 = smul.addr %s200, 4
      %s202 = scalar_lea.vmem %s4, %s201
      %p203 = scmp.lt.s32.totalorder %s15, 1
      %s204 = scalar_select %p203, %s15, 1
      %s205 = smul.addr %s204, 36
      %s206 = smul.addr %s205, 4
      %s207 = scalar_lea.vmem %s0, %s206
      %p208 = scmp.lt.s32.totalorder %s15, 1
      %s209 = scalar_select %p208, %s15, 1
      %s210 = smul.addr %s209, 36
      %s211 = smul.addr %s210, 8
      %s212 = scalar_lea.vmem %s3, %s211
      %p213 = scmp.lt.s32.totalorder %s15, 1
      %s214 = scalar_select %p213, %s15, 1
      %s215 = smul.addr %s214, 36
      %s216 = smul.addr %s215, 4
      %s217 = scalar_lea.vmem %s4, %s216
      %v218 = vld [vmem:[%s207] sm:$0xf]
      %v219 = vld [vmem:[%s207 + $0x4] sm:$0xf]
      %v220 = vld [vmem:[%s207 + $0x8] sm:$0xf]
      %v221 = vld [vmem:[%s207 + $0xc] sm:$0xf]
      %v222 = vld [vmem:[%s207 + $0x10] sm:$0xf]
      %v223 = vld [vmem:[%s207 + $0x14] sm:$0xf]
      %v224 = vld [vmem:[%s207 + $0x18] sm:$0xf]
      %v225 = vld [vmem:[%s207 + $0x1c] sm:$0xf]
      %v226 = vld [vmem:[%s207 + $0x20] sm:$0xf]
      %v227 = vld [vmem:[%s207 + $0x24] sm:$0xf]
      %v228 = vld [vmem:[%s207 + $0x28] sm:$0xf]
      %v229 = vld [vmem:[%s207 + $0x2c] sm:$0xf]
      %v230 = vld [vmem:[%s207 + $0x30] sm:$0xf]
      %v231 = vld [vmem:[%s207 + $0x34] sm:$0xf]
      %v232 = vld [vmem:[%s207 + $0x38] sm:$0xf]
      %v233 = vld [vmem:[%s207 + $0x3c] sm:$0xf]
      %v234 = vld [vmem:[%s207 + $0x40] sm:$0xf]
      %v235 = vld [vmem:[%s207 + $0x44] sm:$0xf]
      %v236 = vld [vmem:[%s207 + $0x48] sm:$0xf]
      %v237 = vld [vmem:[%s207 + $0x4c] sm:$0xf]
      %v238 = vld [vmem:[%s207 + $0x50] sm:$0xf]
      %v239 = vld [vmem:[%s207 + $0x54] sm:$0xf]
      %v240 = vld [vmem:[%s207 + $0x58] sm:$0xf]
      %v241 = vld [vmem:[%s207 + $0x5c] sm:$0xf]
      %v242 = vld [vmem:[%s207 + $0x60] sm:$0xf]
      %v243 = vld [vmem:[%s207 + $0x64] sm:$0xf]
      %v244 = vld [vmem:[%s207 + $0x68] sm:$0xf]
      %v245 = vld [vmem:[%s207 + $0x6c] sm:$0xf]
      %v246 = vld [vmem:[%s207 + $0x70] sm:$0xf]
      %v247 = vld [vmem:[%s207 + $0x74] sm:$0xf]
      %v248 = vld [vmem:[%s207 + $0x78] sm:$0xf]
      %v249 = vld [vmem:[%s207 + $0x7c] sm:$0xf]
      %v250 = vld [vmem:[%s207 + $0x80] sm:$0xf]
      %v251 = vld [vmem:[%s207 + $0x84] sm:$0xf]
      %v252 = vld [vmem:[%s207 + $0x88] sm:$0xf]
      %v253 = vld [vmem:[%s207 + $0x8c] sm:$0xf]
      %v254 = vunpack.c.l.bf16 %v218
      %v255 = vunpack.c.l.bf16 %v219
      %v256 = vunpack.c.l.bf16 %v220
      %v257 = vunpack.c.l.bf16 %v221
      %v258 = vunpack.c.l.bf16 %v222
      %v259 = vunpack.c.l.bf16 %v223
      %v260 = vunpack.c.l.bf16 %v224
      %v261 = vunpack.c.l.bf16 %v225
      %v262 = vunpack.c.l.bf16 %v226
      %v263 = vunpack.c.l.bf16 %v227
      %v264 = vunpack.c.l.bf16 %v228
      %v265 = vunpack.c.l.bf16 %v229
      %v266 = vunpack.c.l.bf16 %v230
      %v267 = vunpack.c.l.bf16 %v231
      %v268 = vunpack.c.l.bf16 %v232
      %v269 = vunpack.c.l.bf16 %v233
      %v270 = vunpack.c.l.bf16 %v234
      %v271 = vunpack.c.l.bf16 %v235
      %v272 = vunpack.c.l.bf16 %v236
      %v273 = vunpack.c.l.bf16 %v237
      %v274 = vunpack.c.l.bf16 %v238
      %v275 = vunpack.c.l.bf16 %v239
      %v276 = vunpack.c.l.bf16 %v240
      %v277 = vunpack.c.l.bf16 %v241
      %v278 = vunpack.c.l.bf16 %v242
      %v279 = vunpack.c.l.bf16 %v243
      %v280 = vunpack.c.l.bf16 %v244
      %v281 = vunpack.c.l.bf16 %v245
      %v282 = vunpack.c.l.bf16 %v246
      %v283 = vunpack.c.l.bf16 %v247
      %v284 = vunpack.c.l.bf16 %v248
      %v285 = vunpack.c.l.bf16 %v249
      %v286 = vunpack.c.l.bf16 %v250
      %v287 = vunpack.c.l.bf16 %v251
      %v288 = vunpack.c.l.bf16 %v252
      %v289 = vunpack.c.l.bf16 %v253
      %v290 = vld [vmem:[%s1] sm:$0x1]
      %v292 = vlaneseq
      %v293 = vshrl.u32 %v292, 7
      %v294 = vsub.s32 0, %v293
      %v295 = vrot.slane %v290, %v294
      %v297 = vmul.f32 %v254, %v295
      %v298 = vmul.f32 %v255, %v295
      %v299 = vmul.f32 %v256, %v295
      %v300 = vmul.f32 %v257, %v295
      %v301 = vmul.f32 %v258, %v295
      %v302 = vmul.f32 %v259, %v295
      %v303 = vmul.f32 %v260, %v295
      %v304 = vmul.f32 %v261, %v295
      %v305 = vmul.f32 %v262, %v295
      %v306 = vmul.f32 %v263, %v295
      %v307 = vmul.f32 %v264, %v295
      %v308 = vmul.f32 %v265, %v295
      %v309 = vmul.f32 %v266, %v295
      %v310 = vmul.f32 %v267, %v295
      %v311 = vmul.f32 %v268, %v295
      %v312 = vmul.f32 %v269, %v295
      %v313 = vmul.f32 %v270, %v295
      %v314 = vmul.f32 %v271, %v295
      %v315 = vmul.f32 %v272, %v295
      %v316 = vmul.f32 %v273, %v295
      %v317 = vmul.f32 %v274, %v295
      %v318 = vmul.f32 %v275, %v295
      %v319 = vmul.f32 %v276, %v295
      %v320 = vmul.f32 %v277, %v295
      %v321 = vmul.f32 %v278, %v295
      %v322 = vmul.f32 %v279, %v295
      %v323 = vmul.f32 %v280, %v295
      %v324 = vmul.f32 %v281, %v295
      %v325 = vmul.f32 %v282, %v295
      %v326 = vmul.f32 %v283, %v295
      %v327 = vmul.f32 %v284, %v295
      %v328 = vmul.f32 %v285, %v295
      %v329 = vmul.f32 %v286, %v295
      %v330 = vmul.f32 %v287, %v295
      %v331 = vmul.f32 %v288, %v295
      %v332 = vmul.f32 %v289, %v295
      %v333 = vld [vmem:[%s2] sm:$0x1]
      %v335 = vlaneseq
      %v336 = vshrl.u32 %v335, 7
      %v337 = vsub.s32 0, %v336
      %v338 = vrot.slane %v333, %v337
      %v340 = vadd.f32 %v297, %v338
      %v341 = vadd.f32 %v298, %v338
      %v342 = vadd.f32 %v299, %v338
      %v343 = vadd.f32 %v300, %v338
      %v344 = vadd.f32 %v301, %v338
      %v345 = vadd.f32 %v302, %v338
      %v346 = vadd.f32 %v303, %v338
      %v347 = vadd.f32 %v304, %v338
      %v348 = vadd.f32 %v305, %v338
      %v349 = vadd.f32 %v306, %v338
      %v350 = vadd.f32 %v307, %v338
      %v351 = vadd.f32 %v308, %v338
      %v352 = vadd.f32 %v309, %v338
      %v353 = vadd.f32 %v310, %v338
      %v354 = vadd.f32 %v311, %v338
      %v355 = vadd.f32 %v312, %v338
      %v356 = vadd.f32 %v313, %v338
      %v357 = vadd.f32 %v314, %v338
      %v358 = vadd.f32 %v315, %v338
      %v359 = vadd.f32 %v316, %v338
      %v360 = vadd.f32 %v317, %v338
      %v361 = vadd.f32 %v318, %v338
      %v362 = vadd.f32 %v319, %v338
      %v363 = vadd.f32 %v320, %v338
      %v364 = vadd.f32 %v321, %v338
      %v365 = vadd.f32 %v322, %v338
      %v366 = vadd.f32 %v323, %v338
      %v367 = vadd.f32 %v324, %v338
      %v368 = vadd.f32 %v325, %v338
      %v369 = vadd.f32 %v326, %v338
      %v370 = vadd.f32 %v327, %v338
      %v371 = vadd.f32 %v328, %v338
      %v372 = vadd.f32 %v329, %v338
      %v373 = vadd.f32 %v330, %v338
      %v374 = vadd.f32 %v331, %v338
      %v375 = vadd.f32 %v332, %v338
      %v376 = vld [vmem:[%s212] sm:$0xff]
      %v377 = vld [vmem:[%s212 + $0x8] sm:$0xff]
      %v378 = vld [vmem:[%s212 + $0x10] sm:$0xff]
      %v379 = vld [vmem:[%s212 + $0x18] sm:$0xff]
      %v380 = vld [vmem:[%s212 + $0x20] sm:$0xff]
      %v381 = vld [vmem:[%s212 + $0x28] sm:$0xff]
      %v382 = vld [vmem:[%s212 + $0x30] sm:$0xff]
      %v383 = vld [vmem:[%s212 + $0x38] sm:$0xff]
      %v384 = vld [vmem:[%s212 + $0x40] sm:$0xff]
      %v385 = vld [vmem:[%s212 + $0x48] sm:$0xff]
      %v386 = vld [vmem:[%s212 + $0x50] sm:$0xff]
      %v387 = vld [vmem:[%s212 + $0x58] sm:$0xff]
      %v388 = vld [vmem:[%s212 + $0x60] sm:$0xff]
      %v389 = vld [vmem:[%s212 + $0x68] sm:$0xff]
      %v390 = vld [vmem:[%s212 + $0x70] sm:$0xff]
      %v391 = vld [vmem:[%s212 + $0x78] sm:$0xff]
      %v392 = vld [vmem:[%s212 + $0x80] sm:$0xff]
      %v393 = vld [vmem:[%s212 + $0x88] sm:$0xff]
      %v394 = vld [vmem:[%s212 + $0x90] sm:$0xff]
      %v395 = vld [vmem:[%s212 + $0x98] sm:$0xff]
      %v396 = vld [vmem:[%s212 + $0xa0] sm:$0xff]
      %v397 = vld [vmem:[%s212 + $0xa8] sm:$0xff]
      %v398 = vld [vmem:[%s212 + $0xb0] sm:$0xff]
      %v399 = vld [vmem:[%s212 + $0xb8] sm:$0xff]
      %v400 = vld [vmem:[%s212 + $0xc0] sm:$0xff]
      %v401 = vld [vmem:[%s212 + $0xc8] sm:$0xff]
      %v402 = vld [vmem:[%s212 + $0xd0] sm:$0xff]
      %v403 = vld [vmem:[%s212 + $0xd8] sm:$0xff]
      %v404 = vld [vmem:[%s212 + $0xe0] sm:$0xff]
      %v405 = vld [vmem:[%s212 + $0xe8] sm:$0xff]
      %v406 = vld [vmem:[%s212 + $0xf0] sm:$0xff]
      %v407 = vld [vmem:[%s212 + $0xf8] sm:$0xff]
      %v408 = vld [vmem:[%s212 + $0x100] sm:$0xff]
      %v409 = vld [vmem:[%s212 + $0x108] sm:$0xff]
      %v410 = vld [vmem:[%s212 + $0x110] sm:$0xff]
      %v411 = vld [vmem:[%s212 + $0x118] sm:$0xff]
      %vm412 = vcmask 64512
      %v413 = vsel %vm412, %v376, 0.0
      %v414 = vsel %vm412, %v377, 0.0
      %v415 = vsel %vm412, %v378, 0.0
      %v416 = vsel %vm412, %v379, 0.0
      %v417 = vsel %vm412, %v380, 0.0
      %v418 = vsel %vm412, %v381, 0.0
      %v419 = vsel %vm412, %v382, 0.0
      %v420 = vsel %vm412, %v383, 0.0
      %v421 = vsel %vm412, %v384, 0.0
      %v422 = vsel %vm412, %v385, 0.0
      %v423 = vsel %vm412, %v386, 0.0
      %v424 = vsel %vm412, %v387, 0.0
      %v425 = vsel %vm412, %v388, 0.0
      %v426 = vsel %vm412, %v389, 0.0
      %v427 = vsel %vm412, %v390, 0.0
      %v428 = vsel %vm412, %v391, 0.0
      %v429 = vsel %vm412, %v392, 0.0
      %v430 = vsel %vm412, %v393, 0.0
      %v431 = vsel %vm412, %v394, 0.0
      %v432 = vsel %vm412, %v395, 0.0
      %v433 = vsel %vm412, %v396, 0.0
      %v434 = vsel %vm412, %v397, 0.0
      %v435 = vsel %vm412, %v398, 0.0
      %v436 = vsel %vm412, %v399, 0.0
      %v437 = vsel %vm412, %v400, 0.0
      %v438 = vsel %vm412, %v401, 0.0
      %v439 = vsel %vm412, %v402, 0.0
      %v440 = vsel %vm412, %v403, 0.0
      %v441 = vsel %vm412, %v404, 0.0
      %v442 = vsel %vm412, %v405, 0.0
      %v443 = vsel %vm412, %v406, 0.0
      %v444 = vsel %vm412, %v407, 0.0
      %v445 = vsel %vm412, %v408, 0.0
      %v446 = vsel %vm412, %v409, 0.0
      %v447 = vsel %vm412, %v410, 0.0
      %v448 = vsel %vm412, %v411, 0.0
      %v449 = vadd.f32 %v340, %v413
      %v450 = vadd.f32 %v341, %v414
      %v451 = vadd.f32 %v342, %v415
      %v452 = vadd.f32 %v343, %v416
      %v453 = vadd.f32 %v344, %v417
      %v454 = vadd.f32 %v345, %v418
      %v455 = vadd.f32 %v346, %v419
      %v456 = vadd.f32 %v347, %v420
      %v457 = vadd.f32 %v348, %v421
      %v458 = vadd.f32 %v349, %v422
      %v459 = vadd.f32 %v350, %v423
      %v460 = vadd.f32 %v351, %v424
      %v461 = vadd.f32 %v352, %v425
      %v462 = vadd.f32 %v353, %v426
      %v463 = vadd.f32 %v354, %v427
      %v464 = vadd.f32 %v355, %v428
      %v465 = vadd.f32 %v356, %v429
      %v466 = vadd.f32 %v357, %v430
      %v467 = vadd.f32 %v358, %v431
      %v468 = vadd.f32 %v359, %v432
      %v469 = vadd.f32 %v360, %v433
      %v470 = vadd.f32 %v361, %v434
      %v471 = vadd.f32 %v362, %v435
      %v472 = vadd.f32 %v363, %v436
      %v473 = vadd.f32 %v364, %v437
      %v474 = vadd.f32 %v365, %v438
      %v475 = vadd.f32 %v366, %v439
      %v476 = vadd.f32 %v367, %v440
      %v477 = vadd.f32 %v368, %v441
      %v478 = vadd.f32 %v369, %v442
      %v479 = vadd.f32 %v370, %v443
      %v480 = vadd.f32 %v371, %v444
      %v481 = vadd.f32 %v372, %v445
      %v482 = vadd.f32 %v373, %v446
      %v483 = vadd.f32 %v374, %v447
      %v484 = vadd.f32 %v375, %v448
      %v485 = vmax.f32 %v449, 0.0
      %v486 = vmax.f32 %v450, 0.0
      %v487 = vmax.f32 %v451, 0.0
      %v488 = vmax.f32 %v452, 0.0
      %v489 = vmax.f32 %v453, 0.0
      %v490 = vmax.f32 %v454, 0.0
      %v491 = vmax.f32 %v455, 0.0
      %v492 = vmax.f32 %v456, 0.0
      %v493 = vmax.f32 %v457, 0.0
      %v494 = vmax.f32 %v458, 0.0
      %v495 = vmax.f32 %v459, 0.0
      %v496 = vmax.f32 %v460, 0.0
      %v497 = vmax.f32 %v461, 0.0
      %v498 = vmax.f32 %v462, 0.0
      %v499 = vmax.f32 %v463, 0.0
      %v500 = vmax.f32 %v464, 0.0
      %v501 = vmax.f32 %v465, 0.0
      %v502 = vmax.f32 %v466, 0.0
      %v503 = vmax.f32 %v467, 0.0
      %v504 = vmax.f32 %v468, 0.0
      %v505 = vmax.f32 %v469, 0.0
      %v506 = vmax.f32 %v470, 0.0
      %v507 = vmax.f32 %v471, 0.0
      %v508 = vmax.f32 %v472, 0.0
      %v509 = vmax.f32 %v473, 0.0
      %v510 = vmax.f32 %v474, 0.0
      %v511 = vmax.f32 %v475, 0.0
      %v512 = vmax.f32 %v476, 0.0
      %v513 = vmax.f32 %v477, 0.0
      %v514 = vmax.f32 %v478, 0.0
      %v515 = vmax.f32 %v479, 0.0
      %v516 = vmax.f32 %v480, 0.0
      %v517 = vmax.f32 %v481, 0.0
      %v518 = vmax.f32 %v482, 0.0
      %v519 = vmax.f32 %v483, 0.0
      %v520 = vmax.f32 %v484, 0.0
      %v521 = vpack.c.bf16 %v486, %v485
      %v522 = vpack.c.bf16 %v488, %v487
      %v523 = vpack.c.bf16 %v490, %v489
      %v524 = vpack.c.bf16 %v492, %v491
      %v525 = vpack.c.bf16 %v494, %v493
      %v526 = vpack.c.bf16 %v496, %v495
      %v527 = vpack.c.bf16 %v498, %v497
      %v528 = vpack.c.bf16 %v500, %v499
      %v529 = vpack.c.bf16 %v502, %v501
      %v530 = vpack.c.bf16 %v504, %v503
      %v531 = vpack.c.bf16 %v506, %v505
      %v532 = vpack.c.bf16 %v508, %v507
      %v533 = vpack.c.bf16 %v510, %v509
      %v534 = vpack.c.bf16 %v512, %v511
      %v535 = vpack.c.bf16 %v514, %v513
      %v536 = vpack.c.bf16 %v516, %v515
      %v537 = vpack.c.bf16 %v518, %v517
      %v538 = vpack.c.bf16 %v520, %v519
      %v557 = vunpack.c.l.b16 %v521
      %v558 = vunpack.c.h.b16 %v521
      %v559 = vunpack.c.l.b16 %v522
      %v560 = vunpack.c.h.b16 %v522
      %v561 = vunpack.c.l.b16 %v523
      %v562 = vunpack.c.h.b16 %v523
      %v563 = vunpack.c.l.b16 %v524
      %v564 = vunpack.c.h.b16 %v524
      %v565 = vunpack.c.l.b16 %v525
      %v566 = vunpack.c.h.b16 %v525
      %v567 = vunpack.c.l.b16 %v526
      %v568 = vunpack.c.h.b16 %v526
      %v569 = vunpack.c.l.b16 %v527
      %v570 = vunpack.c.h.b16 %v527
      %v571 = vunpack.c.l.b16 %v528
      %v572 = vunpack.c.h.b16 %v528
      %v573 = vunpack.c.l.b16 %v529
      %v574 = vunpack.c.h.b16 %v529
      %v575 = vunpack.c.l.b16 %v530
      %v576 = vunpack.c.h.b16 %v530
      %v577 = vunpack.c.l.b16 %v531
      %v578 = vunpack.c.h.b16 %v531
      %v579 = vunpack.c.l.b16 %v532
      %v580 = vunpack.c.h.b16 %v532
      %v581 = vunpack.c.l.b16 %v533
      %v582 = vunpack.c.h.b16 %v533
      %v583 = vunpack.c.l.b16 %v534
      %v584 = vunpack.c.h.b16 %v534
      %v585 = vunpack.c.l.b16 %v535
      %v586 = vunpack.c.h.b16 %v535
      %v587 = vunpack.c.l.b16 %v536
      %v588 = vunpack.c.h.b16 %v536
      %v589 = vunpack.c.l.b16 %v537
      %v590 = vunpack.c.h.b16 %v537
      %v591 = vunpack.c.l.b16 %v538
      %v592 = vunpack.c.h.b16 %v538
      %v593 = vpack.c.b16 %v557, %v557
      %v594 = vpack.c.b16 %v558, %v558
      %v595 = vpack.c.b16 %v559, %v559
      %v596 = vpack.c.b16 %v560, %v560
      %v597 = vpack.c.b16 %v561, %v561
      %v598 = vpack.c.b16 %v562, %v562
      %v599 = vpack.c.b16 %v563, %v563
      %v600 = vpack.c.b16 %v564, %v564
      %v601 = vpack.c.b16 %v565, %v565
      %v602 = vpack.c.b16 %v566, %v566
      %v603 = vpack.c.b16 %v567, %v567
      %v604 = vpack.c.b16 %v568, %v568
      %v605 = vpack.c.b16 %v569, %v569
      %v606 = vpack.c.b16 %v570, %v570
      %v607 = vpack.c.b16 %v571, %v571
      %v608 = vpack.c.b16 %v572, %v572
      %v609 = vpack.c.b16 %v573, %v573
      %v610 = vpack.c.b16 %v574, %v574
      %v611 = vpack.c.b16 %v575, %v575
      %v612 = vpack.c.b16 %v576, %v576
      %v613 = vpack.c.b16 %v577, %v577
      %v614 = vpack.c.b16 %v578, %v578
      %v615 = vpack.c.b16 %v579, %v579
      %v616 = vpack.c.b16 %v580, %v580
      %v617 = vpack.c.b16 %v581, %v581
      %v618 = vpack.c.b16 %v582, %v582
      %v619 = vpack.c.b16 %v583, %v583
      %v620 = vpack.c.b16 %v584, %v584
      %v621 = vpack.c.b16 %v585, %v585
      %v622 = vpack.c.b16 %v586, %v586
      %v623 = vpack.c.b16 %v587, %v587
      %v624 = vpack.c.b16 %v588, %v588
      %v625 = vpack.c.b16 %v589, %v589
      %v626 = vpack.c.b16 %v590, %v590
      %v627 = vpack.c.b16 %v591, %v591
      %v628 = vpack.c.b16 %v592, %v592
      %665 = vst [vmem:[%s217] sm:$0xf] %v593
      %666 = vst [vmem:[%s217 + $0x4] sm:$0xf] %v594
      %667 = vst [vmem:[%s217 + $0x8] sm:$0xf] %v595
      %668 = vst [vmem:[%s217 + $0xc] sm:$0xf] %v596
      %669 = vst [vmem:[%s217 + $0x10] sm:$0xf] %v597
      %670 = vst [vmem:[%s217 + $0x14] sm:$0xf] %v598
      %671 = vst [vmem:[%s217 + $0x18] sm:$0xf] %v599
      %672 = vst [vmem:[%s217 + $0x1c] sm:$0xf] %v600
      %673 = vst [vmem:[%s217 + $0x20] sm:$0xf] %v601
      %674 = vst [vmem:[%s217 + $0x24] sm:$0xf] %v602
      %675 = vst [vmem:[%s217 + $0x28] sm:$0xf] %v603
      %676 = vst [vmem:[%s217 + $0x2c] sm:$0xf] %v604
      %677 = vst [vmem:[%s217 + $0x30] sm:$0xf] %v605
      %678 = vst [vmem:[%s217 + $0x34] sm:$0xf] %v606
      %679 = vst [vmem:[%s217 + $0x38] sm:$0xf] %v607
      %680 = vst [vmem:[%s217 + $0x3c] sm:$0xf] %v608
      %681 = vst [vmem:[%s217 + $0x40] sm:$0xf] %v609
      %682 = vst [vmem:[%s217 + $0x44] sm:$0xf] %v610
      %683 = vst [vmem:[%s217 + $0x48] sm:$0xf] %v611
      %684 = vst [vmem:[%s217 + $0x4c] sm:$0xf] %v612
      %685 = vst [vmem:[%s217 + $0x50] sm:$0xf] %v613
      %686 = vst [vmem:[%s217 + $0x54] sm:$0xf] %v614
      %687 = vst [vmem:[%s217 + $0x58] sm:$0xf] %v615
      %688 = vst [vmem:[%s217 + $0x5c] sm:$0xf] %v616
      %689 = vst [vmem:[%s217 + $0x60] sm:$0xf] %v617
      %690 = vst [vmem:[%s217 + $0x64] sm:$0xf] %v618
      %691 = vst [vmem:[%s217 + $0x68] sm:$0xf] %v619
      %692 = vst [vmem:[%s217 + $0x6c] sm:$0xf] %v620
      %693 = vst [vmem:[%s217 + $0x70] sm:$0xf] %v621
      %694 = vst [vmem:[%s217 + $0x74] sm:$0xf] %v622
      %695 = vst [vmem:[%s217 + $0x78] sm:$0xf] %v623
      %696 = vst [vmem:[%s217 + $0x7c] sm:$0xf] %v624
      %697 = vst [vmem:[%s217 + $0x80] sm:$0xf] %v625
      %698 = vst [vmem:[%s217 + $0x84] sm:$0xf] %v626
      %699 = vst [vmem:[%s217 + $0x88] sm:$0xf] %v627
      %700 = vst [vmem:[%s217 + $0x8c] sm:$0xf] %v628
      %p701 = scmp.lt.s32.totalorder %s15, 1
      %s702 = scalar_select %p701, %s15, 1
      %s703 = smul.addr %s702, 36
      %s704 = smul.addr %s703, 4
      %s705 = scalar_lea.vmem %s4, %s704
      // Predicated region
      $region37: #{block_forward.5} parent=35 // pred_check
        %p706 = pneg %p127
      $region38: #{block_forward.5} parent=35 // pred_check_branch
        %708 = sbr.rel (%p706) target = $region40
      $region39: #{block_forward.5} parent=35 // pred_region
        _
      $region40: #{block_forward.5} parent=35 // pred_fallthru
        _
    $region36: #{block_forward.5} parent=5 // pred_fallthru
      _
    %p709 = scmp.le.s32.totalorder 2, %s10
    // Predicated region
    $region41: #{block_forward.5} parent=5 // pred_check
      %p710 = pneg %p709
    $region42: #{block_forward.5} parent=5 // pred_check_branch
      %712 = sbr.rel (%p710) target = $region44
    $region43: #{block_forward.5} parent=5 // pred_region
      %s713 = ssub.s32 %s10, 2
      // Predicated region
      $region45: #{block_forward.5} parent=43 // pred_check
        %p714 = pneg %p133
      $region46: #{block_forward.5} parent=43 // pred_check_branch
        %716 = sbr.rel (%p714) target = $region48
      $region47: #{block_forward.5} parent=43 // pred_region
        %p717 = scmp.lt.s32.totalorder %s16, 1
        %s718 = scalar_select %p717, %s16, 1
        %s719 = smul.addr %s718, 36
        %s720 = smul.addr %s719, 4
        %s721 = scalar_lea.vmem %s4, %s720
      $region48: #{block_forward.5} parent=43 // pred_fallthru
        _
    $region44: #{block_forward.5} parent=5 // pred_fallthru
      _
  $region6: #{block_forward.5} parent=0 // loop_footer
    %s14 = sadd.s32 1, %s10
  $region7: #{block_forward.5} parent=0 // loop_footer_branch
    %9 = sbr.rel target = $region3
  $region8: #{block_forward.5} parent=0 // loop_exit
    _

// kernel: block_forward.4
$region0: #{block_forward.4}
  #allocation0 [shape = 'u32[]', space=smem, size = 0x4, offset = 0x4, fixed_abs, tag = 'smem constant byte address 0x4 - core index']
  #allocation1 [shape = 'u32[144,128]{1,0:T(1,128)}', space=vmem, size = 0x12000, scoped, tag = 'internal scratch']
  #allocation2 [shape = 'f32[326,128]{1,0:T(8,128)}', space=vmem, size = 0x29000, scoped, tag = 'scratch operand']
  #allocation3 [shape = 'bf16[288,1152]{1,0:T(16,128)(2,1)}', space=vmem, size = 0xa2000, scoped, tag = 'scratch operand']
  %s0 = inlined_call_operand.vmem [shape: bf16[2,288,128], index: 0, kind: input, shape index: {}]
  %s1 = inlined_call_operand.vmem [shape: f32[1,128], index: 1, kind: input, shape index: {}]
  %s2 = inlined_call_operand.vmem [shape: f32[1,128], index: 2, kind: input, shape index: {}]
  %s3 = inlined_call_operand.vmem [shape: f32[288,1], index: 3, kind: input, shape index: {}]
  %s4 = inlined_call_operand.vmem [shape: bf16[1152,128], index: 4, kind: input, shape index: {}]
  %s5 = inlined_call_operand.vmem [shape: bf16[2,288,128], index: 5, kind: output, shape index: {0}]
  %s6 = inlined_call_operand.vmem [shape: f32[2,2,128], index: 6, kind: output, shape index: {1}]
  %7 = xla_tuple %s5, %s6
  %s8 = sld [smem:[#allocation0]]
  $region61: #{block_forward.4} parent=0
    _
  %s10 = ssub.s32 1, %s8
  %s11 = scalar_select 0, %s10, %s8
  loop: start=0, step=1, limit=4
  $region2: #{block_forward.4} parent=0 // loop_pre_header
    _
  $region3: #{block_forward.4} parent=0 // loop_header
    %s13 = sphi 0, %s17
    %p14 = scmp.ge.s32.totalorder %s13, 4
    %s23 = sphi 0, %s25
    %s26 = sphi 0, %s23
    %s27 = sphi 0, %s26
    %s43 = sphi 0, %s27
    %s47 = sphi 0, %s47
    %s49 = sphi 0, %s47
    %s50 = sphi 0, %s49
    %s64 = sphi 0, %s50
    %s68 = sphi 0, %s68
    %s70 = sphi 0, %s68
    %s71 = sphi 0, %s70
    %s85 = sphi 0, %s71
    %s89 = sphi 0, %s89
    %s91 = sphi 0, %s89
    %s92 = sphi 0, %s91
    %s106 = sphi 0, %s92
    %s110 = sphi 0, %s110
    %s112 = sphi 0, %s110
    %s113 = sphi 0, %s112
    %s127 = sphi 0, %s113
    %s133 = sphi 0, %s135
    %s136 = sphi 0, %s133
    %s137 = sphi 0, %s136
    %s153 = sphi 0, %s137
    %s159 = sphi 0, %s161
    %s162 = sphi 0, %s159
    %s163 = sphi 0, %s162
    %s179 = sphi 0, %s163
  $region4: #{block_forward.4} parent=0 // loop_header_branch
    %16 = sbr.rel (%p14) target = $region8
  $region5: #{block_forward.4} parent=0 // loop_body
    %s18 = ssub.s32 %s13, 1
    %s19 = ssub.s32 %s13, 2
    %s20 = sadd.s32 %s13, 1
    %s21 = ssub.s32 %s13, %s20
    %p22 = scmp.eq.s32.totalorder %s21, 0
    %s24 = sadd.s32 %s23, 1
    %s25 = scalar_select %p22, %s23, %s24
    %p28 = pneg %p22
    %p29 = scmp.eq.s32.totalorder %s13, 1
    %p30 = por %p28, %p29
    %p31 = scmp.ne.s32.totalorder %s23, %s26
    %p32 = scmp.eq.s32.totalorder %s13, 0
    %p33 = por %p31, %p32
    %p34 = scmp.ne.s32.totalorder %s23, %s26
    %p35 = scmp.eq.s32.totalorder %s18, 1
    %p36 = por %p34, %p35
    %p37 = scmp.ne.s32.totalorder %s26, %s27
    %p38 = scmp.eq.s32.totalorder %s18, 0
    %p39 = por %p37, %p38
    %p40 = scmp.ne.s32.totalorder %s26, %s27
    %p41 = scmp.eq.s32.totalorder %s19, 1
    %p42 = por %p40, %p41
    %p44 = scmp.ne.s32.totalorder %s27, %s43
    %p45 = scmp.eq.s32.totalorder %s19, 0
    %p46 = por %p44, %p45
    %s48 = sadd.s32 %s47, 1
    %p51 = scmp.eq.s32.totalorder %s13, 1
    %p52 = scmp.ne.s32.totalorder %s47, %s49
    %p53 = scmp.eq.s32.totalorder %s13, 0
    %p54 = por %p52, %p53
    %p55 = scmp.ne.s32.totalorder %s47, %s49
    %p56 = scmp.eq.s32.totalorder %s18, 1
    %p57 = por %p55, %p56
    %p58 = scmp.ne.s32.totalorder %s49, %s50
    %p59 = scmp.eq.s32.totalorder %s18, 0
    %p60 = por %p58, %p59
    %p61 = scmp.ne.s32.totalorder %s49, %s50
    %p62 = scmp.eq.s32.totalorder %s19, 1
    %p63 = por %p61, %p62
    %p65 = scmp.ne.s32.totalorder %s50, %s64
    %p66 = scmp.eq.s32.totalorder %s19, 0
    %p67 = por %p65, %p66
    %s69 = sadd.s32 %s68, 1
    %p72 = scmp.eq.s32.totalorder %s13, 1
    %p73 = scmp.ne.s32.totalorder %s68, %s70
    %p74 = scmp.eq.s32.totalorder %s13, 0
    %p75 = por %p73, %p74
    %p76 = scmp.ne.s32.totalorder %s68, %s70
    %p77 = scmp.eq.s32.totalorder %s18, 1
    %p78 = por %p76, %p77
    %p79 = scmp.ne.s32.totalorder %s70, %s71
    %p80 = scmp.eq.s32.totalorder %s18, 0
    %p81 = por %p79, %p80
    %p82 = scmp.ne.s32.totalorder %s70, %s71
    %p83 = scmp.eq.s32.totalorder %s19, 1
    %p84 = por %p82, %p83
    %p86 = scmp.ne.s32.totalorder %s71, %s85
    %p87 = scmp.eq.s32.totalorder %s19, 0
    %p88 = por %p86, %p87
    %s90 = sadd.s32 %s89, 1
    %p93 = scmp.eq.s32.totalorder %s13, 1
    %p94 = scmp.ne.s32.totalorder %s89, %s91
    %p95 = scmp.eq.s32.totalorder %s13, 0
    %p96 = por %p94, %p95
    %p97 = scmp.ne.s32.totalorder %s89, %s91
    %p98 = scmp.eq.s32.totalorder %s18, 1
    %p99 = por %p97, %p98
    %p100 = scmp.ne.s32.totalorder %s91, %s92
    %p101 = scmp.eq.s32.totalorder %s18, 0
    %p102 = por %p100, %p101
    %p103 = scmp.ne.s32.totalorder %s91, %s92
    %p104 = scmp.eq.s32.totalorder %s19, 1
    %p105 = por %p103, %p104
    %p107 = scmp.ne.s32.totalorder %s92, %s106
    %p108 = scmp.eq.s32.totalorder %s19, 0
    %p109 = por %p107, %p108
    %s111 = sadd.s32 %s110, 1
    %p114 = scmp.eq.s32.totalorder %s13, 1
    %p115 = scmp.ne.s32.totalorder %s110, %s112
    %p116 = scmp.eq.s32.totalorder %s13, 0
    %p117 = por %p115, %p116
    %p118 = scmp.ne.s32.totalorder %s110, %s112
    %p119 = scmp.eq.s32.totalorder %s18, 1
    %p120 = por %p118, %p119
    %p121 = scmp.ne.s32.totalorder %s112, %s113
    %p122 = scmp.eq.s32.totalorder %s18, 0
    %p123 = por %p121, %p122
    %p124 = scmp.ne.s32.totalorder %s112, %s113
    %p125 = scmp.eq.s32.totalorder %s19, 1
    %p126 = por %p124, %p125
    %p128 = scmp.ne.s32.totalorder %s113, %s127
    %p129 = scmp.eq.s32.totalorder %s19, 0
    %p130 = por %p128, %p129
    %s131 = ssub.s32 %s13, %s20
    %p132 = scmp.eq.s32.totalorder %s131, 0
    %s134 = sadd.s32 %s133, 1
    %s135 = scalar_select %p132, %s133, %s134
    %p138 = pneg %p132
    %p139 = scmp.eq.s32.totalorder %s13, 1
    %p140 = por %p138, %p139
    %p141 = scmp.ne.s32.totalorder %s133, %s136
    %p142 = scmp.eq.s32.totalorder %s13, 0
    %p143 = por %p141, %p142
    %p144 = scmp.ne.s32.totalorder %s133, %s136
    %p145 = scmp.eq.s32.totalorder %s18, 1
    %p146 = por %p144, %p145
    %p147 = scmp.ne.s32.totalorder %s136, %s137
    %p148 = scmp.eq.s32.totalorder %s18, 0
    %p149 = por %p147, %p148
    %p150 = scmp.ne.s32.totalorder %s136, %s137
    %p151 = scmp.eq.s32.totalorder %s19, 1
    %p152 = por %p150, %p151
    %p154 = scmp.ne.s32.totalorder %s137, %s153
    %p155 = scmp.eq.s32.totalorder %s19, 0
    %p156 = por %p154, %p155
    %s157 = ssub.s32 %s13, %s20
    %p158 = scmp.eq.s32.totalorder %s157, 0
    %s160 = sadd.s32 %s159, 1
    %s161 = scalar_select %p158, %s159, %s160
    %p164 = pneg %p158
    %p165 = scmp.eq.s32.totalorder %s13, 1
    %p166 = por %p164, %p165
    %p167 = scmp.ne.s32.totalorder %s159, %s162
    %p168 = scmp.eq.s32.totalorder %s13, 0
    %p169 = por %p167, %p168
    %p170 = scmp.ne.s32.totalorder %s159, %s162
    %p171 = scmp.eq.s32.totalorder %s18, 1
    %p172 = por %p170, %p171
    %p173 = scmp.ne.s32.totalorder %s162, %s163
    %p174 = scmp.eq.s32.totalorder %s18, 0
    %p175 = por %p173, %p174
    %p176 = scmp.ne.s32.totalorder %s162, %s163
    %p177 = scmp.eq.s32.totalorder %s19, 1
    %p178 = por %p176, %p177
    %p180 = scmp.ne.s32.totalorder %s163, %s179
    %p181 = scmp.eq.s32.totalorder %s19, 0
    %p182 = por %p180, %p181
    %p183 = scmp.le.s32.totalorder 1, %s13
    %p184 = scmp.lt.s32.totalorder %s13, 3
    %p185 = pnand %p183, %p184
    %p186 = pneg %p185
    // Predicated region
    $region9: #{block_forward.4} parent=5 // pred_check
      _
    $region10: #{block_forward.4} parent=5 // pred_check_branch
      %188 = sbr.rel (%p185) target = $region12
    $region11: #{block_forward.4} parent=5 // pred_region
      %s189 = ssub.s32 %s13, 1
      // Predicated region
      $region13: #{block_forward.4} parent=11 // pred_check
        %p190 = pneg %p60
      $region14: #{block_forward.4} parent=11 // pred_check_branch
        %192 = sbr.rel (%p190) target = $region16
      $region15: #{block_forward.4} parent=11 // pred_region
        _
      $region16: #{block_forward.4} parent=11 // pred_fallthru
        _
      // Predicated region
      $region17: #{block_forward.4} parent=11 // pred_check
        %p193 = pneg %p81
      $region18: #{block_forward.4} parent=11 // pred_check_branch
        %195 = sbr.rel (%p193) target = $region20
      $region19: #{block_forward.4} parent=11 // pred_region
        _
      $region20: #{block_forward.4} parent=11 // pred_fallthru
        _
      // Predicated region
      $region21: #{block_forward.4} parent=11 // pred_check
        %p196 = pneg %p102
      $region22: #{block_forward.4} parent=11 // pred_check_branch
        %198 = sbr.rel (%p196) target = $region24
      $region23: #{block_forward.4} parent=11 // pred_region
        _
      $region24: #{block_forward.4} parent=11 // pred_fallthru
        _
      // Predicated region
      $region25: #{block_forward.4} parent=11 // pred_check
        %p199 = pneg %p123
      $region26: #{block_forward.4} parent=11 // pred_check_branch
        %201 = sbr.rel (%p199) target = $region28
      $region27: #{block_forward.4} parent=11 // pred_region
        _
      $region28: #{block_forward.4} parent=11 // pred_fallthru
        _
    $region12: #{block_forward.4} parent=5 // pred_fallthru
      _
    %p202 = scmp.lt.s32.totalorder %s13, 2
    // Predicated region
    $region29: #{block_forward.4} parent=5 // pred_check
      %p203 = pneg %p202
    $region30: #{block_forward.4} parent=5 // pred_check_branch
      %205 = sbr.rel (%p203) target = $region32
    $region31: #{block_forward.4} parent=5 // pred_region
      // Predicated region
      $region33: #{block_forward.4} parent=31 // pred_check
        %p206 = pneg %p33
      $region34: #{block_forward.4} parent=31 // pred_check_branch
        %208 = sbr.rel (%p206) target = $region36
      $region35: #{block_forward.4} parent=31 // pred_region
        %p209 = scmp.lt.s32.totalorder %s13, 1
        %s210 = scalar_select %p209, %s13, 1
        %s211 = smul.addr %s210, 36
        %s212 = smul.addr %s211, 4
        %s213 = scalar_lea.vmem %s0, %s212
      $region36: #{block_forward.4} parent=31 // pred_fallthru
        _
    $region32: #{block_forward.4} parent=5 // pred_fallthru
      _
    %p214 = scmp.le.s32.totalorder 1, %s13
    %p215 = scmp.lt.s32.totalorder %s13, 3
    %p216 = pnand %p214, %p215
    %p217 = pneg %p216
    // Predicated region
    $region37: #{block_forward.4} parent=5 // pred_check
      _
    $region38: #{block_forward.4} parent=5 // pred_check_branch
      %219 = sbr.rel (%p216) target = $region40
    $region39: #{block_forward.4} parent=5 // pred_region
      %s220 = ssub.s32 %s13, 1
      %p221 = scmp.lt.s32.totalorder %s18, 1
      %s222 = scalar_select %p221, %s18, 1
      %s223 = smul.addr %s222, 36
      %s224 = smul.addr %s223, 4
      %s225 = scalar_lea.vmem %s0, %s224
      %p226 = pneg %p39
      %p227 = pneg %p36
      %p228 = pneg %p60
      %p229 = pneg %p57
      %p230 = pneg %p81
      %p231 = pneg %p78
      %p232 = pneg %p102
      %p233 = pneg %p99
      %p234 = pneg %p123
      %p235 = pneg %p120
      %p236 = pneg %p149
      %p237 = pneg %p146
      %p238 = scmp.lt.s32.totalorder %s18, 1
      %s239 = scalar_select %p238, %s18, 1
      %s240 = smul.addr %s239, 36
      %s241 = smul.addr %s240, 4
      %s242 = scalar_lea.vmem %s5, %s241
      %p243 = pneg %p175
      %p244 = pneg %p172
      %p245 = scmp.lt.s32.totalorder %s18, 1
      %s246 = scalar_select %p245, %s18, 1
      %s247 = smul.addr %s246, 2
      %s248 = scalar_lea.vmem %s6, %s247
      %p249 = scmp.lt.s32.totalorder %s18, 1
      %s250 = scalar_select %p249, %s18, 1
      %s251 = smul.addr %s250, 36
      %s252 = smul.addr %s251, 4
      %s253 = scalar_lea.vmem %s0, %s252
      %p254 = scmp.lt.s32.totalorder %s18, 1
      %s255 = scalar_select %p254, %s18, 1
      %s256 = smul.addr %s255, 36
      %s257 = smul.addr %s256, 4
      %s258 = scalar_lea.vmem %s5, %s257
      %p259 = scmp.lt.s32.totalorder %s18, 1
      %s260 = scalar_select %p259, %s18, 1
      %s261 = smul.addr %s260, 2
      %s262 = scalar_lea.vmem %s6, %s261
      %v264 = vld [vmem:[%s3] sm:$0xff]
      %v265 = vld [vmem:[%s3 + $0x8] sm:$0xff]
      %v266 = vld [vmem:[%s3 + $0x10] sm:$0xff]
      %v267 = vld [vmem:[%s3 + $0x18] sm:$0xff]
      %v268 = vld [vmem:[%s3 + $0x20] sm:$0xff]
      %v269 = vld [vmem:[%s3 + $0x28] sm:$0xff]
      %v270 = vld [vmem:[%s3 + $0x30] sm:$0xff]
      %v271 = vld [vmem:[%s3 + $0x38] sm:$0xff]
      %v272 = vld [vmem:[%s3 + $0x40] sm:$0xff]
      %v273 = vld [vmem:[%s3 + $0x48] sm:$0xff]
      %v274 = vld [vmem:[%s3 + $0x50] sm:$0xff]
      %v275 = vld [vmem:[%s3 + $0x58] sm:$0xff]
      %v276 = vld [vmem:[%s3 + $0x60] sm:$0xff]
      %v277 = vld [vmem:[%s3 + $0x68] sm:$0xff]
      %v278 = vld [vmem:[%s3 + $0x70] sm:$0xff]
      %v279 = vld [vmem:[%s3 + $0x78] sm:$0xff]
      %v280 = vld [vmem:[%s3 + $0x80] sm:$0xff]
      %v281 = vld [vmem:[%s3 + $0x88] sm:$0xff]
      %v282 = vld [vmem:[%s3 + $0x90] sm:$0xff]
      %v283 = vld [vmem:[%s3 + $0x98] sm:$0xff]
      %v284 = vld [vmem:[%s3 + $0xa0] sm:$0xff]
      %v285 = vld [vmem:[%s3 + $0xa8] sm:$0xff]
      %v286 = vld [vmem:[%s3 + $0xb0] sm:$0xff]
      %v287 = vld [vmem:[%s3 + $0xb8] sm:$0xff]
      %v288 = vld [vmem:[%s3 + $0xc0] sm:$0xff]
      %v289 = vld [vmem:[%s3 + $0xc8] sm:$0xff]
      %v290 = vld [vmem:[%s3 + $0xd0] sm:$0xff]
      %v291 = vld [vmem:[%s3 + $0xd8] sm:$0xff]
      %v292 = vld [vmem:[%s3 + $0xe0] sm:$0xff]
      %v293 = vld [vmem:[%s3 + $0xe8] sm:$0xff]
      %v294 = vld [vmem:[%s3 + $0xf0] sm:$0xff]
      %v295 = vld [vmem:[%s3 + $0xf8] sm:$0xff]
      %v296 = vld [vmem:[%s3 + $0x100] sm:$0xff]
      %v297 = vld [vmem:[%s3 + $0x108] sm:$0xff]
      %v298 = vld [vmem:[%s3 + $0x110] sm:$0xff]
      %v299 = vld [vmem:[%s3 + $0x118] sm:$0xff]
      %v300 = vld [vmem:[%s253] sm:$0xf]
      %v301 = vld [vmem:[%s253 + $0x4] sm:$0xf]
      %v302 = vld [vmem:[%s253 + $0x8] sm:$0xf]
      %v303 = vld [vmem:[%s253 + $0xc] sm:$0xf]
      %v304 = vld [vmem:[%s253 + $0x10] sm:$0xf]
      %v305 = vld [vmem:[%s253 + $0x14] sm:$0xf]
      %v306 = vld [vmem:[%s253 + $0x18] sm:$0xf]
      %v307 = vld [vmem:[%s253 + $0x1c] sm:$0xf]
      %v308 = vld [vmem:[%s253 + $0x20] sm:$0xf]
      %v309 = vld [vmem:[%s253 + $0x24] sm:$0xf]
      %v310 = vld [vmem:[%s253 + $0x28] sm:$0xf]
      %v311 = vld [vmem:[%s253 + $0x2c] sm:$0xf]
      %v312 = vld [vmem:[%s253 + $0x30] sm:$0xf]
      %v313 = vld [vmem:[%s253 + $0x34] sm:$0xf]
      %v314 = vld [vmem:[%s253 + $0x38] sm:$0xf]
      %v315 = vld [vmem:[%s253 + $0x3c] sm:$0xf]
      %v316 = vld [vmem:[%s253 + $0x40] sm:$0xf]
      %v317 = vld [vmem:[%s253 + $0x44] sm:$0xf]
      %v318 = vld [vmem:[%s253 + $0x48] sm:$0xf]
      %v319 = vld [vmem:[%s253 + $0x4c] sm:$0xf]
      %v320 = vld [vmem:[%s253 + $0x50] sm:$0xf]
      %v321 = vld [vmem:[%s253 + $0x54] sm:$0xf]
      %v322 = vld [vmem:[%s253 + $0x58] sm:$0xf]
      %v323 = vld [vmem:[%s253 + $0x5c] sm:$0xf]
      %v324 = vld [vmem:[%s253 + $0x60] sm:$0xf]
      %v325 = vld [vmem:[%s253 + $0x64] sm:$0xf]
      %v326 = vld [vmem:[%s253 + $0x68] sm:$0xf]
      %v327 = vld [vmem:[%s253 + $0x6c] sm:$0xf]
      %v328 = vld [vmem:[%s253 + $0x70] sm:$0xf]
      %v329 = vld [vmem:[%s253 + $0x74] sm:$0xf]
      %v330 = vld [vmem:[%s253 + $0x78] sm:$0xf]
      %v331 = vld [vmem:[%s253 + $0x7c] sm:$0xf]
      %v332 = vld [vmem:[%s253 + $0x80] sm:$0xf]
      %v333 = vld [vmem:[%s253 + $0x84] sm:$0xf]
      %v334 = vld [vmem:[%s253 + $0x88] sm:$0xf]
      %v335 = vld [vmem:[%s253 + $0x8c] sm:$0xf]
      %v336 = vunpack.c.l.bf16 %v300
      %v337 = vunpack.c.l.bf16 %v301
      %v338 = vunpack.c.l.bf16 %v302
      %v339 = vunpack.c.l.bf16 %v303
      %v340 = vunpack.c.l.bf16 %v304
      %v341 = vunpack.c.l.bf16 %v305
      %v342 = vunpack.c.l.bf16 %v306
      %v343 = vunpack.c.l.bf16 %v307
      %v344 = vunpack.c.l.bf16 %v308
      %v345 = vunpack.c.l.bf16 %v309
      %v346 = vunpack.c.l.bf16 %v310
      %v347 = vunpack.c.l.bf16 %v311
      %v348 = vunpack.c.l.bf16 %v312
      %v349 = vunpack.c.l.bf16 %v313
      %v350 = vunpack.c.l.bf16 %v314
      %v351 = vunpack.c.l.bf16 %v315
      %v352 = vunpack.c.l.bf16 %v316
      %v353 = vunpack.c.l.bf16 %v317
      %v354 = vunpack.c.l.bf16 %v318
      %v355 = vunpack.c.l.bf16 %v319
      %v356 = vunpack.c.l.bf16 %v320
      %v357 = vunpack.c.l.bf16 %v321
      %v358 = vunpack.c.l.bf16 %v322
      %v359 = vunpack.c.l.bf16 %v323
      %v360 = vunpack.c.l.bf16 %v324
      %v361 = vunpack.c.l.bf16 %v325
      %v362 = vunpack.c.l.bf16 %v326
      %v363 = vunpack.c.l.bf16 %v327
      %v364 = vunpack.c.l.bf16 %v328
      %v365 = vunpack.c.l.bf16 %v329
      %v366 = vunpack.c.l.bf16 %v330
      %v367 = vunpack.c.l.bf16 %v331
      %v368 = vunpack.c.l.bf16 %v332
      %v369 = vunpack.c.l.bf16 %v333
      %v370 = vunpack.c.l.bf16 %v334
      %v371 = vunpack.c.l.bf16 %v335
      %v372 = vld [vmem:[%s1] sm:$0x1]
      %v374 = vlaneseq
      %v375 = vshrl.u32 %v374, 7
      %v376 = vsub.s32 0, %v375
      %v377 = vrot.slane %v372, %v376
      %v379 = vmul.f32 %v336, %v377
      %v380 = vmul.f32 %v337, %v377
      %v381 = vmul.f32 %v338, %v377
      %v382 = vmul.f32 %v339, %v377
      %v383 = vmul.f32 %v340, %v377
      %v384 = vmul.f32 %v341, %v377
      %v385 = vmul.f32 %v342, %v377
      %v386 = vmul.f32 %v343, %v377
      %v387 = vmul.f32 %v344, %v377
      %v388 = vmul.f32 %v345, %v377
      %v389 = vmul.f32 %v346, %v377
      %v390 = vmul.f32 %v347, %v377
      %v391 = vmul.f32 %v348, %v377
      %v392 = vmul.f32 %v349, %v377
      %v393 = vmul.f32 %v350, %v377
      %v394 = vmul.f32 %v351, %v377
      %v395 = vmul.f32 %v352, %v377
      %v396 = vmul.f32 %v353, %v377
      %v397 = vmul.f32 %v354, %v377
      %v398 = vmul.f32 %v355, %v377
      %v399 = vmul.f32 %v356, %v377
      %v400 = vmul.f32 %v357, %v377
      %v401 = vmul.f32 %v358, %v377
      %v402 = vmul.f32 %v359, %v377
      %v403 = vmul.f32 %v360, %v377
      %v404 = vmul.f32 %v361, %v377
      %v405 = vmul.f32 %v362, %v377
      %v406 = vmul.f32 %v363, %v377
      %v407 = vmul.f32 %v364, %v377
      %v408 = vmul.f32 %v365, %v377
      %v409 = vmul.f32 %v366, %v377
      %v410 = vmul.f32 %v367, %v377
      %v411 = vmul.f32 %v368, %v377
      %v412 = vmul.f32 %v369, %v377
      %v413 = vmul.f32 %v370, %v377
      %v414 = vmul.f32 %v371, %v377
      %v415 = vld [vmem:[%s2] sm:$0x1]
      %v417 = vlaneseq
      %v418 = vshrl.u32 %v417, 7
      %v419 = vsub.s32 0, %v418
      %v420 = vrot.slane %v415, %v419
      %v422 = vadd.f32 %v379, %v420
      %v423 = vadd.f32 %v380, %v420
      %v424 = vadd.f32 %v381, %v420
      %v425 = vadd.f32 %v382, %v420
      %v426 = vadd.f32 %v383, %v420
      %v427 = vadd.f32 %v384, %v420
      %v428 = vadd.f32 %v385, %v420
      %v429 = vadd.f32 %v386, %v420
      %v430 = vadd.f32 %v387, %v420
      %v431 = vadd.f32 %v388, %v420
      %v432 = vadd.f32 %v389, %v420
      %v433 = vadd.f32 %v390, %v420
      %v434 = vadd.f32 %v391, %v420
      %v435 = vadd.f32 %v392, %v420
      %v436 = vadd.f32 %v393, %v420
      %v437 = vadd.f32 %v394, %v420
      %v438 = vadd.f32 %v395, %v420
      %v439 = vadd.f32 %v396, %v420
      %v440 = vadd.f32 %v397, %v420
      %v441 = vadd.f32 %v398, %v420
      %v442 = vadd.f32 %v399, %v420
      %v443 = vadd.f32 %v400, %v420
      %v444 = vadd.f32 %v401, %v420
      %v445 = vadd.f32 %v402, %v420
      %v446 = vadd.f32 %v403, %v420
      %v447 = vadd.f32 %v404, %v420
      %v448 = vadd.f32 %v405, %v420
      %v449 = vadd.f32 %v406, %v420
      %v450 = vadd.f32 %v407, %v420
      %v451 = vadd.f32 %v408, %v420
      %v452 = vadd.f32 %v409, %v420
      %v453 = vadd.f32 %v410, %v420
      %v454 = vadd.f32 %v411, %v420
      %v455 = vadd.f32 %v412, %v420
      %v456 = vadd.f32 %v413, %v420
      %v457 = vadd.f32 %v414, %v420
      %v458 = vmax.f32 %v422, 0.0
      %v459 = vmax.f32 %v423, 0.0
      %v460 = vmax.f32 %v424, 0.0
      %v461 = vmax.f32 %v425, 0.0
      %v462 = vmax.f32 %v426, 0.0
      %v463 = vmax.f32 %v427, 0.0
      %v464 = vmax.f32 %v428, 0.0
      %v465 = vmax.f32 %v429, 0.0
      %v466 = vmax.f32 %v430, 0.0
      %v467 = vmax.f32 %v431, 0.0
      %v468 = vmax.f32 %v432, 0.0
      %v469 = vmax.f32 %v433, 0.0
      %v470 = vmax.f32 %v434, 0.0
      %v471 = vmax.f32 %v435, 0.0
      %v472 = vmax.f32 %v436, 0.0
      %v473 = vmax.f32 %v437, 0.0
      %v474 = vmax.f32 %v438, 0.0
      %v475 = vmax.f32 %v439, 0.0
      %v476 = vmax.f32 %v440, 0.0
      %v477 = vmax.f32 %v441, 0.0
      %v478 = vmax.f32 %v442, 0.0
      %v479 = vmax.f32 %v443, 0.0
      %v480 = vmax.f32 %v444, 0.0
      %v481 = vmax.f32 %v445, 0.0
      %v482 = vmax.f32 %v446, 0.0
      %v483 = vmax.f32 %v447, 0.0
      %v484 = vmax.f32 %v448, 0.0
      %v485 = vmax.f32 %v449, 0.0
      %v486 = vmax.f32 %v450, 0.0
      %v487 = vmax.f32 %v451, 0.0
      %v488 = vmax.f32 %v452, 0.0
      %v489 = vmax.f32 %v453, 0.0
      %v490 = vmax.f32 %v454, 0.0
      %v491 = vmax.f32 %v455, 0.0
      %v492 = vmax.f32 %v456, 0.0
      %v493 = vmax.f32 %v457, 0.0
      %495 = vset.pattern.permute.xlu0 0
      %496 = vperm.xlu0 %495, %v264
      %v497 = vpop.permute.xlu0 %496
      %500 = vset.pattern.permute.xlu0 0
      %501 = vperm.xlu0 %500, %v265
      %v502 = vpop.permute.xlu0 %501
      %505 = vset.pattern.permute.xlu0 0
      %506 = vperm.xlu0 %505, %v266
      %v507 = vpop.permute.xlu0 %506
      %510 = vset.pattern.permute.xlu0 0
      %511 = vperm.xlu0 %510, %v267
      %v512 = vpop.permute.xlu0 %511
      %515 = vset.pattern.permute.xlu0 0
      %516 = vperm.xlu0 %515, %v268
      %v517 = vpop.permute.xlu0 %516
      %520 = vset.pattern.permute.xlu0 0
      %521 = vperm.xlu0 %520, %v269
      %v522 = vpop.permute.xlu0 %521
      %525 = vset.pattern.permute.xlu0 0
      %526 = vperm.xlu0 %525, %v270
      %v527 = vpop.permute.xlu0 %526
      %530 = vset.pattern.permute.xlu0 0
      %531 = vperm.xlu0 %530, %v271
      %v532 = vpop.permute.xlu0 %531
      %535 = vset.pattern.permute.xlu0 0
      %536 = vperm.xlu0 %535, %v272
      %v537 = vpop.permute.xlu0 %536
      %540 = vset.pattern.permute.xlu0 0
      %541 = vperm.xlu0 %540, %v273
      %v542 = vpop.permute.xlu0 %541
      %545 = vset.pattern.permute.xlu0 0
      %546 = vperm.xlu0 %545, %v274
      %v547 = vpop.permute.xlu0 %546
      %550 = vset.pattern.permute.xlu0 0
      %551 = vperm.xlu0 %550, %v275
      %v552 = vpop.permute.xlu0 %551
      %555 = vset.pattern.permute.xlu0 0
      %556 = vperm.xlu0 %555, %v276
      %v557 = vpop.permute.xlu0 %556
      %560 = vset.pattern.permute.xlu0 0
      %561 = vperm.xlu0 %560, %v277
      %v562 = vpop.permute.xlu0 %561
      %565 = vset.pattern.permute.xlu0 0
      %566 = vperm.xlu0 %565, %v278
      %v567 = vpop.permute.xlu0 %566
      %570 = vset.pattern.permute.xlu0 0
      %571 = vperm.xlu0 %570, %v279
      %v572 = vpop.permute.xlu0 %571
      %575 = vset.pattern.permute.xlu0 0
      %576 = vperm.xlu0 %575, %v280
      %v577 = vpop.permute.xlu0 %576
      %580 = vset.pattern.permute.xlu0 0
      %581 = vperm.xlu0 %580, %v281
      %v582 = vpop.permute.xlu0 %581
      %585 = vset.pattern.permute.xlu0 0
      %586 = vperm.xlu0 %585, %v282
      %v587 = vpop.permute.xlu0 %586
      %590 = vset.pattern.permute.xlu0 0
      %591 = vperm.xlu0 %590, %v283
      %v592 = vpop.permute.xlu0 %591
      %595 = vset.pattern.permute.xlu0 0
      %596 = vperm.xlu0 %595, %v284
      %v597 = vpop.permute.xlu0 %596
      %600 = vset.pattern.permute.xlu0 0
      %601 = vperm.xlu0 %600, %v285
      %v602 = vpop.permute.xlu0 %601
      %605 = vset.pattern.permute.xlu0 0
      %606 = vperm.xlu0 %605, %v286
      %v607 = vpop.permute.xlu0 %606
      %610 = vset.pattern.permute.xlu0 0
      %611 = vperm.xlu0 %610, %v287
      %v612 = vpop.permute.xlu0 %611
      %615 = vset.pattern.permute.xlu0 0
      %616 = vperm.xlu0 %615, %v288
      %v617 = vpop.permute.xlu0 %616
      %620 = vset.pattern.permute.xlu0 0
      %621 = vperm.xlu0 %620, %v289
      %v622 = vpop.permute.xlu0 %621
      %625 = vset.pattern.permute.xlu0 0
      %626 = vperm.xlu0 %625, %v290
      %v627 = vpop.permute.xlu0 %626
      %630 = vset.pattern.permute.xlu0 0
      %631 = vperm.xlu0 %630, %v291
      %v632 = vpop.permute.xlu0 %631
      %635 = vset.pattern.permute.xlu0 0
      %636 = vperm.xlu0 %635, %v292
      %v637 = vpop.permute.xlu0 %636
      %640 = vset.pattern.permute.xlu0 0
      %641 = vperm.xlu0 %640, %v293
      %v642 = vpop.permute.xlu0 %641
      %645 = vset.pattern.permute.xlu0 0
      %646 = vperm.xlu0 %645, %v294
      %v647 = vpop.permute.xlu0 %646
      %650 = vset.pattern.permute.xlu0 0
      %651 = vperm.xlu0 %650, %v295
      %v652 = vpop.permute.xlu0 %651
      %655 = vset.pattern.permute.xlu0 0
      %656 = vperm.xlu0 %655, %v296
      %v657 = vpop.permute.xlu0 %656
      %660 = vset.pattern.permute.xlu0 0
      %661 = vperm.xlu0 %660, %v297
      %v662 = vpop.permute.xlu0 %661
      %665 = vset.pattern.permute.xlu0 0
      %666 = vperm.xlu0 %665, %v298
      %v667 = vpop.permute.xlu0 %666
      %670 = vset.pattern.permute.xlu0 0
      %671 = vperm.xlu0 %670, %v299
      %v672 = vpop.permute.xlu0 %671
      %v674 = vmul.f32 %v458, %v497
      %v675 = vmul.f32 %v459, %v502
      %v676 = vmul.f32 %v460, %v507
      %v677 = vmul.f32 %v461, %v512
      %v678 = vmul.f32 %v462, %v517
      %v679 = vmul.f32 %v463, %v522
      %v680 = vmul.f32 %v464, %v527
      %v681 = vmul.f32 %v465, %v532
      %v682 = vmul.f32 %v466, %v537
      %v683 = vmul.f32 %v467, %v542
      %v684 = vmul.f32 %v468, %v547
      %v685 = vmul.f32 %v469, %v552
      %v686 = vmul.f32 %v470, %v557
      %v687 = vmul.f32 %v471, %v562
      %v688 = vmul.f32 %v472, %v567
      %v689 = vmul.f32 %v473, %v572
      %v690 = vmul.f32 %v474, %v577
      %v691 = vmul.f32 %v475, %v582
      %v692 = vmul.f32 %v476, %v587
      %v693 = vmul.f32 %v477, %v592
      %v694 = vmul.f32 %v478, %v597
      %v695 = vmul.f32 %v479, %v602
      %v696 = vmul.f32 %v480, %v607
      %v697 = vmul.f32 %v481, %v612
      %v698 = vmul.f32 %v482, %v617
      %v699 = vmul.f32 %v483, %v622
      %v700 = vmul.f32 %v484, %v627
      %v701 = vmul.f32 %v485, %v632
      %v702 = vmul.f32 %v486, %v637
      %v703 = vmul.f32 %v487, %v642
      %v704 = vmul.f32 %v488, %v647
      %v705 = vmul.f32 %v489, %v652
      %v706 = vmul.f32 %v490, %v657
      %v707 = vmul.f32 %v491, %v662
      %v708 = vmul.f32 %v492, %v667
      %v709 = vmul.f32 %v493, %v672
      %710 = vst [vmem:[#allocation2] sm:$0xff] 0.0
      %711 = vst [vmem:[#allocation2 + $0x8] sm:$0xff] 0.0
      %712 = vst [vmem:[#allocation2 + $0x10] sm:$0x7] 0.0
      %713 = vst [vmem:[#allocation2 + $0x133] sm:$0xff] 0.0
      %714 = vst [vmem:[#allocation2 + $0x13b] sm:$0xff] 0.0
      %715 = vst [vmem:[#allocation2 + $0x143] sm:$0x7] 0.0
      %716 = vst [vmem:[#allocation2 + $0x13] sm:$0xff] %v674
      %717 = vst [vmem:[#allocation2 + $0x1b] sm:$0xff] %v675
      %718 = vst [vmem:[#allocation2 + $0x23] sm:$0xff] %v676
      %719 = vst [vmem:[#allocation2 + $0x2b] sm:$0xff] %v677
      %720 = vst [vmem:[#allocation2 + $0x33] sm:$0xff] %v678
      %721 = vst [vmem:[#allocation2 + $0x3b] sm:$0xff] %v679
      %722 = vst [vmem:[#allocation2 + $0x43] sm:$0xff] %v680
      %723 = vst [vmem:[#allocation2 + $0x4b] sm:$0xff] %v681
      %724 = vst [vmem:[#allocation2 + $0x53] sm:$0xff] %v682
      %725 = vst [vmem:[#allocation2 + $0x5b] sm:$0xff] %v683
      %726 = vst [vmem:[#allocation2 + $0x63] sm:$0xff] %v684
      %727 = vst [vmem:[#allocation2 + $0x6b] sm:$0xff] %v685
      %728 = vst [vmem:[#allocation2 + $0x73] sm:$0xff] %v686
      %729 = vst [vmem:[#allocation2 + $0x7b] sm:$0xff] %v687
      %730 = vst [vmem:[#allocation2 + $0x83] sm:$0xff] %v688
      %731 = vst [vmem:[#allocation2 + $0x8b] sm:$0xff] %v689
      %732 = vst [vmem:[#allocation2 + $0x93] sm:$0xff] %v690
      %733 = vst [vmem:[#allocation2 + $0x9b] sm:$0xff] %v691
      %734 = vst [vmem:[#allocation2 + $0xa3] sm:$0xff] %v692
      %735 = vst [vmem:[#allocation2 + $0xab] sm:$0xff] %v693
      %736 = vst [vmem:[#allocation2 + $0xb3] sm:$0xff] %v694
      %737 = vst [vmem:[#allocation2 + $0xbb] sm:$0xff] %v695
      %738 = vst [vmem:[#allocation2 + $0xc3] sm:$0xff] %v696
      %739 = vst [vmem:[#allocation2 + $0xcb] sm:$0xff] %v697
      %740 = vst [vmem:[#allocation2 + $0xd3] sm:$0xff] %v698
      %741 = vst [vmem:[#allocation2 + $0xdb] sm:$0xff] %v699
      %742 = vst [vmem:[#allocation2 + $0xe3] sm:$0xff] %v700
      %743 = vst [vmem:[#allocation2 + $0xeb] sm:$0xff] %v701
      %744 = vst [vmem:[#allocation2 + $0xf3] sm:$0xff] %v702
      %745 = vst [vmem:[#allocation2 + $0xfb] sm:$0xff] %v703
      %746 = vst [vmem:[#allocation2 + $0x103] sm:$0xff] %v704
      %747 = vst [vmem:[#allocation2 + $0x10b] sm:$0xff] %v705
      %748 = vst [vmem:[#allocation2 + $0x113] sm:$0xff] %v706
      %749 = vst [vmem:[#allocation2 + $0x11b] sm:$0xff] %v707
      %750 = vst [vmem:[#allocation2 + $0x123] sm:$0xff] %v708
      %751 = vst [vmem:[#allocation2 + $0x12b] sm:$0xff] %v709
      %v752 = vld [vmem:[#allocation2] sm:$0xff]
      %v753 = vld [vmem:[#allocation2 + $0x8] sm:$0xff]
      %v754 = vld [vmem:[#allocation2 + $0x10] sm:$0xff]
      %v755 = vld [vmem:[#allocation2 + $0x18] sm:$0xff]
      %v756 = vld [vmem:[#allocation2 + $0x20] sm:$0xff]
      %v757 = vld [vmem:[#allocation2 + $0x28] sm:$0xff]
      %v758 = vld [vmem:[#allocation2 + $0x30] sm:$0xff]
      %v759 = vld [vmem:[#allocation2 + $0x38] sm:$0xff]
      %v760 = vld [vmem:[#allocation2 + $0x40] sm:$0xff]
      %v761 = vld [vmem:[#allocation2 + $0x48] sm:$0xff]
      %v762 = vld [vmem:[#allocation2 + $0x50] sm:$0xff]
      %v763 = vld [vmem:[#allocation2 + $0x58] sm:$0xff]
      %v764 = vld [vmem:[#allocation2 + $0x60] sm:$0xff]
      %v765 = vld [vmem:[#allocation2 + $0x68] sm:$0xff]
      %v766 = vld [vmem:[#allocation2 + $0x70] sm:$0xff]
      %v767 = vld [vmem:[#allocation2 + $0x78] sm:$0xff]
      %v768 = vld [vmem:[#allocation2 + $0x80] sm:$0xff]
      %v769 = vld [vmem:[#allocation2 + $0x88] sm:$0xff]
      %v770 = vld [vmem:[#allocation2 + $0x90] sm:$0xff]
      %v771 = vld [vmem:[#allocation2 + $0x98] sm:$0xff]
      %v772 = vld [vmem:[#allocation2 + $0xa0] sm:$0xff]
      %v773 = vld [vmem:[#allocation2 + $0xa8] sm:$0xff]
      %v774 = vld [vmem:[#allocation2 + $0xb0] sm:$0xff]
      %v775 = vld [vmem:[#allocation2 + $0xb8] sm:$0xff]
      %v776 = vld [vmem:[#allocation2 + $0xc0] sm:$0xff]
      %v777 = vld [vmem:[#allocation2 + $0xc8] sm:$0xff]
      %v778 = vld [vmem:[#allocation2 + $0xd0] sm:$0xff]
      %v779 = vld [vmem:[#allocation2 + $0xd8] sm:$0xff]
      %v780 = vld [vmem:[#allocation2 + $0xe0] sm:$0xff]
      %v781 = vld [vmem:[#allocation2 + $0xe8] sm:$0xff]
      %v782 = vld [vmem:[#allocation2 + $0xf0] sm:$0xff]
      %v783 = vld [vmem:[#allocation2 + $0xf8] sm:$0xff]
      %v784 = vld [vmem:[#allocation2 + $0x100] sm:$0xff]
      %v785 = vld [vmem:[#allocation2 + $0x108] sm:$0xff]
      %v786 = vld [vmem:[#allocation2 + $0x110] sm:$0xff]
      %v787 = vld [vmem:[#allocation2 + $0x118] sm:$0xff]
      %v788 = vpack.c.bf16 %v753, %v752
      %v789 = vpack.c.bf16 %v755, %v754
      %v790 = vpack.c.bf16 %v757, %v756
      %v791 = vpack.c.bf16 %v759, %v758
      %v792 = vpack.c.bf16 %v761, %v760
      %v793 = vpack.c.bf16 %v763, %v762
      %v794 = vpack.c.bf16 %v765, %v764
      %v795 = vpack.c.bf16 %v767, %v766
      %v796 = vpack.c.bf16 %v769, %v768
      %v797 = vpack.c.bf16 %v771, %v770
      %v798 = vpack.c.bf16 %v773, %v772
      %v799 = vpack.c.bf16 %v775, %v774
      %v800 = vpack.c.bf16 %v777, %v776
      %v801 = vpack.c.bf16 %v779, %v778
      %v802 = vpack.c.bf16 %v781, %v780
      %v803 = vpack.c.bf16 %v783, %v782
      %v804 = vpack.c.bf16 %v785, %v784
      %v805 = vpack.c.bf16 %v787, %v786
      %806 = vst [vmem:[#allocation3] sm:$0xff] %v788
      %807 = vst [vmem:[#allocation3 + $0x48] sm:$0xff] %v789
      %808 = vst [vmem:[#allocation3 + $0x90] sm:$0xff] %v790
      %809 = vst [vmem:[#allocation3 + $0xd8] sm:$0xff] %v791
      %810 = vst [vmem:[#allocation3 + $0x120] sm:$0xff] %v792
      %811 = vst [vmem:[#allocation3 + $0x168] sm:$0xff] %v793
      %812 = vst [vmem:[#allocation3 + $0x1b0] sm:$0xff] %v794
      %813 = vst [vmem:[#allocation3 + $0x1f8] sm:$0xff] %v795
      %814 = vst [vmem:[#allocation3 + $0x240] sm:$0xff] %v796
      %815 = vst [vmem:[#allocation3 + $0x288] sm:$0xff] %v797
      %816 = vst [vmem:[#allocation3 + $0x2d0] sm:$0xff] %v798
      %817 = vst [vmem:[#allocation3 + $0x318] sm:$0xff] %v799
      %818 = vst [vmem:[#allocation3 + $0x360] sm:$0xff] %v800
      %819 = vst [vmem:[#allocation3 + $0x3a8] sm:$0xff] %v801
      %820 = vst [vmem:[#allocation3 + $0x3f0] sm:$0xff] %v802
      %821 = vst [vmem:[#allocation3 + $0x438] sm:$0xff] %v803
      %822 = vst [vmem:[#allocation3 + $0x480] sm:$0xff] %v804
      %823 = vst [vmem:[#allocation3 + $0x4c8] sm:$0xff] %v805
      %v824 = vld [vmem:[#allocation2 + $0x1] sm:$0xff]
      %v825 = vld [vmem:[#allocation2 + $0x9] sm:$0xff]
      %v826 = vld [vmem:[#allocation2 + $0x11] sm:$0xff]
      %v827 = vld [vmem:[#allocation2 + $0x19] sm:$0xff]
      %v828 = vld [vmem:[#allocation2 + $0x21] sm:$0xff]
      %v829 = vld [vmem:[#allocation2 + $0x29] sm:$0xff]
      %v830 = vld [vmem:[#allocation2 + $0x31] sm:$0xff]
      %v831 = vld [vmem:[#allocation2 + $0x39] sm:$0xff]
      %v832 = vld [vmem:[#allocation2 + $0x41] sm:$0xff]
      %v833 = vld [vmem:[#allocation2 + $0x49] sm:$0xff]
      %v834 = vld [vmem:[#allocation2 + $0x51] sm:$0xff]
      %v835 = vld [vmem:[#allocation2 + $0x59] sm:$0xff]
      %v836 = vld [vmem:[#allocation2 + $0x61] sm:$0xff]
      %v837 = vld [vmem:[#allocation2 + $0x69] sm:$0xff]
      %v838 = vld [vmem:[#allocation2 + $0x71] sm:$0xff]
      %v839 = vld [vmem:[#allocation2 + $0x79] sm:$0xff]
      %v840 = vld [vmem:[#allocation2 + $0x81] sm:$0xff]
      %v841 = vld [vmem:[#allocation2 + $0x89] sm:$0xff]
      %v842 = vld [vmem:[#allocation2 + $0x91] sm:$0xff]
      %v843 = vld [vmem:[#allocation2 + $0x99] sm:$0xff]
      %v844 = vld [vmem:[#allocation2 + $0xa1] sm:$0xff]
      %v845 = vld [vmem:[#allocation2 + $0xa9] sm:$0xff]
      %v846 = vld [vmem:[#allocation2 + $0xb1] sm:$0xff]
      %v847 = vld [vmem:[#allocation2 + $0xb9] sm:$0xff]
      %v848 = vld [vmem:[#allocation2 + $0xc1] sm:$0xff]
      %v849 = vld [vmem:[#allocation2 + $0xc9] sm:$0xff]
      %v850 = vld [vmem:[#allocation2 + $0xd1] sm:$0xff]
      %v851 = vld [vmem:[#allocation2 + $0xd9] sm:$0xff]
      %v852 = vld [vmem:[#allocation2 + $0xe1] sm:$0xff]
      %v853 = vld [vmem:[#allocation2 + $0xe9] sm:$0xff]
      %v854 = vld [vmem:[#allocation2 + $0xf1] sm:$0xff]
      %v855 = vld [vmem:[#allocation2 + $0xf9] sm:$0xff]
      %v856 = vld [vmem:[#allocation2 + $0x101] sm:$0xff]
      %v857 = vld [vmem:[#allocation2 + $0x109] sm:$0xff]
      %v858 = vld [vmem:[#allocation2 + $0x111] sm:$0xff]
      %v859 = vld [vmem:[#allocation2 + $0x119] sm:$0xff]
      %v860 = vpack.c.bf16 %v825, %v824
      %v861 = vpack.c.bf16 %v827, %v826
      %v862 = vpack.c.bf16 %v829, %v828
      %v863 = vpack.c.bf16 %v831, %v830
      %v864 = vpack.c.bf16 %v833, %v832
      %v865 = vpack.c.bf16 %v835, %v834
      %v866 = vpack.c.bf16 %v837, %v836
      %v867 = vpack.c.bf16 %v839, %v838
      %v868 = vpack.c.bf16 %v841, %v840
      %v869 = vpack.c.bf16 %v843, %v842
      %v870 = vpack.c.bf16 %v845, %v844
      %v871 = vpack.c.bf16 %v847, %v846
      %v872 = vpack.c.bf16 %v849, %v848
      %v873 = vpack.c.bf16 %v851, %v850
      %v874 = vpack.c.bf16 %v853, %v852
      %v875 = vpack.c.bf16 %v855, %v854
      %v876 = vpack.c.bf16 %v857, %v856
      %v877 = vpack.c.bf16 %v859, %v858
      %878 = vst [vmem:[#allocation3 + $0x8] sm:$0xff] %v860
      %879 = vst [vmem:[#allocation3 + $0x50] sm:$0xff] %v861
      %880 = vst [vmem:[#allocation3 + $0x98] sm:$0xff] %v862
      %881 = vst [vmem:[#allocation3 + $0xe0] sm:$0xff] %v863
      %882 = vst [vmem:[#allocation3 + $0x128] sm:$0xff] %v864
      %883 = vst [vmem:[#allocation3 + $0x170] sm:$0xff] %v865
      %884 = vst [vmem:[#allocation3 + $0x1b8] sm:$0xff] %v866
      %885 = vst [vmem:[#allocation3 + $0x200] sm:$0xff] %v867
      %886 = vst [vmem:[#allocation3 + $0x248] sm:$0xff] %v868
      %887 = vst [vmem:[#allocation3 + $0x290] sm:$0xff] %v869
      %888 = vst [vmem:[#allocation3 + $0x2d8] sm:$0xff] %v870
      %889 = vst [vmem:[#allocation3 + $0x320] sm:$0xff] %v871
      %890 = vst [vmem:[#allocation3 + $0x368] sm:$0xff] %v872
      %891 = vst [vmem:[#allocation3 + $0x3b0] sm:$0xff] %v873
      %892 = vst [vmem:[#allocation3 + $0x3f8] sm:$0xff] %v874
      %893 = vst [vmem:[#allocation3 + $0x440] sm:$0xff] %v875
      %894 = vst [vmem:[#allocation3 + $0x488] sm:$0xff] %v876
      %895 = vst [vmem:[#allocation3 + $0x4d0] sm:$0xff] %v877
      %v896 = vld [vmem:[#allocation2 + $0x2] sm:$0xff]
      %v897 = vld [vmem:[#allocation2 + $0xa] sm:$0xff]
      %v898 = vld [vmem:[#allocation2 + $0x12] sm:$0xff]
      %v899 = vld [vmem:[#allocation2 + $0x1a] sm:$0xff]
      %v900 = vld [vmem:[#allocation2 + $0x22] sm:$0xff]
      %v901 = vld [vmem:[#allocation2 + $0x2a] sm:$0xff]
      %v902 = vld [vmem:[#allocation2 + $0x32] sm:$0xff]
      %v903 = vld [vmem:[#allocation2 + $0x3a] sm:$0xff]
      %v904 = vld [vmem:[#allocation2 + $0x42] sm:$0xff]
      %v905 = vld [vmem:[#allocation2 + $0x4a] sm:$0xff]
      %v906 = vld [vmem:[#allocation2 + $0x52] sm:$0xff]
      %v907 = vld [vmem:[#allocation2 + $0x5a] sm:$0xff]
      %v908 = vld [vmem:[#allocation2 + $0x62] sm:$0xff]
      %v909 = vld [vmem:[#allocation2 + $0x6a] sm:$0xff]
      %v910 = vld [vmem:[#allocation2 + $0x72] sm:$0xff]
      %v911 = vld [vmem:[#allocation2 + $0x7a] sm:$0xff]
      %v912 = vld [vmem:[#allocation2 + $0x82] sm:$0xff]
      %v913 = vld [vmem:[#allocation2 + $0x8a] sm:$0xff]
      %v914 = vld [vmem:[#allocation2 + $0x92] sm:$0xff]
      %v915 = vld [vmem:[#allocation2 + $0x9a] sm:$0xff]
      %v916 = vld [vmem:[#allocation2 + $0xa2] sm:$0xff]
      %v917 = vld [vmem:[#allocation2 + $0xaa] sm:$0xff]
      %v918 = vld [vmem:[#allocation2 + $0xb2] sm:$0xff]
      %v919 = vld [vmem:[#allocation2 + $0xba] sm:$0xff]
      %v920 = vld [vmem:[#allocation2 + $0xc2] sm:$0xff]
      %v921 = vld [vmem:[#allocation2 + $0xca] sm:$0xff]
      %v922 = vld [vmem:[#allocation2 + $0xd2] sm:$0xff]
      %v923 = vld [vmem:[#allocation2 + $0xda] sm:$0xff]
      %v924 = vld [vmem:[#allocation2 + $0xe2] sm:$0xff]
      %v925 = vld [vmem:[#allocation2 + $0xea] sm:$0xff]
      %v926 = vld [vmem:[#allocation2 + $0xf2] sm:$0xff]
      %v927 = vld [vmem:[#allocation2 + $0xfa] sm:$0xff]
      %v928 = vld [vmem:[#allocation2 + $0x102] sm:$0xff]
      %v929 = vld [vmem:[#allocation2 + $0x10a] sm:$0xff]
      %v930 = vld [vmem:[#allocation2 + $0x112] sm:$0xff]
      %v931 = vld [vmem:[#allocation2 + $0x11a] sm:$0xff]
      %v932 = vpack.c.bf16 %v897, %v896
      %v933 = vpack.c.bf16 %v899, %v898
      %v934 = vpack.c.bf16 %v901, %v900
      %v935 = vpack.c.bf16 %v903, %v902
      %v936 = vpack.c.bf16 %v905, %v904
      %v937 = vpack.c.bf16 %v907, %v906
      %v938 = vpack.c.bf16 %v909, %v908
      %v939 = vpack.c.bf16 %v911, %v910
      %v940 = vpack.c.bf16 %v913, %v912
      %v941 = vpack.c.bf16 %v915, %v914
      %v942 = vpack.c.bf16 %v917, %v916
      %v943 = vpack.c.bf16 %v919, %v918
      %v944 = vpack.c.bf16 %v921, %v920
      %v945 = vpack.c.bf16 %v923, %v922
      %v946 = vpack.c.bf16 %v925, %v924
      %v947 = vpack.c.bf16 %v927, %v926
      %v948 = vpack.c.bf16 %v929, %v928
      %v949 = vpack.c.bf16 %v931, %v930
      %950 = vst [vmem:[#allocation3 + $0x10] sm:$0xff] %v932
      %951 = vst [vmem:[#allocation3 + $0x58] sm:$0xff] %v933
      %952 = vst [vmem:[#allocation3 + $0xa0] sm:$0xff] %v934
      %953 = vst [vmem:[#allocation3 + $0xe8] sm:$0xff] %v935
      %954 = vst [vmem:[#allocation3 + $0x130] sm:$0xff] %v936
      %955 = vst [vmem:[#allocation3 + $0x178] sm:$0xff] %v937
      %956 = vst [vmem:[#allocation3 + $0x1c0] sm:$0xff] %v938
      %957 = vst [vmem:[#allocation3 + $0x208] sm:$0xff] %v939
      %958 = vst [vmem:[#allocation3 + $0x250] sm:$0xff] %v940
      %959 = vst [vmem:[#allocation3 + $0x298] sm:$0xff] %v941
      %960 = vst [vmem:[#allocation3 + $0x2e0] sm:$0xff] %v942
      %961 = vst [vmem:[#allocation3 + $0x328] sm:$0xff] %v943
      %962 = vst [vmem:[#allocation3 + $0x370] sm:$0xff] %v944
      %963 = vst [vmem:[#allocation3 + $0x3b8] sm:$0xff] %v945
      %964 = vst [vmem:[#allocation3 + $0x400] sm:$0xff] %v946
      %965 = vst [vmem:[#allocation3 + $0x448] sm:$0xff] %v947
      %966 = vst [vmem:[#allocation3 + $0x490] sm:$0xff] %v948
      %967 = vst [vmem:[#allocation3 + $0x4d8] sm:$0xff] %v949
      %v968 = vld [vmem:[#allocation2 + $0x12] sm:$0xff]
      %v969 = vld [vmem:[#allocation2 + $0x1a] sm:$0xff]
      %v970 = vld [vmem:[#allocation2 + $0x22] sm:$0xff]
      %v971 = vld [vmem:[#allocation2 + $0x2a] sm:$0xff]
      %v972 = vld [vmem:[#allocation2 + $0x32] sm:$0xff]
      %v973 = vld [vmem:[#allocation2 + $0x3a] sm:$0xff]
      %v974 = vld [vmem:[#allocation2 + $0x42] sm:$0xff]
      %v975 = vld [vmem:[#allocation2 + $0x4a] sm:$0xff]
      %v976 = vld [vmem:[#allocation2 + $0x52] sm:$0xff]
      %v977 = vld [vmem:[#allocation2 + $0x5a] sm:$0xff]
      %v978 = vld [vmem:[#allocation2 + $0x62] sm:$0xff]
      %v979 = vld [vmem:[#allocation2 + $0x6a] sm:$0xff]
      %v980 = vld [vmem:[#allocation2 + $0x72] sm:$0xff]
      %v981 = vld [vmem:[#allocation2 + $0x7a] sm:$0xff]
      %v982 = vld [vmem:[#allocation2 + $0x82] sm:$0xff]
      %v983 = vld [vmem:[#allocation2 + $0x8a] sm:$0xff]
      %v984 = vld [vmem:[#allocation2 + $0x92] sm:$0xff]
      %v985 = vld [vmem:[#allocation2 + $0x9a] sm:$0xff]
      %v986 = vld [vmem:[#allocation2 + $0xa2] sm:$0xff]
      %v987 = vld [vmem:[#allocation2 + $0xaa] sm:$0xff]
      %v988 = vld [vmem:[#allocation2 + $0xb2] sm:$0xff]
      %v989 = vld [vmem:[#allocation2 + $0xba] sm:$0xff]
      %v990 = vld [vmem:[#allocation2 + $0xc2] sm:$0xff]
      %v991 = vld [vmem:[#allocation2 + $0xca] sm:$0xff]
      %v992 = vld [vmem:[#allocation2 + $0xd2] sm:$0xff]
      %v993 = vld [vmem:[#allocation2 + $0xda] sm:$0xff]
      %v994 = vld [vmem:[#allocation2 + $0xe2] sm:$0xff]
      %v995 = vld [vmem:[#allocation2 + $0xea] sm:$0xff]
      %v996 = vld [vmem:[#allocation2 + $0xf2] sm:$0xff]
      %v997 = vld [vmem:[#allocation2 + $0xfa] sm:$0xff]
      %v998 = vld [vmem:[#allocation2 + $0x102] sm:$0xff]
      %v999 = vld [vmem:[#allocation2 + $0x10a] sm:$0xff]
      %v1000 = vld [vmem:[#allocation2 + $0x112] sm:$0xff]
      %v1001 = vld [vmem:[#allocation2 + $0x11a] sm:$0xff]
      %v1002 = vld [vmem:[#allocation2 + $0x122] sm:$0xff]
      %v1003 = vld [vmem:[#allocation2 + $0x12a] sm:$0xff]
      %v1004 = vpack.c.bf16 %v969, %v968
      %v1005 = vpack.c.bf16 %v971, %v970
      %v1006 = vpack.c.bf16 %v973, %v972
      %v1007 = vpack.c.bf16 %v975, %v974
      %v1008 = vpack.c.bf16 %v977, %v976
      %v1009 = vpack.c.bf16 %v979, %v978
      %v1010 = vpack.c.bf16 %v981, %v980
      %v1011 = vpack.c.bf16 %v983, %v982
      %v1012 = vpack.c.bf16 %v985, %v984
      %v1013 = vpack.c.bf16 %v987, %v986
      %v1014 = vpack.c.bf16 %v989, %v988
      %v1015 = vpack.c.bf16 %v991, %v990
      %v1016 = vpack.c.bf16 %v993, %v992
      %v1017 = vpack.c.bf16 %v995, %v994
      %v1018 = vpack.c.bf16 %v997, %v996
      %v1019 = vpack.c.bf16 %v999, %v998
      %v1020 = vpack.c.bf16 %v1001, %v1000
      %v1021 = vpack.c.bf16 %v1003, %v1002
      %1022 = vst [vmem:[#allocation3 + $0x18] sm:$0xff] %v1004
      %1023 = vst [vmem:[#allocation3 + $0x60] sm:$0xff] %v1005
      %1024 = vst [vmem:[#allocation3 + $0xa8] sm:$0xff] %v1006
      %1025 = vst [vmem:[#allocation3 + $0xf0] sm:$0xff] %v1007
      %1026 = vst [vmem:[#allocation3 + $0x138] sm:$0xff] %v1008
      %1027 = vst [vmem:[#allocation3 + $0x180] sm:$0xff] %v1009
      %1028 = vst [vmem:[#allocation3 + $0x1c8] sm:$0xff] %v1010
      %1029 = vst [vmem:[#allocation3 + $0x210] sm:$0xff] %v1011
      %1030 = vst [vmem:[#allocation3 + $0x258] sm:$0xff] %v1012
      %1031 = vst [vmem:[#allocation3 + $0x2a0] sm:$0xff] %v1013
      %1032 = vst [vmem:[#allocation3 + $0x2e8] sm:$0xff] %v1014
      %1033 = vst [vmem:[#allocation3 + $0x330] sm:$0xff] %v1015
      %1034 = vst [vmem:[#allocation3 + $0x378] sm:$0xff] %v1016
      %1035 = vst [vmem:[#allocation3 + $0x3c0] sm:$0xff] %v1017
      %1036 = vst [vmem:[#allocation3 + $0x408] sm:$0xff] %v1018
      %1037 = vst [vmem:[#allocation3 + $0x450] sm:$0xff] %v1019
      %1038 = vst [vmem:[#allocation3 + $0x498] sm:$0xff] %v1020
      %1039 = vst [vmem:[#allocation3 + $0x4e0] sm:$0xff] %v1021
      %v1040 = vld [vmem:[#allocation2 + $0x13] sm:$0xff]
      %v1041 = vld [vmem:[#allocation2 + $0x1b] sm:$0xff]
      %v1042 = vld [vmem:[#allocation2 + $0x23] sm:$0xff]
      %v1043 = vld [vmem:[#allocation2 + $0x2b] sm:$0xff]
      %v1044 = vld [vmem:[#allocation2 + $0x33] sm:$0xff]
      %v1045 = vld [vmem:[#allocation2 + $0x3b] sm:$0xff]
      %v1046 = vld [vmem:[#allocation2 + $0x43] sm:$0xff]
      %v1047 = vld [vmem:[#allocation2 + $0x4b] sm:$0xff]
      %v1048 = vld [vmem:[#allocation2 + $0x53] sm:$0xff]
      %v1049 = vld [vmem:[#allocation2 + $0x5b] sm:$0xff]
      %v1050 = vld [vmem:[#allocation2 + $0x63] sm:$0xff]
      %v1051 = vld [vmem:[#allocation2 + $0x6b] sm:$0xff]
      %v1052 = vld [vmem:[#allocation2 + $0x73] sm:$0xff]
      %v1053 = vld [vmem:[#allocation2 + $0x7b] sm:$0xff]
      %v1054 = vld [vmem:[#allocation2 + $0x83] sm:$0xff]
      %v1055 = vld [vmem:[#allocation2 + $0x8b] sm:$0xff]
      %v1056 = vld [vmem:[#allocation2 + $0x93] sm:$0xff]
      %v1057 = vld [vmem:[#allocation2 + $0x9b] sm:$0xff]
      %v1058 = vld [vmem:[#allocation2 + $0xa3] sm:$0xff]
      %v1059 = vld [vmem:[#allocation2 + $0xab] sm:$0xff]
      %v1060 = vld [vmem:[#allocation2 + $0xb3] sm:$0xff]
      %v1061 = vld [vmem:[#allocation2 + $0xbb] sm:$0xff]
      %v1062 = vld [vmem:[#allocation2 + $0xc3] sm:$0xff]
      %v1063 = vld [vmem:[#allocation2 + $0xcb] sm:$0xff]
      %v1064 = vld [vmem:[#allocation2 + $0xd3] sm:$0xff]
      %v1065 = vld [vmem:[#allocation2 + $0xdb] sm:$0xff]
      %v1066 = vld [vmem:[#allocation2 + $0xe3] sm:$0xff]
      %v1067 = vld [vmem:[#allocation2 + $0xeb] sm:$0xff]
      %v1068 = vld [vmem:[#allocation2 + $0xf3] sm:$0xff]
      %v1069 = vld [vmem:[#allocation2 + $0xfb] sm:$0xff]
      %v1070 = vld [vmem:[#allocation2 + $0x103] sm:$0xff]
      %v1071 = vld [vmem:[#allocation2 + $0x10b] sm:$0xff]
      %v1072 = vld [vmem:[#allocation2 + $0x113] sm:$0xff]
      %v1073 = vld [vmem:[#allocation2 + $0x11b] sm:$0xff]
      %v1074 = vld [vmem:[#allocation2 + $0x123] sm:$0xff]
      %v1075 = vld [vmem:[#allocation2 + $0x12b] sm:$0xff]
      %v1076 = vpack.c.bf16 %v1041, %v1040
      %v1077 = vpack.c.bf16 %v1043, %v1042
      %v1078 = vpack.c.bf16 %v1045, %v1044
      %v1079 = vpack.c.bf16 %v1047, %v1046
      %v1080 = vpack.c.bf16 %v1049, %v1048
      %v1081 = vpack.c.bf16 %v1051, %v1050
      %v1082 = vpack.c.bf16 %v1053, %v1052
      %v1083 = vpack.c.bf16 %v1055, %v1054
      %v1084 = vpack.c.bf16 %v1057, %v1056
      %v1085 = vpack.c.bf16 %v1059, %v1058
      %v1086 = vpack.c.bf16 %v1061, %v1060
      %v1087 = vpack.c.bf16 %v1063, %v1062
      %v1088 = vpack.c.bf16 %v1065, %v1064
      %v1089 = vpack.c.bf16 %v1067, %v1066
      %v1090 = vpack.c.bf16 %v1069, %v1068
      %v1091 = vpack.c.bf16 %v1071, %v1070
      %v1092 = vpack.c.bf16 %v1073, %v1072
      %v1093 = vpack.c.bf16 %v1075, %v1074
      %1094 = vst [vmem:[#allocation3 + $0x20] sm:$0xff] %v1076
      %1095 = vst [vmem:[#allocation3 + $0x68] sm:$0xff] %v1077
      %1096 = vst [vmem:[#allocation3 + $0xb0] sm:$0xff] %v1078
      %1097 = vst [vmem:[#allocation3 + $0xf8] sm:$0xff] %v1079
      %1098 = vst [vmem:[#allocation3 + $0x140] sm:$0xff] %v1080
      %1099 = vst [vmem:[#allocation3 + $0x188] sm:$0xff] %v1081
      %1100 = vst [vmem:[#allocation3 + $0x1d0] sm:$0xff] %v1082
      %1101 = vst [vmem:[#allocation3 + $0x218] sm:$0xff] %v1083
      %1102 = vst [vmem:[#allocation3 + $0x260] sm:$0xff] %v1084
      %1103 = vst [vmem:[#allocation3 + $0x2a8] sm:$0xff] %v1085
      %1104 = vst [vmem:[#allocation3 + $0x2f0] sm:$0xff] %v1086
      %1105 = vst [vmem:[#allocation3 + $0x338] sm:$0xff] %v1087
      %1106 = vst [vmem:[#allocation3 + $0x380] sm:$0xff] %v1088
      %1107 = vst [vmem:[#allocation3 + $0x3c8] sm:$0xff] %v1089
      %1108 = vst [vmem:[#allocation3 + $0x410] sm:$0xff] %v1090
      %1109 = vst [vmem:[#allocation3 + $0x458] sm:$0xff] %v1091
      %1110 = vst [vmem:[#allocation3 + $0x4a0] sm:$0xff] %v1092
      %1111 = vst [vmem:[#allocation3 + $0x4e8] sm:$0xff] %v1093
      %v1112 = vld [vmem:[#allocation2 + $0x14] sm:$0xff]
      %v1113 = vld [vmem:[#allocation2 + $0x1c] sm:$0xff]
      %v1114 = vld [vmem:[#allocation2 + $0x24] sm:$0xff]
      %v1115 = vld [vmem:[#allocation2 + $0x2c] sm:$0xff]
      %v1116 = vld [vmem:[#allocation2 + $0x34] sm:$0xff]
      %v1117 = vld [vmem:[#allocation2 + $0x3c] sm:$0xff]
      %v1118 = vld [vmem:[#allocation2 + $0x44] sm:$0xff]
      %v1119 = vld [vmem:[#allocation2 + $0x4c] sm:$0xff]
      %v1120 = vld [vmem:[#allocation2 + $0x54] sm:$0xff]
      %v1121 = vld [vmem:[#allocation2 + $0x5c] sm:$0xff]
      %v1122 = vld [vmem:[#allocation2 + $0x64] sm:$0xff]
      %v1123 = vld [vmem:[#allocation2 + $0x6c] sm:$0xff]
      %v1124 = vld [vmem:[#allocation2 + $0x74] sm:$0xff]
      %v1125 = vld [vmem:[#allocation2 + $0x7c] sm:$0xff]
      %v1126 = vld [vmem:[#allocation2 + $0x84] sm:$0xff]
      %v1127 = vld [vmem:[#allocation2 + $0x8c] sm:$0xff]
      %v1128 = vld [vmem:[#allocation2 + $0x94] sm:$0xff]
      %v1129 = vld [vmem:[#allocation2 + $0x9c] sm:$0xff]
      %v1130 = vld [vmem:[#allocation2 + $0xa4] sm:$0xff]
      %v1131 = vld [vmem:[#allocation2 + $0xac] sm:$0xff]
      %v1132 = vld [vmem:[#allocation2 + $0xb4] sm:$0xff]
      %v1133 = vld [vmem:[#allocation2 + $0xbc] sm:$0xff]
      %v1134 = vld [vmem:[#allocation2 + $0xc4] sm:$0xff]
      %v1135 = vld [vmem:[#allocation2 + $0xcc] sm:$0xff]
      %v1136 = vld [vmem:[#allocation2 + $0xd4] sm:$0xff]
      %v1137 = vld [vmem:[#allocation2 + $0xdc] sm:$0xff]
      %v1138 = vld [vmem:[#allocation2 + $0xe4] sm:$0xff]
      %v1139 = vld [vmem:[#allocation2 + $0xec] sm:$0xff]
      %v1140 = vld [vmem:[#allocation2 + $0xf4] sm:$0xff]
      %v1141 = vld [vmem:[#allocation2 + $0xfc] sm:$0xff]
      %v1142 = vld [vmem:[#allocation2 + $0x104] sm:$0xff]
      %v1143 = vld [vmem:[#allocation2 + $0x10c] sm:$0xff]
      %v1144 = vld [vmem:[#allocation2 + $0x114] sm:$0xff]
      %v1145 = vld [vmem:[#allocation2 + $0x11c] sm:$0xff]
      %v1146 = vld [vmem:[#allocation2 + $0x124] sm:$0xff]
      %v1147 = vld [vmem:[#allocation2 + $0x12c] sm:$0xff]
      %v1148 = vpack.c.bf16 %v1113, %v1112
      %v1149 = vpack.c.bf16 %v1115, %v1114
      %v1150 = vpack.c.bf16 %v1117, %v1116
      %v1151 = vpack.c.bf16 %v1119, %v1118
      %v1152 = vpack.c.bf16 %v1121, %v1120
      %v1153 = vpack.c.bf16 %v1123, %v1122
      %v1154 = vpack.c.bf16 %v1125, %v1124
      %v1155 = vpack.c.bf16 %v1127, %v1126
      %v1156 = vpack.c.bf16 %v1129, %v1128
      %v1157 = vpack.c.bf16 %v1131, %v1130
      %v1158 = vpack.c.bf16 %v1133, %v1132
      %v1159 = vpack.c.bf16 %v1135, %v1134
      %v1160 = vpack.c.bf16 %v1137, %v1136
      %v1161 = vpack.c.bf16 %v1139, %v1138
      %v1162 = vpack.c.bf16 %v1141, %v1140
      %v1163 = vpack.c.bf16 %v1143, %v1142
      %v1164 = vpack.c.bf16 %v1145, %v1144
      %v1165 = vpack.c.bf16 %v1147, %v1146
      %1166 = vst [vmem:[#allocation3 + $0x28] sm:$0xff] %v1148
      %1167 = vst [vmem:[#allocation3 + $0x70] sm:$0xff] %v1149
      %1168 = vst [vmem:[#allocation3 + $0xb8] sm:$0xff] %v1150
      %1169 = vst [vmem:[#allocation3 + $0x100] sm:$0xff] %v1151
      %1170 = vst [vmem:[#allocation3 + $0x148] sm:$0xff] %v1152
      %1171 = vst [vmem:[#allocation3 + $0x190] sm:$0xff] %v1153
      %1172 = vst [vmem:[#allocation3 + $0x1d8] sm:$0xff] %v1154
      %1173 = vst [vmem:[#allocation3 + $0x220] sm:$0xff] %v1155
      %1174 = vst [vmem:[#allocation3 + $0x268] sm:$0xff] %v1156
      %1175 = vst [vmem:[#allocation3 + $0x2b0] sm:$0xff] %v1157
      %1176 = vst [vmem:[#allocation3 + $0x2f8] sm:$0xff] %v1158
      %1177 = vst [vmem:[#allocation3 + $0x340] sm:$0xff] %v1159
      %1178 = vst [vmem:[#allocation3 + $0x388] sm:$0xff] %v1160
      %1179 = vst [vmem:[#allocation3 + $0x3d0] sm:$0xff] %v1161
      %1180 = vst [vmem:[#allocation3 + $0x418] sm:$0xff] %v1162
      %1181 = vst [vmem:[#allocation3 + $0x460] sm:$0xff] %v1163
      %1182 = vst [vmem:[#allocation3 + $0x4a8] sm:$0xff] %v1164
      %1183 = vst [vmem:[#allocation3 + $0x4f0] sm:$0xff] %v1165
      %v1184 = vld [vmem:[#allocation2 + $0x24] sm:$0xff]
      %v1185 = vld [vmem:[#allocation2 + $0x2c] sm:$0xff]
      %v1186 = vld [vmem:[#allocation2 + $0x34] sm:$0xff]
      %v1187 = vld [vmem:[#allocation2 + $0x3c] sm:$0xff]
      %v1188 = vld [vmem:[#allocation2 + $0x44] sm:$0xff]
      %v1189 = vld [vmem:[#allocation2 + $0x4c] sm:$0xff]
      %v1190 = vld [vmem:[#allocation2 + $0x54] sm:$0xff]
      %v1191 = vld [vmem:[#allocation2 + $0x5c] sm:$0xff]
      %v1192 = vld [vmem:[#allocation2 + $0x64] sm:$0xff]
      %v1193 = vld [vmem:[#allocation2 + $0x6c] sm:$0xff]
      %v1194 = vld [vmem:[#allocation2 + $0x74] sm:$0xff]
      %v1195 = vld [vmem:[#allocation2 + $0x7c] sm:$0xff]
      %v1196 = vld [vmem:[#allocation2 + $0x84] sm:$0xff]
      %v1197 = vld [vmem:[#allocation2 + $0x8c] sm:$0xff]
      %v1198 = vld [vmem:[#allocation2 + $0x94] sm:$0xff]
      %v1199 = vld [vmem:[#allocation2 + $0x9c] sm:$0xff]
      %v1200 = vld [vmem:[#allocation2 + $0xa4] sm:$0xff]
      %v1201 = vld [vmem:[#allocation2 + $0xac] sm:$0xff]
      %v1202 = vld [vmem:[#allocation2 + $0xb4] sm:$0xff]
      %v1203 = vld [vmem:[#allocation2 + $0xbc] sm:$0xff]
      %v1204 = vld [vmem:[#allocation2 + $0xc4] sm:$0xff]
      %v1205 = vld [vmem:[#allocation2 + $0xcc] sm:$0xff]
      %v1206 = vld [vmem:[#allocation2 + $0xd4] sm:$0xff]
      %v1207 = vld [vmem:[#allocation2 + $0xdc] sm:$0xff]
      %v1208 = vld [vmem:[#allocation2 + $0xe4] sm:$0xff]
      %v1209 = vld [vmem:[#allocation2 + $0xec] sm:$0xff]
      %v1210 = vld [vmem:[#allocation2 + $0xf4] sm:$0xff]
      %v1211 = vld [vmem:[#allocation2 + $0xfc] sm:$0xff]
      %v1212 = vld [vmem:[#allocation2 + $0x104] sm:$0xff]
      %v1213 = vld [vmem:[#allocation2 + $0x10c] sm:$0xff]
      %v1214 = vld [vmem:[#allocation2 + $0x114] sm:$0xff]
      %v1215 = vld [vmem:[#allocation2 + $0x11c] sm:$0xff]
      %v1216 = vld [vmem:[#allocation2 + $0x124] sm:$0xff]
      %v1217 = vld [vmem:[#allocation2 + $0x12c] sm:$0xff]
      %v1218 = vld [vmem:[#allocation2 + $0x134] sm:$0xff]
      %v1219 = vld [vmem:[#allocation2 + $0x13c] sm:$0xff]
      %v1220 = vpack.c.bf16 %v1185, %v1184
      %v1221 = vpack.c.bf16 %v1187, %v1186
      %v1222 = vpack.c.bf16 %v1189, %v1188
      %v1223 = vpack.c.bf16 %v1191, %v1190
      %v1224 = vpack.c.bf16 %v1193, %v1192
      %v1225 = vpack.c.bf16 %v1195, %v1194
      %v1226 = vpack.c.bf16 %v1197, %v1196
      %v1227 = vpack.c.bf16 %v1199, %v1198
      %v1228 = vpack.c.bf16 %v1201, %v1200
      %v1229 = vpack.c.bf16 %v1203, %v1202
      %v1230 = vpack.c.bf16 %v1205, %v1204
      %v1231 = vpack.c.bf16 %v1207, %v1206
      %v1232 = vpack.c.bf16 %v1209, %v1208
      %v1233 = vpack.c.bf16 %v1211, %v1210
      %v1234 = vpack.c.bf16 %v1213, %v1212
      %v1235 = vpack.c.bf16 %v1215, %v1214
      %v1236 = vpack.c.bf16 %v1217, %v1216
      %v1237 = vpack.c.bf16 %v1219, %v1218
      %1238 = vst [vmem:[#allocation3 + $0x30] sm:$0xff] %v1220
      %1239 = vst [vmem:[#allocation3 + $0x78] sm:$0xff] %v1221
      %1240 = vst [vmem:[#allocation3 + $0xc0] sm:$0xff] %v1222
      %1241 = vst [vmem:[#allocation3 + $0x108] sm:$0xff] %v1223
      %1242 = vst [vmem:[#allocation3 + $0x150] sm:$0xff] %v1224
      %1243 = vst [vmem:[#allocation3 + $0x198] sm:$0xff] %v1225
      %1244 = vst [vmem:[#allocation3 + $0x1e0] sm:$0xff] %v1226
      %1245 = vst [vmem:[#allocation3 + $0x228] sm:$0xff] %v1227
      %1246 = vst [vmem:[#allocation3 + $0x270] sm:$0xff] %v1228
      %1247 = vst [vmem:[#allocation3 + $0x2b8] sm:$0xff] %v1229
      %1248 = vst [vmem:[#allocation3 + $0x300] sm:$0xff] %v1230
      %1249 = vst [vmem:[#allocation3 + $0x348] sm:$0xff] %v1231
      %1250 = vst [vmem:[#allocation3 + $0x390] sm:$0xff] %v1232
      %1251 = vst [vmem:[#allocation3 + $0x3d8] sm:$0xff] %v1233
      %1252 = vst [vmem:[#allocation3 + $0x420] sm:$0xff] %v1234
      %1253 = vst [vmem:[#allocation3 + $0x468] sm:$0xff] %v1235
      %1254 = vst [vmem:[#allocation3 + $0x4b0] sm:$0xff] %v1236
      %1255 = vst [vmem:[#allocation3 + $0x4f8] sm:$0xff] %v1237
      %v1256 = vld [vmem:[#allocation2 + $0x25] sm:$0xff]
      %v1257 = vld [vmem:[#allocation2 + $0x2d] sm:$0xff]
      %v1258 = vld [vmem:[#allocation2 + $0x35] sm:$0xff]
      %v1259 = vld [vmem:[#allocation2 + $0x3d] sm:$0xff]
      %v1260 = vld [vmem:[#allocation2 + $0x45] sm:$0xff]
      %v1261 = vld [vmem:[#allocation2 + $0x4d] sm:$0xff]
      %v1262 = vld [vmem:[#allocation2 + $0x55] sm:$0xff]
      %v1263 = vld [vmem:[#allocation2 + $0x5d] sm:$0xff]
      %v1264 = vld [vmem:[#allocation2 + $0x65] sm:$0xff]
      %v1265 = vld [vmem:[#allocation2 + $0x6d] sm:$0xff]
      %v1266 = vld [vmem:[#allocation2 + $0x75] sm:$0xff]
      %v1267 = vld [vmem:[#allocation2 + $0x7d] sm:$0xff]
      %v1268 = vld [vmem:[#allocation2 + $0x85] sm:$0xff]
      %v1269 = vld [vmem:[#allocation2 + $0x8d] sm:$0xff]
      %v1270 = vld [vmem:[#allocation2 + $0x95] sm:$0xff]
      %v1271 = vld [vmem:[#allocation2 + $0x9d] sm:$0xff]
      %v1272 = vld [vmem:[#allocation2 + $0xa5] sm:$0xff]
      %v1273 = vld [vmem:[#allocation2 + $0xad] sm:$0xff]
      %v1274 = vld [vmem:[#allocation2 + $0xb5] sm:$0xff]
      %v1275 = vld [vmem:[#allocation2 + $0xbd] sm:$0xff]
      %v1276 = vld [vmem:[#allocation2 + $0xc5] sm:$0xff]
      %v1277 = vld [vmem:[#allocation2 + $0xcd] sm:$0xff]
      %v1278 = vld [vmem:[#allocation2 + $0xd5] sm:$0xff]
      %v1279 = vld [vmem:[#allocation2 + $0xdd] sm:$0xff]
      %v1280 = vld [vmem:[#allocation2 + $0xe5] sm:$0xff]
      %v1281 = vld [vmem:[#allocation2 + $0xed] sm:$0xff]
      %v1282 = vld [vmem:[#allocation2 + $0xf5] sm:$0xff]
      %v1283 = vld [vmem:[#allocation2 + $0xfd] sm:$0xff]
      %v1284 = vld [vmem:[#allocation2 + $0x105] sm:$0xff]
      %v1285 = vld [vmem:[#allocation2 + $0x10d] sm:$0xff]
      %v1286 = vld [vmem:[#allocation2 + $0x115] sm:$0xff]
      %v1287 = vld [vmem:[#allocation2 + $0x11d] sm:$0xff]
      %v1288 = vld [vmem:[#allocation2 + $0x125] sm:$0xff]
      %v1289 = vld [vmem:[#allocation2 + $0x12d] sm:$0xff]
      %v1290 = vld [vmem:[#allocation2 + $0x135] sm:$0xff]
      %v1291 = vld [vmem:[#allocation2 + $0x13d] sm:$0xff]
      %v1292 = vpack.c.bf16 %v1257, %v1256
      %v1293 = vpack.c.bf16 %v1259, %v1258
      %v1294 = vpack.c.bf16 %v1261, %v1260
      %v1295 = vpack.c.bf16 %v1263, %v1262
      %v1296 = vpack.c.bf16 %v1265, %v1264
      %v1297 = vpack.c.bf16 %v1267, %v1266
      %v1298 = vpack.c.bf16 %v1269, %v1268
      %v1299 = vpack.c.bf16 %v1271, %v1270
      %v1300 = vpack.c.bf16 %v1273, %v1272
      %v1301 = vpack.c.bf16 %v1275, %v1274
      %v1302 = vpack.c.bf16 %v1277, %v1276
      %v1303 = vpack.c.bf16 %v1279, %v1278
      %v1304 = vpack.c.bf16 %v1281, %v1280
      %v1305 = vpack.c.bf16 %v1283, %v1282
      %v1306 = vpack.c.bf16 %v1285, %v1284
      %v1307 = vpack.c.bf16 %v1287, %v1286
      %v1308 = vpack.c.bf16 %v1289, %v1288
      %v1309 = vpack.c.bf16 %v1291, %v1290
      %1310 = vst [vmem:[#allocation3 + $0x38] sm:$0xff] %v1292
      %1311 = vst [vmem:[#allocation3 + $0x80] sm:$0xff] %v1293
      %1312 = vst [vmem:[#allocation3 + $0xc8] sm:$0xff] %v1294
      %1313 = vst [vmem:[#allocation3 + $0x110] sm:$0xff] %v1295
      %1314 = vst [vmem:[#allocation3 + $0x158] sm:$0xff] %v1296
      %1315 = vst [vmem:[#allocation3 + $0x1a0] sm:$0xff] %v1297
      %1316 = vst [vmem:[#allocation3 + $0x1e8] sm:$0xff] %v1298
      %1317 = vst [vmem:[#allocation3 + $0x230] sm:$0xff] %v1299
      %1318 = vst [vmem:[#allocation3 + $0x278] sm:$0xff] %v1300
      %1319 = vst [vmem:[#allocation3 + $0x2c0] sm:$0xff] %v1301
      %1320 = vst [vmem:[#allocation3 + $0x308] sm:$0xff] %v1302
      %1321 = vst [vmem:[#allocation3 + $0x350] sm:$0xff] %v1303
      %1322 = vst [vmem:[#allocation3 + $0x398] sm:$0xff] %v1304
      %1323 = vst [vmem:[#allocation3 + $0x3e0] sm:$0xff] %v1305
      %1324 = vst [vmem:[#allocation3 + $0x428] sm:$0xff] %v1306
      %1325 = vst [vmem:[#allocation3 + $0x470] sm:$0xff] %v1307
      %1326 = vst [vmem:[#allocation3 + $0x4b8] sm:$0xff] %v1308
      %1327 = vst [vmem:[#allocation3 + $0x500] sm:$0xff] %v1309
      %v1328 = vld [vmem:[#allocation2 + $0x26] sm:$0xff]
      %v1329 = vld [vmem:[#allocation2 + $0x2e] sm:$0xff]
      %v1330 = vld [vmem:[#allocation2 + $0x36] sm:$0xff]
      %v1331 = vld [vmem:[#allocation2 + $0x3e] sm:$0xff]
      %v1332 = vld [vmem:[#allocation2 + $0x46] sm:$0xff]
      %v1333 = vld [vmem:[#allocation2 + $0x4e] sm:$0xff]
      %v1334 = vld [vmem:[#allocation2 + $0x56] sm:$0xff]
      %v1335 = vld [vmem:[#allocation2 + $0x5e] sm:$0xff]
      %v1336 = vld [vmem:[#allocation2 + $0x66] sm:$0xff]
      %v1337 = vld [vmem:[#allocation2 + $0x6e] sm:$0xff]
      %v1338 = vld [vmem:[#allocation2 + $0x76] sm:$0xff]
      %v1339 = vld [vmem:[#allocation2 + $0x7e] sm:$0xff]
      %v1340 = vld [vmem:[#allocation2 + $0x86] sm:$0xff]
      %v1341 = vld [vmem:[#allocation2 + $0x8e] sm:$0xff]
      %v1342 = vld [vmem:[#allocation2 + $0x96] sm:$0xff]
      %v1343 = vld [vmem:[#allocation2 + $0x9e] sm:$0xff]
      %v1344 = vld [vmem:[#allocation2 + $0xa6] sm:$0xff]
      %v1345 = vld [vmem:[#allocation2 + $0xae] sm:$0xff]
      %v1346 = vld [vmem:[#allocation2 + $0xb6] sm:$0xff]
      %v1347 = vld [vmem:[#allocation2 + $0xbe] sm:$0xff]
      %v1348 = vld [vmem:[#allocation2 + $0xc6] sm:$0xff]
      %v1349 = vld [vmem:[#allocation2 + $0xce] sm:$0xff]
      %v1350 = vld [vmem:[#allocation2 + $0xd6] sm:$0xff]
      %v1351 = vld [vmem:[#allocation2 + $0xde] sm:$0xff]
      %v1352 = vld [vmem:[#allocation2 + $0xe6] sm:$0xff]
      %v1353 = vld [vmem:[#allocation2 + $0xee] sm:$0xff]
      %v1354 = vld [vmem:[#allocation2 + $0xf6] sm:$0xff]
      %v1355 = vld [vmem:[#allocation2 + $0xfe] sm:$0xff]
      %v1356 = vld [vmem:[#allocation2 + $0x106] sm:$0xff]
      %v1357 = vld [vmem:[#allocation2 + $0x10e] sm:$0xff]
      %v1358 = vld [vmem:[#allocation2 + $0x116] sm:$0xff]
      %v1359 = vld [vmem:[#allocation2 + $0x11e] sm:$0xff]
      %v1360 = vld [vmem:[#allocation2 + $0x126] sm:$0xff]
      %v1361 = vld [vmem:[#allocation2 + $0x12e] sm:$0xff]
      %v1362 = vld [vmem:[#allocation2 + $0x136] sm:$0xff]
      %v1363 = vld [vmem:[#allocation2 + $0x13e] sm:$0xff]
      %v1364 = vpack.c.bf16 %v1329, %v1328
      %v1365 = vpack.c.bf16 %v1331, %v1330
      %v1366 = vpack.c.bf16 %v1333, %v1332
      %v1367 = vpack.c.bf16 %v1335, %v1334
      %v1368 = vpack.c.bf16 %v1337, %v1336
      %v1369 = vpack.c.bf16 %v1339, %v1338
      %v1370 = vpack.c.bf16 %v1341, %v1340
      %v1371 = vpack.c.bf16 %v1343, %v1342
      %v1372 = vpack.c.bf16 %v1345, %v1344
      %v1373 = vpack.c.bf16 %v1347, %v1346
      %v1374 = vpack.c.bf16 %v1349, %v1348
      %v1375 = vpack.c.bf16 %v1351, %v1350
      %v1376 = vpack.c.bf16 %v1353, %v1352
      %v1377 = vpack.c.bf16 %v1355, %v1354
      %v1378 = vpack.c.bf16 %v1357, %v1356
      %v1379 = vpack.c.bf16 %v1359, %v1358
      %v1380 = vpack.c.bf16 %v1361, %v1360
      %v1381 = vpack.c.bf16 %v1363, %v1362
      %1382 = vst [vmem:[#allocation3 + $0x40] sm:$0xff] %v1364
      %1383 = vst [vmem:[#allocation3 + $0x88] sm:$0xff] %v1365
      %1384 = vst [vmem:[#allocation3 + $0xd0] sm:$0xff] %v1366
      %1385 = vst [vmem:[#allocation3 + $0x118] sm:$0xff] %v1367
      %1386 = vst [vmem:[#allocation3 + $0x160] sm:$0xff] %v1368
      %1387 = vst [vmem:[#allocation3 + $0x1a8] sm:$0xff] %v1369
      %1388 = vst [vmem:[#allocation3 + $0x1f0] sm:$0xff] %v1370
      %1389 = vst [vmem:[#allocation3 + $0x238] sm:$0xff] %v1371
      %1390 = vst [vmem:[#allocation3 + $0x280] sm:$0xff] %v1372
      %1391 = vst [vmem:[#allocation3 + $0x2c8] sm:$0xff] %v1373
      %1392 = vst [vmem:[#allocation3 + $0x310] sm:$0xff] %v1374
      %1393 = vst [vmem:[#allocation3 + $0x358] sm:$0xff] %v1375
      %1394 = vst [vmem:[#allocation3 + $0x3a0] sm:$0xff] %v1376
      %1395 = vst [vmem:[#allocation3 + $0x3e8] sm:$0xff] %v1377
      %1396 = vst [vmem:[#allocation3 + $0x430] sm:$0xff] %v1378
      %1397 = vst [vmem:[#allocation3 + $0x478] sm:$0xff] %v1379
      %1398 = vst [vmem:[#allocation3 + $0x4c0] sm:$0xff] %v1380
      %1399 = vst [vmem:[#allocation3 + $0x508] sm:$0xff] %v1381
      %v1400 = vld [vmem:[#allocation3] sm:$0xff]
      %v1401 = vld [vmem:[#allocation3 + $0x8] sm:$0xff]
      %v1402 = vld [vmem:[#allocation3 + $0x10] sm:$0xff]
      %v1403 = vld [vmem:[#allocation3 + $0x18] sm:$0xff]
      %v1404 = vld [vmem:[#allocation3 + $0x20] sm:$0xff]
      %v1405 = vld [vmem:[#allocation3 + $0x28] sm:$0xff]
      %v1406 = vld [vmem:[#allocation3 + $0x30] sm:$0xff]
      %v1407 = vld [vmem:[#allocation3 + $0x38] sm:$0xff]
      %v1408 = vld [vmem:[#allocation3 + $0x40] sm:$0xff]
      %v1409 = vld [vmem:[#allocation3 + $0x48] sm:$0xff]
      %v1410 = vld [vmem:[#allocation3 + $0x50] sm:$0xff]
      %v1411 = vld [vmem:[#allocation3 + $0x58] sm:$0xff]
      %v1412 = vld [vmem:[#allocation3 + $0x60] sm:$0xff]
      %v1413 = vld [vmem:[#allocation3 + $0x68] sm:$0xff]
      %v1414 = vld [vmem:[#allocation3 + $0x70] sm:$0xff]
      %v1415 = vld [vmem:[#allocation3 + $0x78] sm:$0xff]
      %v1416 = vld [vmem:[#allocation3 + $0x80] sm:$0xff]
      %v1417 = vld [vmem:[#allocation3 + $0x88] sm:$0xff]
      %v1418 = vld [vmem:[#allocation3 + $0x90] sm:$0xff]
      %v1419 = vld [vmem:[#allocation3 + $0x98] sm:$0xff]
      %v1420 = vld [vmem:[#allocation3 + $0xa0] sm:$0xff]
      %v1421 = vld [vmem:[#allocation3 + $0xa8] sm:$0xff]
      %v1422 = vld [vmem:[#allocation3 + $0xb0] sm:$0xff]
      %v1423 = vld [vmem:[#allocation3 + $0xb8] sm:$0xff]
      %v1424 = vld [vmem:[#allocation3 + $0xc0] sm:$0xff]
      %v1425 = vld [vmem:[#allocation3 + $0xc8] sm:$0xff]
      %v1426 = vld [vmem:[#allocation3 + $0xd0] sm:$0xff]
      %v1427 = vld [vmem:[#allocation3 + $0xd8] sm:$0xff]
      %v1428 = vld [vmem:[#allocation3 + $0xe0] sm:$0xff]
      %v1429 = vld [vmem:[#allocation3 + $0xe8] sm:$0xff]
      %v1430 = vld [vmem:[#allocation3 + $0xf0] sm:$0xff]
      %v1431 = vld [vmem:[#allocation3 + $0xf8] sm:$0xff]
      %v1432 = vld [vmem:[#allocation3 + $0x100] sm:$0xff]
      %v1433 = vld [vmem:[#allocation3 + $0x108] sm:$0xff]
      %v1434 = vld [vmem:[#allocation3 + $0x110] sm:$0xff]
      %v1435 = vld [vmem:[#allocation3 + $0x118] sm:$0xff]
      %v1436 = vld [vmem:[#allocation3 + $0x120] sm:$0xff]
      %v1437 = vld [vmem:[#allocation3 + $0x128] sm:$0xff]
      %v1438 = vld [vmem:[#allocation3 + $0x130] sm:$0xff]
      %v1439 = vld [vmem:[#allocation3 + $0x138] sm:$0xff]
      %v1440 = vld [vmem:[#allocation3 + $0x140] sm:$0xff]
      %v1441 = vld [vmem:[#allocation3 + $0x148] sm:$0xff]
      %v1442 = vld [vmem:[#allocation3 + $0x150] sm:$0xff]
      %v1443 = vld [vmem:[#allocation3 + $0x158] sm:$0xff]
      %v1444 = vld [vmem:[#allocation3 + $0x160] sm:$0xff]
      %v1445 = vld [vmem:[#allocation3 + $0x168] sm:$0xff]
      %v1446 = vld [vmem:[#allocation3 + $0x170] sm:$0xff]
      %v1447 = vld [vmem:[#allocation3 + $0x178] sm:$0xff]
      %v1448 = vld [vmem:[#allocation3 + $0x180] sm:$0xff]
      %v1449 = vld [vmem:[#allocation3 + $0x188] sm:$0xff]
      %v1450 = vld [vmem:[#allocation3 + $0x190] sm:$0xff]
      %v1451 = vld [vmem:[#allocation3 + $0x198] sm:$0xff]
      %v1452 = vld [vmem:[#allocation3 + $0x1a0] sm:$0xff]
      %v1453 = vld [vmem:[#allocation3 + $0x1a8] sm:$0xff]
      %v1454 = vld [vmem:[#allocation3 + $0x1b0] sm:$0xff]
      %v1455 = vld [vmem:[#allocation3 + $0x1b8] sm:$0xff]
      %v1456 = vld [vmem:[#allocation3 + $0x1c0] sm:$0xff]
      %v1457 = vld [vmem:[#allocation3 + $0x1c8] sm:$0xff]
      %v1458 = vld [vmem:[#allocation3 + $0x1d0] sm:$0xff]
      %v1459 = vld [vmem:[#allocation3 + $0x1d8] sm:$0xff]
      %v1460 = vld [vmem:[#allocation3 + $0x1e0] sm:$0xff]
      %v1461 = vld [vmem:[#allocation3 + $0x1e8] sm:$0xff]
      %v1462 = vld [vmem:[#allocation3 + $0x1f0] sm:$0xff]
      %v1463 = vld [vmem:[#allocation3 + $0x1f8] sm:$0xff]
      %v1464 = vld [vmem:[#allocation3 + $0x200] sm:$0xff]
      %v1465 = vld [vmem:[#allocation3 + $0x208] sm:$0xff]
      %v1466 = vld [vmem:[#allocation3 + $0x210] sm:$0xff]
      %v1467 = vld [vmem:[#allocation3 + $0x218] sm:$0xff]
      %v1468 = vld [vmem:[#allocation3 + $0x220] sm:$0xff]
      %v1469 = vld [vmem:[#allocation3 + $0x228] sm:$0xff]
      %v1470 = vld [vmem:[#allocation3 + $0x230] sm:$0xff]
      %v1471 = vld [vmem:[#allocation3 + $0x238] sm:$0xff]
      %v1472 = vld [vmem:[#allocation3 + $0x240] sm:$0xff]
      %v1473 = vld [vmem:[#allocation3 + $0x248] sm:$0xff]
      %v1474 = vld [vmem:[#allocation3 + $0x250] sm:$0xff]
      %v1475 = vld [vmem:[#allocation3 + $0x258] sm:$0xff]
      %v1476 = vld [vmem:[#allocation3 + $0x260] sm:$0xff]
      %v1477 = vld [vmem:[#allocation3 + $0x268] sm:$0xff]
      %v1478 = vld [vmem:[#allocation3 + $0x270] sm:$0xff]
      %v1479 = vld [vmem:[#allocation3 + $0x278] sm:$0xff]
      %v1480 = vld [vmem:[#allocation3 + $0x280] sm:$0xff]
      %v1481 = vld [vmem:[#allocation3 + $0x288] sm:$0xff]
      %v1482 = vld [vmem:[#allocation3 + $0x290] sm:$0xff]
      %v1483 = vld [vmem:[#allocation3 + $0x298] sm:$0xff]
      %v1484 = vld [vmem:[#allocation3 + $0x2a0] sm:$0xff]
      %v1485 = vld [vmem:[#allocation3 + $0x2a8] sm:$0xff]
      %v1486 = vld [vmem:[#allocation3 + $0x2b0] sm:$0xff]
      %v1487 = vld [vmem:[#allocation3 + $0x2b8] sm:$0xff]
      %v1488 = vld [vmem:[#allocation3 + $0x2c0] sm:$0xff]
      %v1489 = vld [vmem:[#allocation3 + $0x2c8] sm:$0xff]
      %v1490 = vld [vmem:[#allocation3 + $0x2d0] sm:$0xff]
      %v1491 = vld [vmem:[#allocation3 + $0x2d8] sm:$0xff]
      %v1492 = vld [vmem:[#allocation3 + $0x2e0] sm:$0xff]
      %v1493 = vld [vmem:[#allocation3 + $0x2e8] sm:$0xff]
      %v1494 = vld [vmem:[#allocation3 + $0x2f0] sm:$0xff]
      %v1495 = vld [vmem:[#allocation3 + $0x2f8] sm:$0xff]
      %v1496 = vld [vmem:[#allocation3 + $0x300] sm:$0xff]
      %v1497 = vld [vmem:[#allocation3 + $0x308] sm:$0xff]
      %v1498 = vld [vmem:[#allocation3 + $0x310] sm:$0xff]
      %v1499 = vld [vmem:[#allocation3 + $0x318] sm:$0xff]
      %v1500 = vld [vmem:[#allocation3 + $0x320] sm:$0xff]
      %v1501 = vld [vmem:[#allocation3 + $0x328] sm:$0xff]
      %v1502 = vld [vmem:[#allocation3 + $0x330] sm:$0xff]
      %v1503 = vld [vmem:[#allocation3 + $0x338] sm:$0xff]
      %v1504 = vld [vmem:[#allocation3 + $0x340] sm:$0xff]
      %v1505 = vld [vmem:[#allocation3 + $0x348] sm:$0xff]
      %v1506 = vld [vmem:[#allocation3 + $0x350] sm:$0xff]
      %v1507 = vld [vmem:[#allocation3 + $0x358] sm:$0xff]
      %v1508 = vld [vmem:[#allocation3 + $0x360] sm:$0xff]
      %v1509 = vld [vmem:[#allocation3 + $0x368] sm:$0xff]
      %v1510 = vld [vmem:[#allocation3 + $0x370] sm:$0xff]
      %v1511 = vld [vmem:[#allocation3 + $0x378] sm:$0xff]
      %v1512 = vld [vmem:[#allocation3 + $0x380] sm:$0xff]
      %v1513 = vld [vmem:[#allocation3 + $0x388] sm:$0xff]
      %v1514 = vld [vmem:[#allocation3 + $0x390] sm:$0xff]
      %v1515 = vld [vmem:[#allocation3 + $0x398] sm:$0xff]
      %v1516 = vld [vmem:[#allocation3 + $0x3a0] sm:$0xff]
      %v1517 = vld [vmem:[#allocation3 + $0x3a8] sm:$0xff]
      %v1518 = vld [vmem:[#allocation3 + $0x3b0] sm:$0xff]
      %v1519 = vld [vmem:[#allocation3 + $0x3b8] sm:$0xff]
      %v1520 = vld [vmem:[#allocation3 + $0x3c0] sm:$0xff]
      %v1521 = vld [vmem:[#allocation3 + $0x3c8] sm:$0xff]
      %v1522 = vld [vmem:[#allocation3 + $0x3d0] sm:$0xff]
      %v1523 = vld [vmem:[#allocation3 + $0x3d8] sm:$0xff]
      %v1524 = vld [vmem:[#allocation3 + $0x3e0] sm:$0xff]
      %v1525 = vld [vmem:[#allocation3 + $0x3e8] sm:$0xff]
      %v1526 = vld [vmem:[#allocation3 + $0x3f0] sm:$0xff]
      %v1527 = vld [vmem:[#allocation3 + $0x3f8] sm:$0xff]
      %v1528 = vld [vmem:[#allocation3 + $0x400] sm:$0xff]
      %v1529 = vld [vmem:[#allocation3 + $0x408] sm:$0xff]
      %v1530 = vld [vmem:[#allocation3 + $0x410] sm:$0xff]
      %v1531 = vld [vmem:[#allocation3 + $0x418] sm:$0xff]
      %v1532 = vld [vmem:[#allocation3 + $0x420] sm:$0xff]
      %v1533 = vld [vmem:[#allocation3 + $0x428] sm:$0xff]
      %v1534 = vld [vmem:[#allocation3 + $0x430] sm:$0xff]
      %v1535 = vld [vmem:[#allocation3 + $0x438] sm:$0xff]
      %v1536 = vld [vmem:[#allocation3 + $0x440] sm:$0xff]
      %v1537 = vld [vmem:[#allocation3 + $0x448] sm:$0xff]
      %v1538 = vld [vmem:[#allocation3 + $0x450] sm:$0xff]
      %v1539 = vld [vmem:[#allocation3 + $0x458] sm:$0xff]
      %v1540 = vld [vmem:[#allocation3 + $0x460] sm:$0xff]
      %v1541 = vld [vmem:[#allocation3 + $0x468] sm:$0xff]
      %v1542 = vld [vmem:[#allocation3 + $0x470] sm:$0xff]
      %v1543 = vld [vmem:[#allocation3 + $0x478] sm:$0xff]
      %v1544 = vld [vmem:[#allocation3 + $0x480] sm:$0xff]
      %v1545 = vld [vmem:[#allocation3 + $0x488] sm:$0xff]
      %v1546 = vld [vmem:[#allocation3 + $0x490] sm:$0xff]
      %v1547 = vld [vmem:[#allocation3 + $0x498] sm:$0xff]
      %v1548 = vld [vmem:[#allocation3 + $0x4a0] sm:$0xff]
      %v1549 = vld [vmem:[#allocation3 + $0x4a8] sm:$0xff]
      %v1550 = vld [vmem:[#allocation3 + $0x4b0] sm:$0xff]
      %v1551 = vld [vmem:[#allocation3 + $0x4b8] sm:$0xff]
      %v1552 = vld [vmem:[#allocation3 + $0x4c0] sm:$0xff]
      %v1553 = vld [vmem:[#allocation3 + $0x4c8] sm:$0xff]
      %v1554 = vld [vmem:[#allocation3 + $0x4d0] sm:$0xff]
      %v1555 = vld [vmem:[#allocation3 + $0x4d8] sm:$0xff]
      %v1556 = vld [vmem:[#allocation3 + $0x4e0] sm:$0xff]
      %v1557 = vld [vmem:[#allocation3 + $0x4e8] sm:$0xff]
      %v1558 = vld [vmem:[#allocation3 + $0x4f0] sm:$0xff]
      %v1559 = vld [vmem:[#allocation3 + $0x4f8] sm:$0xff]
      %v1560 = vld [vmem:[#allocation3 + $0x500] sm:$0xff]
      %v1561 = vld [vmem:[#allocation3 + $0x508] sm:$0xff]
      %v1562 = vld [vmem:[%s4] sm:$0xf]
      %v1563 = vld [vmem:[%s4 + $0x4] sm:$0xf]
      %v1564 = vld [vmem:[%s4 + $0x8] sm:$0xf]
      %v1565 = vld [vmem:[%s4 + $0xc] sm:$0xf]
      %v1566 = vld [vmem:[%s4 + $0x10] sm:$0xf]
      %v1567 = vld [vmem:[%s4 + $0x14] sm:$0xf]
      %v1568 = vld [vmem:[%s4 + $0x18] sm:$0xf]
      %v1569 = vld [vmem:[%s4 + $0x1c] sm:$0xf]
      %v1570 = vld [vmem:[%s4 + $0x20] sm:$0xf]
      %v1571 = vld [vmem:[%s4 + $0x24] sm:$0xf]
      %v1572 = vld [vmem:[%s4 + $0x28] sm:$0xf]
      %v1573 = vld [vmem:[%s4 + $0x2c] sm:$0xf]
      %v1574 = vld [vmem:[%s4 + $0x30] sm:$0xf]
      %v1575 = vld [vmem:[%s4 + $0x34] sm:$0xf]
      %v1576 = vld [vmem:[%s4 + $0x38] sm:$0xf]
      %v1577 = vld [vmem:[%s4 + $0x3c] sm:$0xf]
      %v1578 = vld [vmem:[%s4 + $0x40] sm:$0xf]
      %v1579 = vld [vmem:[%s4 + $0x44] sm:$0xf]
      %v1580 = vld [vmem:[%s4 + $0x48] sm:$0xf]
      %v1581 = vld [vmem:[%s4 + $0x4c] sm:$0xf]
      %v1582 = vld [vmem:[%s4 + $0x50] sm:$0xf]
      %v1583 = vld [vmem:[%s4 + $0x54] sm:$0xf]
      %v1584 = vld [vmem:[%s4 + $0x58] sm:$0xf]
      %v1585 = vld [vmem:[%s4 + $0x5c] sm:$0xf]
      %v1586 = vld [vmem:[%s4 + $0x60] sm:$0xf]
      %v1587 = vld [vmem:[%s4 + $0x64] sm:$0xf]
      %v1588 = vld [vmem:[%s4 + $0x68] sm:$0xf]
      %v1589 = vld [vmem:[%s4 + $0x6c] sm:$0xf]
      %v1590 = vld [vmem:[%s4 + $0x70] sm:$0xf]
      %v1591 = vld [vmem:[%s4 + $0x74] sm:$0xf]
      %v1592 = vld [vmem:[%s4 + $0x78] sm:$0xf]
      %v1593 = vld [vmem:[%s4 + $0x7c] sm:$0xf]
      %v1594 = vld [vmem:[%s4 + $0x80] sm:$0xf]
      %v1595 = vld [vmem:[%s4 + $0x84] sm:$0xf]
      %v1596 = vld [vmem:[%s4 + $0x88] sm:$0xf]
      %v1597 = vld [vmem:[%s4 + $0x8c] sm:$0xf]
      %v1598 = vld [vmem:[%s4 + $0x90] sm:$0xf]
      %v1599 = vld [vmem:[%s4 + $0x94] sm:$0xf]
      %v1600 = vld [vmem:[%s4 + $0x98] sm:$0xf]
      %v1601 = vld [vmem:[%s4 + $0x9c] sm:$0xf]
      %v1602 = vld [vmem:[%s4 + $0xa0] sm:$0xf]
      %v1603 = vld [vmem:[%s4 + $0xa4] sm:$0xf]
      %v1604 = vld [vmem:[%s4 + $0xa8] sm:$0xf]
      %v1605 = vld [vmem:[%s4 + $0xac] sm:$0xf]
      %v1606 = vld [vmem:[%s4 + $0xb0] sm:$0xf]
      %v1607 = vld [vmem:[%s4 + $0xb4] sm:$0xf]
      %v1608 = vld [vmem:[%s4 + $0xb8] sm:$0xf]
      %v1609 = vld [vmem:[%s4 + $0xbc] sm:$0xf]
      %v1610 = vld [vmem:[%s4 + $0xc0] sm:$0xf]
      %v1611 = vld [vmem:[%s4 + $0xc4] sm:$0xf]
      %v1612 = vld [vmem:[%s4 + $0xc8] sm:$0xf]
      %v1613 = vld [vmem:[%s4 + $0xcc] sm:$0xf]
      %v1614 = vld [vmem:[%s4 + $0xd0] sm:$0xf]
      %v1615 = vld [vmem:[%s4 + $0xd4] sm:$0xf]
      %v1616 = vld [vmem:[%s4 + $0xd8] sm:$0xf]
      %v1617 = vld [vmem:[%s4 + $0xdc] sm:$0xf]
      %v1618 = vld [vmem:[%s4 + $0xe0] sm:$0xf]
      %v1619 = vld [vmem:[%s4 + $0xe4] sm:$0xf]
      %v1620 = vld [vmem:[%s4 + $0xe8] sm:$0xf]
      %v1621 = vld [vmem:[%s4 + $0xec] sm:$0xf]
      %v1622 = vld [vmem:[%s4 + $0xf0] sm:$0xf]
      %v1623 = vld [vmem:[%s4 + $0xf4] sm:$0xf]
      %v1624 = vld [vmem:[%s4 + $0xf8] sm:$0xf]
      %v1625 = vld [vmem:[%s4 + $0xfc] sm:$0xf]
      %v1626 = vld [vmem:[%s4 + $0x100] sm:$0xf]
      %v1627 = vld [vmem:[%s4 + $0x104] sm:$0xf]
      %v1628 = vld [vmem:[%s4 + $0x108] sm:$0xf]
      %v1629 = vld [vmem:[%s4 + $0x10c] sm:$0xf]
      %v1630 = vld [vmem:[%s4 + $0x110] sm:$0xf]
      %v1631 = vld [vmem:[%s4 + $0x114] sm:$0xf]
      %v1632 = vld [vmem:[%s4 + $0x118] sm:$0xf]
      %v1633 = vld [vmem:[%s4 + $0x11c] sm:$0xf]
      %v1634 = vld [vmem:[%s4 + $0x120] sm:$0xf]
      %v1635 = vld [vmem:[%s4 + $0x124] sm:$0xf]
      %v1636 = vld [vmem:[%s4 + $0x128] sm:$0xf]
      %v1637 = vld [vmem:[%s4 + $0x12c] sm:$0xf]
      %v1638 = vld [vmem:[%s4 + $0x130] sm:$0xf]
      %v1639 = vld [vmem:[%s4 + $0x134] sm:$0xf]
      %v1640 = vld [vmem:[%s4 + $0x138] sm:$0xf]
      %v1641 = vld [vmem:[%s4 + $0x13c] sm:$0xf]
      %v1642 = vld [vmem:[%s4 + $0x140] sm:$0xf]
      %v1643 = vld [vmem:[%s4 + $0x144] sm:$0xf]
      %v1644 = vld [vmem:[%s4 + $0x148] sm:$0xf]
      %v1645 = vld [vmem:[%s4 + $0x14c] sm:$0xf]
      %v1646 = vld [vmem:[%s4 + $0x150] sm:$0xf]
      %v1647 = vld [vmem:[%s4 + $0x154] sm:$0xf]
      %v1648 = vld [vmem:[%s4 + $0x158] sm:$0xf]
      %v1649 = vld [vmem:[%s4 + $0x15c] sm:$0xf]
      %v1650 = vld [vmem:[%s4 + $0x160] sm:$0xf]
      %v1651 = vld [vmem:[%s4 + $0x164] sm:$0xf]
      %v1652 = vld [vmem:[%s4 + $0x168] sm:$0xf]
      %v1653 = vld [vmem:[%s4 + $0x16c] sm:$0xf]
      %v1654 = vld [vmem:[%s4 + $0x170] sm:$0xf]
      %v1655 = vld [vmem:[%s4 + $0x174] sm:$0xf]
      %v1656 = vld [vmem:[%s4 + $0x178] sm:$0xf]
      %v1657 = vld [vmem:[%s4 + $0x17c] sm:$0xf]
      %v1658 = vld [vmem:[%s4 + $0x180] sm:$0xf]
      %v1659 = vld [vmem:[%s4 + $0x184] sm:$0xf]
      %v1660 = vld [vmem:[%s4 + $0x188] sm:$0xf]
      %v1661 = vld [vmem:[%s4 + $0x18c] sm:$0xf]
      %v1662 = vld [vmem:[%s4 + $0x190] sm:$0xf]
      %v1663 = vld [vmem:[%s4 + $0x194] sm:$0xf]
      %v1664 = vld [vmem:[%s4 + $0x198] sm:$0xf]
      %v1665 = vld [vmem:[%s4 + $0x19c] sm:$0xf]
      %v1666 = vld [vmem:[%s4 + $0x1a0] sm:$0xf]
      %v1667 = vld [vmem:[%s4 + $0x1a4] sm:$0xf]
      %v1668 = vld [vmem:[%s4 + $0x1a8] sm:$0xf]
      %v1669 = vld [vmem:[%s4 + $0x1ac] sm:$0xf]
      %v1670 = vld [vmem:[%s4 + $0x1b0] sm:$0xf]
      %v1671 = vld [vmem:[%s4 + $0x1b4] sm:$0xf]
      %v1672 = vld [vmem:[%s4 + $0x1b8] sm:$0xf]
      %v1673 = vld [vmem:[%s4 + $0x1bc] sm:$0xf]
      %v1674 = vld [vmem:[%s4 + $0x1c0] sm:$0xf]
      %v1675 = vld [vmem:[%s4 + $0x1c4] sm:$0xf]
      %v1676 = vld [vmem:[%s4 + $0x1c8] sm:$0xf]
      %v1677 = vld [vmem:[%s4 + $0x1cc] sm:$0xf]
      %v1678 = vld [vmem:[%s4 + $0x1d0] sm:$0xf]
      %v1679 = vld [vmem:[%s4 + $0x1d4] sm:$0xf]
      %v1680 = vld [vmem:[%s4 + $0x1d8] sm:$0xf]
      %v1681 = vld [vmem:[%s4 + $0x1dc] sm:$0xf]
      %v1682 = vld [vmem:[%s4 + $0x1e0] sm:$0xf]
      %v1683 = vld [vmem:[%s4 + $0x1e4] sm:$0xf]
      %v1684 = vld [vmem:[%s4 + $0x1e8] sm:$0xf]
      %v1685 = vld [vmem:[%s4 + $0x1ec] sm:$0xf]
      %v1686 = vld [vmem:[%s4 + $0x1f0] sm:$0xf]
      %v1687 = vld [vmem:[%s4 + $0x1f4] sm:$0xf]
      %v1688 = vld [vmem:[%s4 + $0x1f8] sm:$0xf]
      %v1689 = vld [vmem:[%s4 + $0x1fc] sm:$0xf]
      %v1690 = vld [vmem:[%s4 + $0x200] sm:$0xf]
      %v1691 = vld [vmem:[%s4 + $0x204] sm:$0xf]
      %v1692 = vld [vmem:[%s4 + $0x208] sm:$0xf]
      %v1693 = vld [vmem:[%s4 + $0x20c] sm:$0xf]
      %v1694 = vld [vmem:[%s4 + $0x210] sm:$0xf]
      %v1695 = vld [vmem:[%s4 + $0x214] sm:$0xf]
      %v1696 = vld [vmem:[%s4 + $0x218] sm:$0xf]
      %v1697 = vld [vmem:[%s4 + $0x21c] sm:$0xf]
      %v1698 = vld [vmem:[%s4 + $0x220] sm:$0xf]
      %v1699 = vld [vmem:[%s4 + $0x224] sm:$0xf]
      %v1700 = vld [vmem:[%s4 + $0x228] sm:$0xf]
      %v1701 = vld [vmem:[%s4 + $0x22c] sm:$0xf]
      %v1702 = vld [vmem:[%s4 + $0x230] sm:$0xf]
      %v1703 = vld [vmem:[%s4 + $0x234] sm:$0xf]
      %v1704 = vld [vmem:[%s4 + $0x238] sm:$0xf]
      %v1705 = vld [vmem:[%s4 + $0x23c] sm:$0xf]
      %v1850 = vunpack.c.l.b16 %v1562
      %v1851 = vunpack.c.l.b16 %v1563
      %v1852 = vunpack.c.l.b16 %v1564
      %v1853 = vunpack.c.l.b16 %v1565
      %v1854 = vunpack.c.l.b16 %v1566
      %v1855 = vunpack.c.l.b16 %v1567
      %v1856 = vunpack.c.l.b16 %v1568
      %v1857 = vunpack.c.l.b16 %v1569
      %v1858 = vunpack.c.l.b16 %v1570
      %v1859 = vunpack.c.l.b16 %v1571
      %v1860 = vunpack.c.l.b16 %v1572
      %v1861 = vunpack.c.l.b16 %v1573
      %v1862 = vunpack.c.l.b16 %v1574
      %v1863 = vunpack.c.l.b16 %v1575
      %v1864 = vunpack.c.l.b16 %v1576
      %v1865 = vunpack.c.l.b16 %v1577
      %v1866 = vunpack.c.l.b16 %v1578
      %v1867 = vunpack.c.l.b16 %v1579
      %v1868 = vunpack.c.l.b16 %v1580
      %v1869 = vunpack.c.l.b16 %v1581
      %v1870 = vunpack.c.l.b16 %v1582
      %v1871 = vunpack.c.l.b16 %v1583
      %v1872 = vunpack.c.l.b16 %v1584
      %v1873 = vunpack.c.l.b16 %v1585
      %v1874 = vunpack.c.l.b16 %v1586
      %v1875 = vunpack.c.l.b16 %v1587
      %v1876 = vunpack.c.l.b16 %v1588
      %v1877 = vunpack.c.l.b16 %v1589
      %v1878 = vunpack.c.l.b16 %v1590
      %v1879 = vunpack.c.l.b16 %v1591
      %v1880 = vunpack.c.l.b16 %v1592
      %v1881 = vunpack.c.l.b16 %v1593
      %v1882 = vunpack.c.l.b16 %v1594
      %v1883 = vunpack.c.l.b16 %v1595
      %v1884 = vunpack.c.l.b16 %v1596
      %v1885 = vunpack.c.l.b16 %v1597
      %v1886 = vunpack.c.l.b16 %v1598
      %v1887 = vunpack.c.l.b16 %v1599
      %v1888 = vunpack.c.l.b16 %v1600
      %v1889 = vunpack.c.l.b16 %v1601
      %v1890 = vunpack.c.l.b16 %v1602
      %v1891 = vunpack.c.l.b16 %v1603
      %v1892 = vunpack.c.l.b16 %v1604
      %v1893 = vunpack.c.l.b16 %v1605
      %v1894 = vunpack.c.l.b16 %v1606
      %v1895 = vunpack.c.l.b16 %v1607
      %v1896 = vunpack.c.l.b16 %v1608
      %v1897 = vunpack.c.l.b16 %v1609
      %v1898 = vunpack.c.l.b16 %v1610
      %v1899 = vunpack.c.l.b16 %v1611
      %v1900 = vunpack.c.l.b16 %v1612
      %v1901 = vunpack.c.l.b16 %v1613
      %v1902 = vunpack.c.l.b16 %v1614
      %v1903 = vunpack.c.l.b16 %v1615
      %v1904 = vunpack.c.l.b16 %v1616
      %v1905 = vunpack.c.l.b16 %v1617
      %v1906 = vunpack.c.l.b16 %v1618
      %v1907 = vunpack.c.l.b16 %v1619
      %v1908 = vunpack.c.l.b16 %v1620
      %v1909 = vunpack.c.l.b16 %v1621
      %v1910 = vunpack.c.l.b16 %v1622
      %v1911 = vunpack.c.l.b16 %v1623
      %v1912 = vunpack.c.l.b16 %v1624
      %v1913 = vunpack.c.l.b16 %v1625
      %v1914 = vunpack.c.l.b16 %v1626
      %v1915 = vunpack.c.l.b16 %v1627
      %v1916 = vunpack.c.l.b16 %v1628
      %v1917 = vunpack.c.l.b16 %v1629
      %v1918 = vunpack.c.l.b16 %v1630
      %v1919 = vunpack.c.l.b16 %v1631
      %v1920 = vunpack.c.l.b16 %v1632
      %v1921 = vunpack.c.l.b16 %v1633
      %v1922 = vunpack.c.l.b16 %v1634
      %v1923 = vunpack.c.l.b16 %v1635
      %v1924 = vunpack.c.l.b16 %v1636
      %v1925 = vunpack.c.l.b16 %v1637
      %v1926 = vunpack.c.l.b16 %v1638
      %v1927 = vunpack.c.l.b16 %v1639
      %v1928 = vunpack.c.l.b16 %v1640
      %v1929 = vunpack.c.l.b16 %v1641
      %v1930 = vunpack.c.l.b16 %v1642
      %v1931 = vunpack.c.l.b16 %v1643
      %v1932 = vunpack.c.l.b16 %v1644
      %v1933 = vunpack.c.l.b16 %v1645
      %v1934 = vunpack.c.l.b16 %v1646
      %v1935 = vunpack.c.l.b16 %v1647
      %v1936 = vunpack.c.l.b16 %v1648
      %v1937 = vunpack.c.l.b16 %v1649
      %v1938 = vunpack.c.l.b16 %v1650
      %v1939 = vunpack.c.l.b16 %v1651
      %v1940 = vunpack.c.l.b16 %v1652
      %v1941 = vunpack.c.l.b16 %v1653
      %v1942 = vunpack.c.l.b16 %v1654
      %v1943 = vunpack.c.l.b16 %v1655
      %v1944 = vunpack.c.l.b16 %v1656
      %v1945 = vunpack.c.l.b16 %v1657
      %v1946 = vunpack.c.l.b16 %v1658
      %v1947 = vunpack.c.l.b16 %v1659
      %v1948 = vunpack.c.l.b16 %v1660
      %v1949 = vunpack.c.l.b16 %v1661
      %v1950 = vunpack.c.l.b16 %v1662
      %v1951 = vunpack.c.l.b16 %v1663
      %v1952 = vunpack.c.l.b16 %v1664
      %v1953 = vunpack.c.l.b16 %v1665
      %v1954 = vunpack.c.l.b16 %v1666
      %v1955 = vunpack.c.l.b16 %v1667
      %v1956 = vunpack.c.l.b16 %v1668
      %v1957 = vunpack.c.l.b16 %v1669
      %v1958 = vunpack.c.l.b16 %v1670
      %v1959 = vunpack.c.l.b16 %v1671
      %v1960 = vunpack.c.l.b16 %v1672
      %v1961 = vunpack.c.l.b16 %v1673
      %v1962 = vunpack.c.l.b16 %v1674
      %v1963 = vunpack.c.l.b16 %v1675
      %v1964 = vunpack.c.l.b16 %v1676
      %v1965 = vunpack.c.l.b16 %v1677
      %v1966 = vunpack.c.l.b16 %v1678
      %v1967 = vunpack.c.l.b16 %v1679
      %v1968 = vunpack.c.l.b16 %v1680
      %v1969 = vunpack.c.l.b16 %v1681
      %v1970 = vunpack.c.l.b16 %v1682
      %v1971 = vunpack.c.l.b16 %v1683
      %v1972 = vunpack.c.l.b16 %v1684
      %v1973 = vunpack.c.l.b16 %v1685
      %v1974 = vunpack.c.l.b16 %v1686
      %v1975 = vunpack.c.l.b16 %v1687
      %v1976 = vunpack.c.l.b16 %v1688
      %v1977 = vunpack.c.l.b16 %v1689
      %v1978 = vunpack.c.l.b16 %v1690
      %v1979 = vunpack.c.l.b16 %v1691
      %v1980 = vunpack.c.l.b16 %v1692
      %v1981 = vunpack.c.l.b16 %v1693
      %v1982 = vunpack.c.l.b16 %v1694
      %v1983 = vunpack.c.l.b16 %v1695
      %v1984 = vunpack.c.l.b16 %v1696
      %v1985 = vunpack.c.l.b16 %v1697
      %v1986 = vunpack.c.l.b16 %v1698
      %v1987 = vunpack.c.l.b16 %v1699
      %v1988 = vunpack.c.l.b16 %v1700
      %v1989 = vunpack.c.l.b16 %v1701
      %v1990 = vunpack.c.l.b16 %v1702
      %v1991 = vunpack.c.l.b16 %v1703
      %v1992 = vunpack.c.l.b16 %v1704
      %v1993 = vunpack.c.l.b16 %v1705
      %v1994 = vpack.c.b16 %v1851, %v1850
      %v1995 = vpack.c.b16 %v1853, %v1852
      %v1996 = vpack.c.b16 %v1855, %v1854
      %v1997 = vpack.c.b16 %v1857, %v1856
      %v1998 = vpack.c.b16 %v1859, %v1858
      %v1999 = vpack.c.b16 %v1861, %v1860
      %v2000 = vpack.c.b16 %v1863, %v1862
      %v2001 = vpack.c.b16 %v1865, %v1864
      %v2002 = vpack.c.b16 %v1867, %v1866
      %v2003 = vpack.c.b16 %v1869, %v1868
      %v2004 = vpack.c.b16 %v1871, %v1870
      %v2005 = vpack.c.b16 %v1873, %v1872
      %v2006 = vpack.c.b16 %v1875, %v1874
      %v2007 = vpack.c.b16 %v1877, %v1876
      %v2008 = vpack.c.b16 %v1879, %v1878
      %v2009 = vpack.c.b16 %v1881, %v1880
      %v2010 = vpack.c.b16 %v1883, %v1882
      %v2011 = vpack.c.b16 %v1885, %v1884
      %v2012 = vpack.c.b16 %v1887, %v1886
      %v2013 = vpack.c.b16 %v1889, %v1888
      %v2014 = vpack.c.b16 %v1891, %v1890
      %v2015 = vpack.c.b16 %v1893, %v1892
      %v2016 = vpack.c.b16 %v1895, %v1894
      %v2017 = vpack.c.b16 %v1897, %v1896
      %v2018 = vpack.c.b16 %v1899, %v1898
      %v2019 = vpack.c.b16 %v1901, %v1900
      %v2020 = vpack.c.b16 %v1903, %v1902
      %v2021 = vpack.c.b16 %v1905, %v1904
      %v2022 = vpack.c.b16 %v1907, %v1906
      %v2023 = vpack.c.b16 %v1909, %v1908
      %v2024 = vpack.c.b16 %v1911, %v1910
      %v2025 = vpack.c.b16 %v1913, %v1912
      %v2026 = vpack.c.b16 %v1915, %v1914
      %v2027 = vpack.c.b16 %v1917, %v1916
      %v2028 = vpack.c.b16 %v1919, %v1918
      %v2029 = vpack.c.b16 %v1921, %v1920
      %v2030 = vpack.c.b16 %v1923, %v1922
      %v2031 = vpack.c.b16 %v1925, %v1924
      %v2032 = vpack.c.b16 %v1927, %v1926
      %v2033 = vpack.c.b16 %v1929, %v1928
      %v2034 = vpack.c.b16 %v1931, %v1930
      %v2035 = vpack.c.b16 %v1933, %v1932
      %v2036 = vpack.c.b16 %v1935, %v1934
      %v2037 = vpack.c.b16 %v1937, %v1936
      %v2038 = vpack.c.b16 %v1939, %v1938
      %v2039 = vpack.c.b16 %v1941, %v1940
      %v2040 = vpack.c.b16 %v1943, %v1942
      %v2041 = vpack.c.b16 %v1945, %v1944
      %v2042 = vpack.c.b16 %v1947, %v1946
      %v2043 = vpack.c.b16 %v1949, %v1948
      %v2044 = vpack.c.b16 %v1951, %v1950
      %v2045 = vpack.c.b16 %v1953, %v1952
      %v2046 = vpack.c.b16 %v1955, %v1954
      %v2047 = vpack.c.b16 %v1957, %v1956
      %v2048 = vpack.c.b16 %v1959, %v1958
      %v2049 = vpack.c.b16 %v1961, %v1960
      %v2050 = vpack.c.b16 %v1963, %v1962
      %v2051 = vpack.c.b16 %v1965, %v1964
      %v2052 = vpack.c.b16 %v1967, %v1966
      %v2053 = vpack.c.b16 %v1969, %v1968
      %v2054 = vpack.c.b16 %v1971, %v1970
      %v2055 = vpack.c.b16 %v1973, %v1972
      %v2056 = vpack.c.b16 %v1975, %v1974
      %v2057 = vpack.c.b16 %v1977, %v1976
      %v2058 = vpack.c.b16 %v1979, %v1978
      %v2059 = vpack.c.b16 %v1981, %v1980
      %v2060 = vpack.c.b16 %v1983, %v1982
      %v2061 = vpack.c.b16 %v1985, %v1984
      %v2062 = vpack.c.b16 %v1987, %v1986
      %v2063 = vpack.c.b16 %v1989, %v1988
      %v2064 = vpack.c.b16 %v1991, %v1990
      %v2065 = vpack.c.b16 %v1993, %v1992
      %2138 = vmatprep.subr.bf16.mxu0 0
      %2139 = vmatpush1.bf16.msra.mxu0 %v1994
      %2140 = vmatprep.subr.bf16.mxu0 0
      %2141 = vmatpush1.bf16.msra.mxu0 %v1995
      %2142 = vmatprep.subr.bf16.mxu0 0
      %2143 = vmatpush1.bf16.msra.mxu0 %v1996
      %2144 = vmatprep.subr.bf16.mxu0 0
      %2145 = vmatpush1.bf16.msra.mxu0 %v1997
      %2146 = vmatprep.subr.bf16.mxu0 0
      %2147 = vmatpush1.bf16.msra.mxu0 %v1998
      %2148 = vmatprep.subr.bf16.mxu0 0
      %2149 = vmatpush1.bf16.msra.mxu0 %v1999
      %2150 = vmatprep.subr.bf16.mxu0 0
      %2151 = vmatpush1.bf16.msra.mxu0 %v2000
      %2152 = vmatprep.subr.bf16.mxu0 0
      %2153 = vmatpush1.bf16.msra.mxu0 %v2001
      %2154 = vmatprep.subr.bf16.mxu0 0
      %2155 = vmatpush1.bf16.msra.mxu0 %v2002
      %2156 = vmatprep.subr.bf16.mxu0 0
      %2157 = vmatpush1.bf16.msra.mxu0 %v2003
      %2158 = vmatprep.subr.bf16.mxu0 0
      %2159 = vmatpush1.bf16.msra.mxu0 %v2004
      %2160 = vmatprep.subr.bf16.mxu0 0
      %2161 = vmatpush1.bf16.msra.mxu0 %v2005
      %2162 = vmatprep.subr.bf16.mxu0 0
      %2163 = vmatpush1.bf16.msra.mxu0 %v2006
      %2164 = vmatprep.subr.bf16.mxu0 0
      %2165 = vmatpush1.bf16.msra.mxu0 %v2007
      %2166 = vmatprep.subr.bf16.mxu0 0
      %2167 = vmatpush1.bf16.msra.mxu0 %v2008
      %2168 = vmatprep.subr.bf16.mxu0 0
      %2169 = vmatpush1.bf16.msra.mxu0 %v2009
      %2170 = vmatprep.mubr.bf16.mxu0 %v1401
      %2171 = vmatmul.mubr.bf16.gmra.mrb[0].mxu0 %v1400
      %v2172 = vpop.f32.mrb[0].mxu0
      %v2173 = vadd.f32 0.0, %v2172
      %v2174 = vpop.f32.mrb[0].mxu0
      %v2175 = vpop.f32.mrb[0].mxu0
      %v2176 = vadd.f32 0.0, %v2175
      %v2177 = vpop.f32.mrb[0].mxu0
      %2178 = vmatprep.mubr.bf16.mxu0 %v1410
      %2179 = vmatmul.mubr.bf16.gmra.mrb[0].mxu0 %v1409
      %v2180 = vpop.f32.mrb[0].mxu0
      %v2181 = vadd.f32 0.0, %v2180
      %v2182 = vpop.f32.mrb[0].mxu0
      %v2183 = vpop.f32.mrb[0].mxu0
      %v2184 = vadd.f32 0.0, %v2183
      %v2185 = vpop.f32.mrb[0].mxu0
      %2186 = vmatprep.mubr.bf16.mxu0 %v1419
      %2187 = vmatmul.mubr.bf16.gmra.mrb[0].mxu0 %v1418
      %v2188 = vpop.f32.mrb[0].mxu0
      %v2189 = vadd.f32 0.0, %v2188
      %v2190 = vpop.f32.mrb[0].mxu0
      %v2191 = vpop.f32.mrb[0].mxu0
      %v2192 = vadd.f32 0.0, %v2191
      %v2193 = vpop.f32.mrb[0].mxu0
      %2194 = vmatprep.mubr.bf16.mxu0 %v1428
      %2195 = vmatmul.mubr.bf16.gmra.mrb[0].mxu0 %v1427
      %v2196 = vpop.f32.mrb[0].mxu0
      %v2197 = vadd.f32 0.0, %v2196
      %v2198 = vpop.f32.mrb[0].mxu0
      %v2199 = vpop.f32.mrb[0].mxu0
      %v2200 = vadd.f32 0.0, %v2199
      %v2201 = vpop.f32.mrb[0].mxu0
      %2202 = vmatprep.mubr.bf16.mxu0 %v1437
      %2203 = vmatmul.mubr.bf16.gmra.mrb[0].mxu0 %v1436
      %v2204 = vpop.f32.mrb[0].mxu0
      %v2205 = vadd.f32 0.0, %v2204
      %v2206 = vpop.f32.mrb[0].mxu0
      %v2207 = vpop.f32.mrb[0].mxu0
      %v2208 = vadd.f32 0.0, %v2207
      %v2209 = vpop.f32.mrb[0].mxu0
      %2210 = vmatprep.mubr.bf16.mxu0 %v1446
      %2211 = vmatmul.mubr.bf16.gmra.mrb[0].mxu0 %v1445
      %v2212 = vpop.f32.mrb[0].mxu0
      %v2213 = vadd.f32 0.0, %v2212
      %v2214 = vpop.f32.mrb[0].mxu0
      %v2215 = vpop.f32.mrb[0].mxu0
      %v2216 = vadd.f32 0.0, %v2215
      %v2217 = vpop.f32.mrb[0].mxu0
      %2218 = vmatprep.mubr.bf16.mxu0 %v1455
      %2219 = vmatmul.mubr.bf16.gmra.mrb[0].mxu0 %v1454
      %v2220 = vpop.f32.mrb[0].mxu0
      %v2221 = vadd.f32 0.0, %v2220
      %v2222 = vpop.f32.mrb[0].mxu0
      %v2223 = vpop.f32.mrb[0].mxu0
      %v2224 = vadd.f32 0.0, %v2223
      %v2225 = vpop.f32.mrb[0].mxu0
      %2226 = vmatprep.mubr.bf16.mxu0 %v1464
      %2227 = vmatmul.mubr.bf16.gmra.mrb[0].mxu0 %v1463
      %v2228 = vpop.f32.mrb[0].mxu0
      %v2229 = vadd.f32 0.0, %v2228
      %v2230 = vpop.f32.mrb[0].mxu0
      %v2231 = vpop.f32.mrb[0].mxu0
      %v2232 = vadd.f32 0.0, %v2231
      %v2233 = vpop.f32.mrb[0].mxu0
      %2234 = vmatprep.mubr.bf16.mxu0 %v1473
      %2235 = vmatmul.mubr.bf16.gmra.mrb[0].mxu0 %v1472
      %v2236 = vpop.f32.mrb[0].mxu0
      %v2237 = vadd.f32 0.0, %v2236
      %v2238 = vpop.f32.mrb[0].mxu0
      %v2239 = vpop.f32.mrb[0].mxu0
      %v2240 = vadd.f32 0.0, %v2239
      %v2241 = vpop.f32.mrb[0].mxu0
      %2242 = vmatprep.mubr.bf16.mxu0 %v1482
      %2243 = vmatmul.mubr.bf16.gmra.mrb[0].mxu0 %v1481
      %v2244 = vpop.f32.mrb[0].mxu0
      %v2245 = vadd.f32 0.0, %v2244
      %v2246 = vpop.f32.mrb[0].mxu0
      %v2247 = vpop.f32.mrb[0].mxu0
      %v2248 = vadd.f32 0.0, %v2247
      %v2249 = vpop.f32.mrb[0].mxu0
      %2250 = vmatprep.mubr.bf16.mxu0 %v1491
      %2251 = vmatmul.mubr.bf16.gmra.mrb[0].mxu0 %v1490
      %v2252 = vpop.f32.mrb[0].mxu0
      %v2253 = vadd.f32 0.0, %v2252
      %v2254 = vpop.f32.mrb[0].mxu0
      %v2255 = vpop.f32.mrb[0].mxu0
      %v2256 = vadd.f32 0.0, %v2255
      %v2257 = vpop.f32.mrb[0].mxu0
      %2258 = vmatprep.mubr.bf16.mxu0 %v1500
      %2259 = vmatmul.mubr.bf16.gmra.mrb[0].mxu0 %v1499
      %v2260 = vpop.f32.mrb[0].mxu0
      %v2261 = vadd.f32 0.0, %v2260
      %v2262 = vpop.f32.mrb[0].mxu0
      %v2263 = vpop.f32.mrb[0].mxu0
      %v2264 = vadd.f32 0.0, %v2263
      %v2265 = vpop.f32.mrb[0].mxu0
      %2266 = vmatprep.mubr.bf16.mxu0 %v1509
      %2267 = vmatmul.mubr.bf16.gmra.mrb[0].mxu0 %v1508
      %v2268 = vpop.f32.mrb[0].mxu0
      %v2269 = vadd.f32 0.0, %v2268
      %v2270 = vpop.f32.mrb[0].mxu0
      %v2271 = vpop.f32.mrb[0].mxu0
      %v2272 = vadd.f32 0.0, %v2271
      %v2273 = vpop.f32.mrb[0].mxu0
      %2274 = vmatprep.mubr.bf16.mxu0 %v1518
      %2275 = vmatmul.mubr.bf16.gmra.mrb[0].mxu0 %v1517
      %v2276 = vpop.f32.mrb[0].mxu0
      %v2277 = vadd.f32 0.0, %v2276
      %v2278 = vpop.f32.mrb[0].mxu0
      %v2279 = vpop.f32.mrb[0].mxu0
      %v2280 = vadd.f32 0.0, %v2279
      %v2281 = vpop.f32.mrb[0].mxu0
      %2282 = vmatprep.mubr.bf16.mxu0 %v1527
      %2283 = vmatmul.mubr.bf16.gmra.mrb[0].mxu0 %v1526
      %v2284 = vpop.f32.mrb[0].mxu0
      %v2285 = vadd.f32 0.0, %v2284
      %v2286 = vpop.f32.mrb[0].mxu0
      %v2287 = vpop.f32.mrb[0].mxu0
      %v2288 = vadd.f32 0.0, %v2287
      %v2289 = vpop.f32.mrb[0].mxu0
      %2290 = vmatprep.mubr.bf16.mxu0 %v1536
      %2291 = vmatmul.mubr.bf16.gmra.mrb[0].mxu0 %v1535
      %v2292 = vpop.f32.mrb[0].mxu0
      %v2293 = vadd.f32 0.0, %v2292
      %v2294 = vpop.f32.mrb[0].mxu0
      %v2295 = vpop.f32.mrb[0].mxu0
      %v2296 = vadd.f32 0.0, %v2295
      %v2297 = vpop.f32.mrb[0].mxu0
      %2298 = vmatprep.mubr.bf16.mxu0 %v1545
      %2299 = vmatmul.mubr.bf16.gmra.mrb[0].mxu0 %v1544
      %v2300 = vpop.f32.mrb[0].mxu0
      %v2301 = vadd.f32 0.0, %v2300
      %v2302 = vpop.f32.mrb[0].mxu0
      %v2303 = vpop.f32.mrb[0].mxu0
      %v2304 = vadd.f32 0.0, %v2303
      %v2305 = vpop.f32.mrb[0].mxu0
      %2306 = vmatprep.mubr.bf16.mxu0 %v1554
      %2307 = vmatmul.mubr.bf16.gmra.mrb[0].mxu0 %v1553
      %v2308 = vpop.f32.mrb[0].mxu0
      %v2309 = vadd.f32 0.0, %v2308
      %v2310 = vpop.f32.mrb[0].mxu0
      %v2311 = vpop.f32.mrb[0].mxu0
      %v2312 = vadd.f32 0.0, %v2311
      %v2313 = vpop.f32.mrb[0].mxu0
      %2314 = vdwg.mxu0
      %2315 = vmatprep.subr.bf16.mxu0 0
      %2316 = vmatpush1.bf16.msra.mxu0 %v2010
      %2317 = vmatprep.subr.bf16.mxu0 0
      %2318 = vmatpush1.bf16.msra.mxu0 %v2011
      %2319 = vmatprep.subr.bf16.mxu0 0
      %2320 = vmatpush1.bf16.msra.mxu0 %v2012
      %2321 = vmatprep.subr.bf16.mxu0 0
      %2322 = vmatpush1.bf16.msra.mxu0 %v2013
      %2323 = vmatprep.subr.bf16.mxu0 0
      %2324 = vmatpush1.bf16.msra.mxu0 %v2014
      %2325 = vmatprep.subr.bf16.mxu0 0
      %2326 = vmatpush1.bf16.msra.mxu0 %v2015
      %2327 = vmatprep.subr.bf16.mxu0 0
      %2328 = vmatpush1.bf16.msra.mxu0 %v2016
      %2329 = vmatprep.subr.bf16.mxu0 0
      %2330 = vmatpush1.bf16.msra.mxu0 %v2017
      %2331 = vmatprep.subr.bf16.mxu0 0
      %2332 = vmatpush1.bf16.msra.mxu0 %v2018
      %2333 = vmatprep.subr.bf16.mxu0 0
      %2334 = vmatpush1.bf16.msra.mxu0 %v2019
      %2335 = vmatprep.subr.bf16.mxu0 0
      %2336 = vmatpush1.bf16.msra.mxu0 %v2020
      %2337 = vmatprep.subr.bf16.mxu0 0
      %2338 = vmatpush1.bf16.msra.mxu0 %v2021
      %2339 = vmatprep.subr.bf16.mxu0 0
      %2340 = vmatpush1.bf16.msra.mxu0 %v2022
      %2341 = vmatprep.subr.bf16.mxu0 0
      %2342 = vmatpush1.bf16.msra.mxu0 %v2023
      %2343 = vmatprep.subr.bf16.mxu0 0
      %2344 = vmatpush1.bf16.msra.mxu0 %v2024
      %2345 = vmatprep.subr.bf16.mxu0 0
      %2346 = vmatpush1.bf16.msra.mxu0 %v2025
      %2347 = vmatprep.mubr.bf16.mxu0 %v1403
      %2348 = vmatmul.mubr.bf16.gmra.mrb[0].mxu0 %v1402
      %v2349 = vpop.f32.mrb[0].mxu0
      %v2350 = vadd.f32 %v2173, %v2349
      %v2351 = vpop.f32.mrb[0].mxu0
      %v2352 = vpop.f32.mrb[0].mxu0
      %v2353 = vadd.f32 %v2176, %v2352
      %v2354 = vpop.f32.mrb[0].mxu0
      %2355 = vmatprep.mubr.bf16.mxu0 %v1412
      %2356 = vmatmul.mubr.bf16.gmra.mrb[0].mxu0 %v1411
      %v2357 = vpop.f32.mrb[0].mxu0
      %v2358 = vadd.f32 %v2181, %v2357
      %v2359 = vpop.f32.mrb[0].mxu0
      %v2360 = vpop.f32.mrb[0].mxu0
      %v2361 = vadd.f32 %v2184, %v2360
      %v2362 = vpop.f32.mrb[0].mxu0
      %2363 = vmatprep.mubr.bf16.mxu0 %v1421
      %2364 = vmatmul.mubr.bf16.gmra.mrb[0].mxu0 %v1420
      %v2365 = vpop.f32.mrb[0].mxu0
      %v2366 = vadd.f32 %v2189, %v2365
      %v2367 = vpop.f32.mrb[0].mxu0
      %v2368 = vpop.f32.mrb[0].mxu0
      %v2369 = vadd.f32 %v2192, %v2368
      %v2370 = vpop.f32.mrb[0].mxu0
      %2371 = vmatprep.mubr.bf16.mxu0 %v1430
      %2372 = vmatmul.mubr.bf16.gmra.mrb[0].mxu0 %v1429
      %v2373 = vpop.f32.mrb[0].mxu0
      %v2374 = vadd.f32 %v2197, %v2373
      %v2375 = vpop.f32.mrb[0].mxu0
      %v2376 = vpop.f32.mrb[0].mxu0
      %v2377 = vadd.f32 %v2200, %v2376
      %v2378 = vpop.f32.mrb[0].mxu0
      %2379 = vmatprep.mubr.bf16.mxu0 %v1439
      %2380 = vmatmul.mubr.bf16.gmra.mrb[0].mxu0 %v1438
      %v2381 = vpop.f32.mrb[0].mxu0
      %v2382 = vadd.f32 %v2205, %v2381
      %v2383 = vpop.f32.mrb[0].mxu0
      %v2384 = vpop.f32.mrb[0].mxu0
      %v2385 = vadd.f32 %v2208, %v2384
      %v2386 = vpop.f32.mrb[0].mxu0
      %2387 = vmatprep.mubr.bf16.mxu0 %v1448
      %2388 = vmatmul.mubr.bf16.gmra.mrb[0].mxu0 %v1447
      %v2389 = vpop.f32.mrb[0].mxu0
      %v2390 = vadd.f32 %v2213, %v2389
      %v2391 = vpop.f32.mrb[0].mxu0
      %v2392 = vpop.f32.mrb[0].mxu0
      %v2393 = vadd.f32 %v2216, %v2392
      %v2394 = vpop.f32.mrb[0].mxu0
      %2395 = vmatprep.mubr.bf16.mxu0 %v1457
      %2396 = vmatmul.mubr.bf16.gmra.mrb[0].mxu0 %v1456
      %v2397 = vpop.f32.mrb[0].mxu0
      %v2398 = vadd.f32 %v2221, %v2397
      %v2399 = vpop.f32.mrb[0].mxu0
      %v2400 = vpop.f32.mrb[0].mxu0
      %v2401 = vadd.f32 %v2224, %v2400
      %v2402 = vpop.f32.mrb[0].mxu0
      %2403 = vmatprep.mubr.bf16.mxu0 %v1466
      %2404 = vmatmul.mubr.bf16.gmra.mrb[0].mxu0 %v1465
      %v2405 = vpop.f32.mrb[0].mxu0
      %v2406 = vadd.f32 %v2229, %v2405
      %v2407 = vpop.f32.mrb[0].mxu0
      %v2408 = vpop.f32.mrb[0].mxu0
      %v2409 = vadd.f32 %v2232, %v2408
      %v2410 = vpop.f32.mrb[0].mxu0
      %2411 = vmatprep.mubr.bf16.mxu0 %v1475
      %2412 = vmatmul.mubr.bf16.gmra.mrb[0].mxu0 %v1474
      %v2413 = vpop.f32.mrb[0].mxu0
      %v2414 = vadd.f32 %v2237, %v2413
      %v2415 = vpop.f32.mrb[0].mxu0
      %v2416 = vpop.f32.mrb[0].mxu0
      %v2417 = vadd.f32 %v2240, %v2416
      %v2418 = vpop.f32.mrb[0].mxu0
      %2419 = vmatprep.mubr.bf16.mxu0 %v1484
      %2420 = vmatmul.mubr.bf16.gmra.mrb[0].mxu0 %v1483
      %v2421 = vpop.f32.mrb[0].mxu0
      %v2422 = vadd.f32 %v2245, %v2421
      %v2423 = vpop.f32.mrb[0].mxu0
      %v2424 = vpop.f32.mrb[0].mxu0
      %v2425 = vadd.f32 %v2248, %v2424
      %v2426 = vpop.f32.mrb[0].mxu0
      %2427 = vmatprep.mubr.bf16.mxu0 %v1493
      %2428 = vmatmul.mubr.bf16.gmra.mrb[0].mxu0 %v1492
      %v2429 = vpop.f32.mrb[0].mxu0
      %v2430 = vadd.f32 %v2253, %v2429
      %v2431 = vpop.f32.mrb[0].mxu0
      %v2432 = vpop.f32.mrb[0].mxu0
      %v2433 = vadd.f32 %v2256, %v2432
      %v2434 = vpop.f32.mrb[0].mxu0
      %2435 = vmatprep.mubr.bf16.mxu0 %v1502
      %2436 = vmatmul.mubr.bf16.gmra.mrb[0].mxu0 %v1501
      %v2437 = vpop.f32.mrb[0].mxu0
      %v2438 = vadd.f32 %v2261, %v2437
      %v2439 = vpop.f32.mrb[0].mxu0
      %v2440 = vpop.f32.mrb[0].mxu0
      %v2441 = vadd.f32 %v2264, %v2440
      %v2442 = vpop.f32.mrb[0].mxu0
      %2443 = vmatprep.mubr.bf16.mxu0 %v1511
      %2444 = vmatmul.mubr.bf16.gmra.mrb[0].mxu0 %v1510
      %v2445 = vpop.f32.mrb[0].mxu0
      %v2446 = vadd.f32 %v2269, %v2445
      %v2447 = vpop.f32.mrb[0].mxu0
      %v2448 = vpop.f32.mrb[0].mxu0
      %v2449 = vadd.f32 %v2272, %v2448
      %v2450 = vpop.f32.mrb[0].mxu0
      %2451 = vmatprep.mubr.bf16.mxu0 %v1520
      %2452 = vmatmul.mubr.bf16.gmra.mrb[0].mxu0 %v1519
      %v2453 = vpop.f32.mrb[0].mxu0
      %v2454 = vadd.f32 %v2277, %v2453
      %v2455 = vpop.f32.mrb[0].mxu0
      %v2456 = vpop.f32.mrb[0].mxu0
      %v2457 = vadd.f32 %v2280, %v2456
      %v2458 = vpop.f32.mrb[0].mxu0
      %2459 = vmatprep.mubr.bf16.mxu0 %v1529
      %2460 = vmatmul.mubr.bf16.gmra.mrb[0].mxu0 %v1528
      %v2461 = vpop.f32.mrb[0].mxu0
      %v2462 = vadd.f32 %v2285, %v2461
      %v2463 = vpop.f32.mrb[0].mxu0
      %v2464 = vpop.f32.mrb[0].mxu0
      %v2465 = vadd.f32 %v2288, %v2464
      %v2466 = vpop.f32.mrb[0].mxu0
      %2467 = vmatprep.mubr.bf16.mxu0 %v1538
      %2468 = vmatmul.mubr.bf16.gmra.mrb[0].mxu0 %v1537
      %v2469 = vpop.f32.mrb[0].mxu0
      %v2470 = vadd.f32 %v2293, %v2469
      %v2471 = vpop.f32.mrb[0].mxu0
      %v2472 = vpop.f32.mrb[0].mxu0
      %v2473 = vadd.f32 %v2296, %v2472
      %v2474 = vpop.f32.mrb[0].mxu0
      %2475 = vmatprep.mubr.bf16.mxu0 %v1547
      %2476 = vmatmul.mubr.bf16.gmra.mrb[0].mxu0 %v1546
      %v2477 = vpop.f32.mrb[0].mxu0
      %v2478 = vadd.f32 %v2301, %v2477
      %v2479 = vpop.f32.mrb[0].mxu0
      %v2480 = vpop.f32.mrb[0].mxu0
      %v2481 = vadd.f32 %v2304, %v2480
      %v2482 = vpop.f32.mrb[0].mxu0
      %2483 = vmatprep.mubr.bf16.mxu0 %v1556
      %2484 = vmatmul.mubr.bf16.gmra.mrb[0].mxu0 %v1555
      %v2485 = vpop.f32.mrb[0].mxu0
      %v2486 = vadd.f32 %v2309, %v2485
      %v2487 = vpop.f32.mrb[0].mxu0
      %v2488 = vpop.f32.mrb[0].mxu0
      %v2489 = vadd.f32 %v2312, %v2488
      %v2490 = vpop.f32.mrb[0].mxu0
      %2491 = vdwg.mxu0
      %2492 = vmatprep.subr.bf16.mxu0 0
      %2493 = vmatpush1.bf16.msra.mxu0 %v2026
      %2494 = vmatprep.subr.bf16.mxu0 0
      %2495 = vmatpush1.bf16.msra.mxu0 %v2027
      %2496 = vmatprep.subr.bf16.mxu0 0
      %2497 = vmatpush1.bf16.msra.mxu0 %v2028
      %2498 = vmatprep.subr.bf16.mxu0 0
      %2499 = vmatpush1.bf16.msra.mxu0 %v2029
      %2500 = vmatprep.subr.bf16.mxu0 0
      %2501 = vmatpush1.bf16.msra.mxu0 %v2030
      %2502 = vmatprep.subr.bf16.mxu0 0
      %2503 = vmatpush1.bf16.msra.mxu0 %v2031
      %2504 = vmatprep.subr.bf16.mxu0 0
      %2505 = vmatpush1.bf16.msra.mxu0 %v2032
      %2506 = vmatprep.subr.bf16.mxu0 0
      %2507 = vmatpush1.bf16.msra.mxu0 %v2033
      %2508 = vmatprep.subr.bf16.mxu0 0
      %2509 = vmatpush1.bf16.msra.mxu0 %v2034
      %2510 = vmatprep.subr.bf16.mxu0 0
      %2511 = vmatpush1.bf16.msra.mxu0 %v2035
      %2512 = vmatprep.subr.bf16.mxu0 0
      %2513 = vmatpush1.bf16.msra.mxu0 %v2036
      %2514 = vmatprep.subr.bf16.mxu0 0
      %2515 = vmatpush1.bf16.msra.mxu0 %v2037
      %2516 = vmatprep.subr.bf16.mxu0 0
      %2517 = vmatpush1.bf16.msra.mxu0 %v2038
      %2518 = vmatprep.subr.bf16.mxu0 0
      %2519 = vmatpush1.bf16.msra.mxu0 %v2039
      %2520 = vmatprep.subr.bf16.mxu0 0
      %2521 = vmatpush1.bf16.msra.mxu0 %v2040
      %2522 = vmatprep.subr.bf16.mxu0 0
      %2523 = vmatpush1.bf16.msra.mxu0 %v2041
      %2524 = vmatprep.mubr.bf16.mxu0 %v1405
      %2525 = vmatmul.mubr.bf16.gmra.mrb[0].mxu0 %v1404
      %v2526 = vpop.f32.mrb[0].mxu0
      %v2527 = vadd.f32 %v2350, %v2526
      %v2528 = vpop.f32.mrb[0].mxu0
      %v2529 = vpop.f32.mrb[0].mxu0
      %v2530 = vadd.f32 %v2353, %v2529
      %v2531 = vpop.f32.mrb[0].mxu0
      %2532 = vmatprep.mubr.bf16.mxu0 %v1414
      %2533 = vmatmul.mubr.bf16.gmra.mrb[0].mxu0 %v1413
      %v2534 = vpop.f32.mrb[0].mxu0
      %v2535 = vadd.f32 %v2358, %v2534
      %v2536 = vpop.f32.mrb[0].mxu0
      %v2537 = vpop.f32.mrb[0].mxu0
      %v2538 = vadd.f32 %v2361, %v2537
      %v2539 = vpop.f32.mrb[0].mxu0
      %2540 = vmatprep.mubr.bf16.mxu0 %v1423
      %2541 = vmatmul.mubr.bf16.gmra.mrb[0].mxu0 %v1422
      %v2542 = vpop.f32.mrb[0].mxu0
      %v2543 = vadd.f32 %v2366, %v2542
      %v2544 = vpop.f32.mrb[0].mxu0
      %v2545 = vpop.f32.mrb[0].mxu0
      %v2546 = vadd.f32 %v2369, %v2545
      %v2547 = vpop.f32.mrb[0].mxu0
      %2548 = vmatprep.mubr.bf16.mxu0 %v1432
      %2549 = vmatmul.mubr.bf16.gmra.mrb[0].mxu0 %v1431
      %v2550 = vpop.f32.mrb[0].mxu0
      %v2551 = vadd.f32 %v2374, %v2550
      %v2552 = vpop.f32.mrb[0].mxu0
      %v2553 = vpop.f32.mrb[0].mxu0
      %v2554 = vadd.f32 %v2377, %v2553
      %v2555 = vpop.f32.mrb[0].mxu0
      %2556 = vmatprep.mubr.bf16.mxu0 %v1441
      %2557 = vmatmul.mubr.bf16.gmra.mrb[0].mxu0 %v1440
      %v2558 = vpop.f32.mrb[0].mxu0
      %v2559 = vadd.f32 %v2382, %v2558
      %v2560 = vpop.f32.mrb[0].mxu0
      %v2561 = vpop.f32.mrb[0].mxu0
      %v2562 = vadd.f32 %v2385, %v2561
      %v2563 = vpop.f32.mrb[0].mxu0
      %2564 = vmatprep.mubr.bf16.mxu0 %v1450
      %2565 = vmatmul.mubr.bf16.gmra.mrb[0].mxu0 %v1449
      %v2566 = vpop.f32.mrb[0].mxu0
      %v2567 = vadd.f32 %v2390, %v2566
      %v2568 = vpop.f32.mrb[0].mxu0
      %v2569 = vpop.f32.mrb[0].mxu0
      %v2570 = vadd.f32 %v2393, %v2569
      %v2571 = vpop.f32.mrb[0].mxu0
      %2572 = vmatprep.mubr.bf16.mxu0 %v1459
      %2573 = vmatmul.mubr.bf16.gmra.mrb[0].mxu0 %v1458
      %v2574 = vpop.f32.mrb[0].mxu0
      %v2575 = vadd.f32 %v2398, %v2574
      %v2576 = vpop.f32.mrb[0].mxu0
      %v2577 = vpop.f32.mrb[0].mxu0
      %v2578 = vadd.f32 %v2401, %v2577
      %v2579 = vpop.f32.mrb[0].mxu0
      %2580 = vmatprep.mubr.bf16.mxu0 %v1468
      %2581 = vmatmul.mubr.bf16.gmra.mrb[0].mxu0 %v1467
      %v2582 = vpop.f32.mrb[0].mxu0
      %v2583 = vadd.f32 %v2406, %v2582
      %v2584 = vpop.f32.mrb[0].mxu0
      %v2585 = vpop.f32.mrb[0].mxu0
      %v2586 = vadd.f32 %v2409, %v2585
      %v2587 = vpop.f32.mrb[0].mxu0
      %2588 = vmatprep.mubr.bf16.mxu0 %v1477
      %2589 = vmatmul.mubr.bf16.gmra.mrb[0].mxu0 %v1476
      %v2590 = vpop.f32.mrb[0].mxu0
      %v2591 = vadd.f32 %v2414, %v2590
      %v2592 = vpop.f32.mrb[0].mxu0
      %v2593 = vpop.f32.mrb[0].mxu0
      %v2594 = vadd.f32 %v2417, %v2593
      %v2595 = vpop.f32.mrb[0].mxu0
      %2596 = vmatprep.mubr.bf16.mxu0 %v1486
      %2597 = vmatmul.mubr.bf16.gmra.mrb[0].mxu0 %v1485
      %v2598 = vpop.f32.mrb[0].mxu0
      %v2599 = vadd.f32 %v2422, %v2598
      %v2600 = vpop.f32.mrb[0].mxu0
      %v2601 = vpop.f32.mrb[0].mxu0
      %v2602 = vadd.f32 %v2425, %v2601
      %v2603 = vpop.f32.mrb[0].mxu0
      %2604 = vmatprep.mubr.bf16.mxu0 %v1495
      %2605 = vmatmul.mubr.bf16.gmra.mrb[0].mxu0 %v1494
      %v2606 = vpop.f32.mrb[0].mxu0
      %v2607 = vadd.f32 %v2430, %v2606
      %v2608 = vpop.f32.mrb[0].mxu0
      %v2609 = vpop.f32.mrb[0].mxu0
      %v2610 = vadd.f32 %v2433, %v2609
      %v2611 = vpop.f32.mrb[0].mxu0
      %2612 = vmatprep.mubr.bf16.mxu0 %v1504
      %2613 = vmatmul.mubr.bf16.gmra.mrb[0].mxu0 %v1503
      %v2614 = vpop.f32.mrb[0].mxu0
      %v2615 = vadd.f32 %v2438, %v2614
      %v2616 = vpop.f32.mrb[0].mxu0
      %v2617 = vpop.f32.mrb[0].mxu0
      %v2618 = vadd.f32 %v2441, %v2617
      %v2619 = vpop.f32.mrb[0].mxu0
      %2620 = vmatprep.mubr.bf16.mxu0 %v1513
      %2621 = vmatmul.mubr.bf16.gmra.mrb[0].mxu0 %v1512
      %v2622 = vpop.f32.mrb[0].mxu0
      %v2623 = vadd.f32 %v2446, %v2622
      %v2624 = vpop.f32.mrb[0].mxu0
      %v2625 = vpop.f32.mrb[0].mxu0
      %v2626 = vadd.f32 %v2449, %v2625
      %v2627 = vpop.f32.mrb[0].mxu0
      %2628 = vmatprep.mubr.bf16.mxu0 %v1522
      %2629 = vmatmul.mubr.bf16.gmra.mrb[0].mxu0 %v1521
      %v2630 = vpop.f32.mrb[0].mxu0
      %v2631 = vadd.f32 %v2454, %v2630
      %v2632 = vpop.f32.mrb[0].mxu0
      %v2633 = vpop.f32.mrb[0].mxu0
      %v2634 = vadd.f32 %v2457, %v2633
      %v2635 = vpop.f32.mrb[0].mxu0
      %2636 = vmatprep.mubr.bf16.mxu0 %v1531
      %2637 = vmatmul.mubr.bf16.gmra.mrb[0].mxu0 %v1530
      %v2638 = vpop.f32.mrb[0].mxu0
      %v2639 = vadd.f32 %v2462, %v2638
      %v2640 = vpop.f32.mrb[0].mxu0
      %v2641 = vpop.f32.mrb[0].mxu0
      %v2642 = vadd.f32 %v2465, %v2641
      %v2643 = vpop.f32.mrb[0].mxu0
      %2644 = vmatprep.mubr.bf16.mxu0 %v1540
      %2645 = vmatmul.mubr.bf16.gmra.mrb[0].mxu0 %v1539
      %v2646 = vpop.f32.mrb[0].mxu0
      %v2647 = vadd.f32 %v2470, %v2646
      %v2648 = vpop.f32.mrb[0].mxu0
      %v2649 = vpop.f32.mrb[0].mxu0
      %v2650 = vadd.f32 %v2473, %v2649
      %v2651 = vpop.f32.mrb[0].mxu0
      %2652 = vmatprep.mubr.bf16.mxu0 %v1549
      %2653 = vmatmul.mubr.bf16.gmra.mrb[0].mxu0 %v1548
      %v2654 = vpop.f32.mrb[0].mxu0
      %v2655 = vadd.f32 %v2478, %v2654
      %v2656 = vpop.f32.mrb[0].mxu0
      %v2657 = vpop.f32.mrb[0].mxu0
      %v2658 = vadd.f32 %v2481, %v2657
      %v2659 = vpop.f32.mrb[0].mxu0
      %2660 = vmatprep.mubr.bf16.mxu0 %v1558
      %2661 = vmatmul.mubr.bf16.gmra.mrb[0].mxu0 %v1557
      %v2662 = vpop.f32.mrb[0].mxu0
      %v2663 = vadd.f32 %v2486, %v2662
      %v2664 = vpop.f32.mrb[0].mxu0
      %v2665 = vpop.f32.mrb[0].mxu0
      %v2666 = vadd.f32 %v2489, %v2665
      %v2667 = vpop.f32.mrb[0].mxu0
      %2668 = vdwg.mxu0
      %2669 = vmatprep.subr.bf16.mxu0 0
      %2670 = vmatpush1.bf16.msra.mxu0 %v2042
      %2671 = vmatprep.subr.bf16.mxu0 0
      %2672 = vmatpush1.bf16.msra.mxu0 %v2043
      %2673 = vmatprep.subr.bf16.mxu0 0
      %2674 = vmatpush1.bf16.msra.mxu0 %v2044
      %2675 = vmatprep.subr.bf16.mxu0 0
      %2676 = vmatpush1.bf16.msra.mxu0 %v2045
      %2677 = vmatprep.subr.bf16.mxu0 0
      %2678 = vmatpush1.bf16.msra.mxu0 %v2046
      %2679 = vmatprep.subr.bf16.mxu0 0
      %2680 = vmatpush1.bf16.msra.mxu0 %v2047
      %2681 = vmatprep.subr.bf16.mxu0 0
      %2682 = vmatpush1.bf16.msra.mxu0 %v2048
      %2683 = vmatprep.subr.bf16.mxu0 0
      %2684 = vmatpush1.bf16.msra.mxu0 %v2049
      %2685 = vmatprep.subr.bf16.mxu0 0
      %2686 = vmatpush1.bf16.msra.mxu0 %v2050
      %2687 = vmatprep.subr.bf16.mxu0 0
      %2688 = vmatpush1.bf16.msra.mxu0 %v2051
      %2689 = vmatprep.subr.bf16.mxu0 0
      %2690 = vmatpush1.bf16.msra.mxu0 %v2052
      %2691 = vmatprep.subr.bf16.mxu0 0
      %2692 = vmatpush1.bf16.msra.mxu0 %v2053
      %2693 = vmatprep.subr.bf16.mxu0 0
      %2694 = vmatpush1.bf16.msra.mxu0 %v2054
      %2695 = vmatprep.subr.bf16.mxu0 0
      %2696 = vmatpush1.bf16.msra.mxu0 %v2055
      %2697 = vmatprep.subr.bf16.mxu0 0
      %2698 = vmatpush1.bf16.msra.mxu0 %v2056
      %2699 = vmatprep.subr.bf16.mxu0 0
      %2700 = vmatpush1.bf16.msra.mxu0 %v2057
      %2701 = vmatprep.mubr.bf16.mxu0 %v1407
      %2702 = vmatmul.mubr.bf16.gmra.mrb[0].mxu0 %v1406
      %v2703 = vpop.f32.mrb[0].mxu0
      %v2704 = vadd.f32 %v2527, %v2703
      %v2705 = vpop.f32.mrb[0].mxu0
      %v2706 = vpop.f32.mrb[0].mxu0
      %v2707 = vadd.f32 %v2530, %v2706
      %v2708 = vpop.f32.mrb[0].mxu0
      %2709 = vmatprep.mubr.bf16.mxu0 %v1416
      %2710 = vmatmul.mubr.bf16.gmra.mrb[0].mxu0 %v1415
      %v2711 = vpop.f32.mrb[0].mxu0
      %v2712 = vadd.f32 %v2535, %v2711
      %v2713 = vpop.f32.mrb[0].mxu0
      %v2714 = vpop.f32.mrb[0].mxu0
      %v2715 = vadd.f32 %v2538, %v2714
      %v2716 = vpop.f32.mrb[0].mxu0
      %2717 = vmatprep.mubr.bf16.mxu0 %v1425
      %2718 = vmatmul.mubr.bf16.gmra.mrb[0].mxu0 %v1424
      %v2719 = vpop.f32.mrb[0].mxu0
      %v2720 = vadd.f32 %v2543, %v2719
      %v2721 = vpop.f32.mrb[0].mxu0
      %v2722 = vpop.f32.mrb[0].mxu0
      %v2723 = vadd.f32 %v2546, %v2722
      %v2724 = vpop.f32.mrb[0].mxu0
      %2725 = vmatprep.mubr.bf16.mxu0 %v1434
      %2726 = vmatmul.mubr.bf16.gmra.mrb[0].mxu0 %v1433
      %v2727 = vpop.f32.mrb[0].mxu0
      %v2728 = vadd.f32 %v2551, %v2727
      %v2729 = vpop.f32.mrb[0].mxu0
      %v2730 = vpop.f32.mrb[0].mxu0
      %v2731 = vadd.f32 %v2554, %v2730
      %v2732 = vpop.f32.mrb[0].mxu0
      %2733 = vmatprep.mubr.bf16.mxu0 %v1443
      %2734 = vmatmul.mubr.bf16.gmra.mrb[0].mxu0 %v1442
      %v2735 = vpop.f32.mrb[0].mxu0
      %v2736 = vadd.f32 %v2559, %v2735
      %v2737 = vpop.f32.mrb[0].mxu0
      %v2738 = vpop.f32.mrb[0].mxu0
      %v2739 = vadd.f32 %v2562, %v2738
      %v2740 = vpop.f32.mrb[0].mxu0
      %2741 = vmatprep.mubr.bf16.mxu0 %v1452
      %2742 = vmatmul.mubr.bf16.gmra.mrb[0].mxu0 %v1451
      %v2743 = vpop.f32.mrb[0].mxu0
      %v2744 = vadd.f32 %v2567, %v2743
      %v2745 = vpop.f32.mrb[0].mxu0
      %v2746 = vpop.f32.mrb[0].mxu0
      %v2747 = vadd.f32 %v2570, %v2746
      %v2748 = vpop.f32.mrb[0].mxu0
      %2749 = vmatprep.mubr.bf16.mxu0 %v1461
      %2750 = vmatmul.mubr.bf16.gmra.mrb[0].mxu0 %v1460
      %v2751 = vpop.f32.mrb[0].mxu0
      %v2752 = vadd.f32 %v2575, %v2751
      %v2753 = vpop.f32.mrb[0].mxu0
      %v2754 = vpop.f32.mrb[0].mxu0
      %v2755 = vadd.f32 %v2578, %v2754
      %v2756 = vpop.f32.mrb[0].mxu0
      %2757 = vmatprep.mubr.bf16.mxu0 %v1470
      %2758 = vmatmul.mubr.bf16.gmra.mrb[0].mxu0 %v1469
      %v2759 = vpop.f32.mrb[0].mxu0
      %v2760 = vadd.f32 %v2583, %v2759
      %v2761 = vpop.f32.mrb[0].mxu0
      %v2762 = vpop.f32.mrb[0].mxu0
      %v2763 = vadd.f32 %v2586, %v2762
      %v2764 = vpop.f32.mrb[0].mxu0
      %2765 = vmatprep.mubr.bf16.mxu0 %v1479
      %2766 = vmatmul.mubr.bf16.gmra.mrb[0].mxu0 %v1478
      %v2767 = vpop.f32.mrb[0].mxu0
      %v2768 = vadd.f32 %v2591, %v2767
      %v2769 = vpop.f32.mrb[0].mxu0
      %v2770 = vpop.f32.mrb[0].mxu0
      %v2771 = vadd.f32 %v2594, %v2770
      %v2772 = vpop.f32.mrb[0].mxu0
      %2773 = vmatprep.mubr.bf16.mxu0 %v1488
      %2774 = vmatmul.mubr.bf16.gmra.mrb[0].mxu0 %v1487
      %v2775 = vpop.f32.mrb[0].mxu0
      %v2776 = vadd.f32 %v2599, %v2775
      %v2777 = vpop.f32.mrb[0].mxu0
      %v2778 = vpop.f32.mrb[0].mxu0
      %v2779 = vadd.f32 %v2602, %v2778
      %v2780 = vpop.f32.mrb[0].mxu0
      %2781 = vmatprep.mubr.bf16.mxu0 %v1497
      %2782 = vmatmul.mubr.bf16.gmra.mrb[0].mxu0 %v1496
      %v2783 = vpop.f32.mrb[0].mxu0
      %v2784 = vadd.f32 %v2607, %v2783
      %v2785 = vpop.f32.mrb[0].mxu0
      %v2786 = vpop.f32.mrb[0].mxu0
      %v2787 = vadd.f32 %v2610, %v2786
      %v2788 = vpop.f32.mrb[0].mxu0
      %2789 = vmatprep.mubr.bf16.mxu0 %v1506
      %2790 = vmatmul.mubr.bf16.gmra.mrb[0].mxu0 %v1505
      %v2791 = vpop.f32.mrb[0].mxu0
      %v2792 = vadd.f32 %v2615, %v2791
      %v2793 = vpop.f32.mrb[0].mxu0
      %v2794 = vpop.f32.mrb[0].mxu0
      %v2795 = vadd.f32 %v2618, %v2794
      %v2796 = vpop.f32.mrb[0].mxu0
      %2797 = vmatprep.mubr.bf16.mxu0 %v1515
      %2798 = vmatmul.mubr.bf16.gmra.mrb[0].mxu0 %v1514
      %v2799 = vpop.f32.mrb[0].mxu0
      %v2800 = vadd.f32 %v2623, %v2799
      %v2801 = vpop.f32.mrb[0].mxu0
      %v2802 = vpop.f32.mrb[0].mxu0
      %v2803 = vadd.f32 %v2626, %v2802
      %v2804 = vpop.f32.mrb[0].mxu0
      %2805 = vmatprep.mubr.bf16.mxu0 %v1524
      %2806 = vmatmul.mubr.bf16.gmra.mrb[0].mxu0 %v1523
      %v2807 = vpop.f32.mrb[0].mxu0
      %v2808 = vadd.f32 %v2631, %v2807
      %v2809 = vpop.f32.mrb[0].mxu0
      %v2810 = vpop.f32.mrb[0].mxu0
      %v2811 = vadd.f32 %v2634, %v2810
      %v2812 = vpop.f32.mrb[0].mxu0
      %2813 = vmatprep.mubr.bf16.mxu0 %v1533
      %2814 = vmatmul.mubr.bf16.gmra.mrb[0].mxu0 %v1532
      %v2815 = vpop.f32.mrb[0].mxu0
      %v2816 = vadd.f32 %v2639, %v2815
      %v2817 = vpop.f32.mrb[0].mxu0
      %v2818 = vpop.f32.mrb[0].mxu0
      %v2819 = vadd.f32 %v2642, %v2818
      %v2820 = vpop.f32.mrb[0].mxu0
      %2821 = vmatprep.mubr.bf16.mxu0 %v1542
      %2822 = vmatmul.mubr.bf16.gmra.mrb[0].mxu0 %v1541
      %v2823 = vpop.f32.mrb[0].mxu0
      %v2824 = vadd.f32 %v2647, %v2823
      %v2825 = vpop.f32.mrb[0].mxu0
      %v2826 = vpop.f32.mrb[0].mxu0
      %v2827 = vadd.f32 %v2650, %v2826
      %v2828 = vpop.f32.mrb[0].mxu0
      %2829 = vmatprep.mubr.bf16.mxu0 %v1551
      %2830 = vmatmul.mubr.bf16.gmra.mrb[0].mxu0 %v1550
      %v2831 = vpop.f32.mrb[0].mxu0
      %v2832 = vadd.f32 %v2655, %v2831
      %v2833 = vpop.f32.mrb[0].mxu0
      %v2834 = vpop.f32.mrb[0].mxu0
      %v2835 = vadd.f32 %v2658, %v2834
      %v2836 = vpop.f32.mrb[0].mxu0
      %2837 = vmatprep.mubr.bf16.mxu0 %v1560
      %2838 = vmatmul.mubr.bf16.gmra.mrb[0].mxu0 %v1559
      %v2839 = vpop.f32.mrb[0].mxu0
      %v2840 = vadd.f32 %v2663, %v2839
      %v2841 = vpop.f32.mrb[0].mxu0
      %v2842 = vpop.f32.mrb[0].mxu0
      %v2843 = vadd.f32 %v2666, %v2842
      %v2844 = vpop.f32.mrb[0].mxu0
      %2845 = vdwg.mxu0
      %2846 = vmatprep.subr.bf16.mxu0 0
      %2847 = vmatpush1.bf16.msra.mxu0 %v2058
      %2848 = vmatprep.subr.bf16.mxu0 0
      %2849 = vmatpush1.bf16.msra.mxu0 %v2059
      %2850 = vmatprep.subr.bf16.mxu0 0
      %2851 = vmatpush1.bf16.msra.mxu0 %v2060
      %2852 = vmatprep.subr.bf16.mxu0 0
      %2853 = vmatpush1.bf16.msra.mxu0 %v2061
      %2854 = vmatprep.subr.bf16.mxu0 0
      %2855 = vmatpush1.bf16.msra.mxu0 %v2062
      %2856 = vmatprep.subr.bf16.mxu0 0
      %2857 = vmatpush1.bf16.msra.mxu0 %v2063
      %2858 = vmatprep.subr.bf16.mxu0 0
      %2859 = vmatpush1.bf16.msra.mxu0 %v2064
      %2860 = vmatprep.subr.bf16.mxu0 0
      %2861 = vmatpush1.bf16.msra.mxu0 %v2065
      %2862 = vmatprep.subr.bf16.mxu0 0
      %2863 = vmatpush1.bf16.msra.mxu0 0
      %2864 = vmatprep.subr.bf16.mxu0 0
      %2865 = vmatpush1.bf16.msra.mxu0 0
      %2866 = vmatprep.subr.bf16.mxu0 0
      %2867 = vmatpush1.bf16.msra.mxu0 0
      %2868 = vmatprep.subr.bf16.mxu0 0
      %2869 = vmatpush1.bf16.msra.mxu0 0
      %2870 = vmatprep.subr.bf16.mxu0 0
      %2871 = vmatpush1.bf16.msra.mxu0 0
      %2872 = vmatprep.subr.bf16.mxu0 0
      %2873 = vmatpush1.bf16.msra.mxu0 0
      %2874 = vmatprep.subr.bf16.mxu0 0
      %2875 = vmatpush1.bf16.msra.mxu0 0
      %2876 = vmatprep.subr.bf16.mxu0 0
      %2877 = vmatpush1.bf16.msra.mxu0 0
      %2878 = vmatprep.mubr.bf16.mxu0 0
      %2879 = vmatmul.mubr.bf16.gmra.mrb[0].mxu0 %v1408
      %v2880 = vpop.f32.mrb[0].mxu0
      %v2881 = vadd.f32 %v2704, %v2880
      %v2882 = vpop.f32.mrb[0].mxu0
      %v2883 = vpop.f32.mrb[0].mxu0
      %v2884 = vadd.f32 %v2707, %v2883
      %v2885 = vpop.f32.mrb[0].mxu0
      %2886 = vmatprep.mubr.bf16.mxu0 0
      %2887 = vmatmul.mubr.bf16.gmra.mrb[0].mxu0 %v1417
      %v2888 = vpop.f32.mrb[0].mxu0
      %v2889 = vadd.f32 %v2712, %v2888
      %v2890 = vpop.f32.mrb[0].mxu0
      %v2891 = vpop.f32.mrb[0].mxu0
      %v2892 = vadd.f32 %v2715, %v2891
      %v2893 = vpop.f32.mrb[0].mxu0
      %2894 = vmatprep.mubr.bf16.mxu0 0
      %2895 = vmatmul.mubr.bf16.gmra.mrb[0].mxu0 %v1426
      %v2896 = vpop.f32.mrb[0].mxu0
      %v2897 = vadd.f32 %v2720, %v2896
      %v2898 = vpop.f32.mrb[0].mxu0
      %v2899 = vpop.f32.mrb[0].mxu0
      %v2900 = vadd.f32 %v2723, %v2899
      %v2901 = vpop.f32.mrb[0].mxu0
      %2902 = vmatprep.mubr.bf16.mxu0 0
      %2903 = vmatmul.mubr.bf16.gmra.mrb[0].mxu0 %v1435
      %v2904 = vpop.f32.mrb[0].mxu0
      %v2905 = vadd.f32 %v2728, %v2904
      %v2906 = vpop.f32.mrb[0].mxu0
      %v2907 = vpop.f32.mrb[0].mxu0
      %v2908 = vadd.f32 %v2731, %v2907
      %v2909 = vpop.f32.mrb[0].mxu0
      %2910 = vmatprep.mubr.bf16.mxu0 0
      %2911 = vmatmul.mubr.bf16.gmra.mrb[0].mxu0 %v1444
      %v2912 = vpop.f32.mrb[0].mxu0
      %v2913 = vadd.f32 %v2736, %v2912
      %v2914 = vpop.f32.mrb[0].mxu0
      %v2915 = vpop.f32.mrb[0].mxu0
      %v2916 = vadd.f32 %v2739, %v2915
      %v2917 = vpop.f32.mrb[0].mxu0
      %2918 = vmatprep.mubr.bf16.mxu0 0
      %2919 = vmatmul.mubr.bf16.gmra.mrb[0].mxu0 %v1453
      %v2920 = vpop.f32.mrb[0].mxu0
      %v2921 = vadd.f32 %v2744, %v2920
      %v2922 = vpop.f32.mrb[0].mxu0
      %v2923 = vpop.f32.mrb[0].mxu0
      %v2924 = vadd.f32 %v2747, %v2923
      %v2925 = vpop.f32.mrb[0].mxu0
      %2926 = vmatprep.mubr.bf16.mxu0 0
      %2927 = vmatmul.mubr.bf16.gmra.mrb[0].mxu0 %v1462
      %v2928 = vpop.f32.mrb[0].mxu0
      %v2929 = vadd.f32 %v2752, %v2928
      %v2930 = vpop.f32.mrb[0].mxu0
      %v2931 = vpop.f32.mrb[0].mxu0
      %v2932 = vadd.f32 %v2755, %v2931
      %v2933 = vpop.f32.mrb[0].mxu0
      %2934 = vmatprep.mubr.bf16.mxu0 0
      %2935 = vmatmul.mubr.bf16.gmra.mrb[0].mxu0 %v1471
      %v2936 = vpop.f32.mrb[0].mxu0
      %v2937 = vadd.f32 %v2760, %v2936
      %v2938 = vpop.f32.mrb[0].mxu0
      %v2939 = vpop.f32.mrb[0].mxu0
      %v2940 = vadd.f32 %v2763, %v2939
      %v2941 = vpop.f32.mrb[0].mxu0
      %2942 = vmatprep.mubr.bf16.mxu0 0
      %2943 = vmatmul.mubr.bf16.gmra.mrb[0].mxu0 %v1480
      %v2944 = vpop.f32.mrb[0].mxu0
      %v2945 = vadd.f32 %v2768, %v2944
      %v2946 = vpop.f32.mrb[0].mxu0
      %v2947 = vpop.f32.mrb[0].mxu0
      %v2948 = vadd.f32 %v2771, %v2947
      %v2949 = vpop.f32.mrb[0].mxu0
      %2950 = vmatprep.mubr.bf16.mxu0 0
      %2951 = vmatmul.mubr.bf16.gmra.mrb[0].mxu0 %v1489
      %v2952 = vpop.f32.mrb[0].mxu0
      %v2953 = vadd.f32 %v2776, %v2952
      %v2954 = vpop.f32.mrb[0].mxu0
      %v2955 = vpop.f32.mrb[0].mxu0
      %v2956 = vadd.f32 %v2779, %v2955
      %v2957 = vpop.f32.mrb[0].mxu0
      %2958 = vmatprep.mubr.bf16.mxu0 0
      %2959 = vmatmul.mubr.bf16.gmra.mrb[0].mxu0 %v1498
      %v2960 = vpop.f32.mrb[0].mxu0
      %v2961 = vadd.f32 %v2784, %v2960
      %v2962 = vpop.f32.mrb[0].mxu0
      %v2963 = vpop.f32.mrb[0].mxu0
      %v2964 = vadd.f32 %v2787, %v2963
      %v2965 = vpop.f32.mrb[0].mxu0
      %2966 = vmatprep.mubr.bf16.mxu0 0
      %2967 = vmatmul.mubr.bf16.gmra.mrb[0].mxu0 %v1507
      %v2968 = vpop.f32.mrb[0].mxu0
      %v2969 = vadd.f32 %v2792, %v2968
      %v2970 = vpop.f32.mrb[0].mxu0
      %v2971 = vpop.f32.mrb[0].mxu0
      %v2972 = vadd.f32 %v2795, %v2971
      %v2973 = vpop.f32.mrb[0].mxu0
      %2974 = vmatprep.mubr.bf16.mxu0 0
      %2975 = vmatmul.mubr.bf16.gmra.mrb[0].mxu0 %v1516
      %v2976 = vpop.f32.mrb[0].mxu0
      %v2977 = vadd.f32 %v2800, %v2976
      %v2978 = vpop.f32.mrb[0].mxu0
      %v2979 = vpop.f32.mrb[0].mxu0
      %v2980 = vadd.f32 %v2803, %v2979
      %v2981 = vpop.f32.mrb[0].mxu0
      %2982 = vmatprep.mubr.bf16.mxu0 0
      %2983 = vmatmul.mubr.bf16.gmra.mrb[0].mxu0 %v1525
      %v2984 = vpop.f32.mrb[0].mxu0
      %v2985 = vadd.f32 %v2808, %v2984
      %v2986 = vpop.f32.mrb[0].mxu0
      %v2987 = vpop.f32.mrb[0].mxu0
      %v2988 = vadd.f32 %v2811, %v2987
      %v2989 = vpop.f32.mrb[0].mxu0
      %2990 = vmatprep.mubr.bf16.mxu0 0
      %2991 = vmatmul.mubr.bf16.gmra.mrb[0].mxu0 %v1534
      %v2992 = vpop.f32.mrb[0].mxu0
      %v2993 = vadd.f32 %v2816, %v2992
      %v2994 = vpop.f32.mrb[0].mxu0
      %v2995 = vpop.f32.mrb[0].mxu0
      %v2996 = vadd.f32 %v2819, %v2995
      %v2997 = vpop.f32.mrb[0].mxu0
      %2998 = vmatprep.mubr.bf16.mxu0 0
      %2999 = vmatmul.mubr.bf16.gmra.mrb[0].mxu0 %v1543
      %v3000 = vpop.f32.mrb[0].mxu0
      %v3001 = vadd.f32 %v2824, %v3000
      %v3002 = vpop.f32.mrb[0].mxu0
      %v3003 = vpop.f32.mrb[0].mxu0
      %v3004 = vadd.f32 %v2827, %v3003
      %v3005 = vpop.f32.mrb[0].mxu0
      %3006 = vmatprep.mubr.bf16.mxu0 0
      %3007 = vmatmul.mubr.bf16.gmra.mrb[0].mxu0 %v1552
      %v3008 = vpop.f32.mrb[0].mxu0
      %v3009 = vadd.f32 %v2832, %v3008
      %v3010 = vpop.f32.mrb[0].mxu0
      %v3011 = vpop.f32.mrb[0].mxu0
      %v3012 = vadd.f32 %v2835, %v3011
      %v3013 = vpop.f32.mrb[0].mxu0
      %3014 = vmatprep.mubr.bf16.mxu0 0
      %3015 = vmatmul.mubr.bf16.gmra.mrb[0].mxu0 %v1561
      %v3016 = vpop.f32.mrb[0].mxu0
      %v3017 = vadd.f32 %v2840, %v3016
      %v3018 = vpop.f32.mrb[0].mxu0
      %v3019 = vpop.f32.mrb[0].mxu0
      %v3020 = vadd.f32 %v2843, %v3019
      %v3021 = vpop.f32.mrb[0].mxu0
      %3022 = vdwg.mxu0
      %v3023 = vpack.c.bf16 %v2884, %v2881
      %v3024 = vpack.c.bf16 %v2892, %v2889
      %v3025 = vpack.c.bf16 %v2900, %v2897
      %v3026 = vpack.c.bf16 %v2908, %v2905
      %v3027 = vpack.c.bf16 %v2916, %v2913
      %v3028 = vpack.c.bf16 %v2924, %v2921
      %v3029 = vpack.c.bf16 %v2932, %v2929
      %v3030 = vpack.c.bf16 %v2940, %v2937
      %v3031 = vpack.c.bf16 %v2948, %v2945
      %v3032 = vpack.c.bf16 %v2956, %v2953
      %v3033 = vpack.c.bf16 %v2964, %v2961
      %v3034 = vpack.c.bf16 %v2972, %v2969
      %v3035 = vpack.c.bf16 %v2980, %v2977
      %v3036 = vpack.c.bf16 %v2988, %v2985
      %v3037 = vpack.c.bf16 %v2996, %v2993
      %v3038 = vpack.c.bf16 %v3004, %v3001
      %v3039 = vpack.c.bf16 %v3012, %v3009
      %v3040 = vpack.c.bf16 %v3020, %v3017
      %v3059 = vunpack.c.l.b16 %v3023
      %v3060 = vunpack.c.h.b16 %v3023
      %v3061 = vunpack.c.l.b16 %v3024
      %v3062 = vunpack.c.h.b16 %v3024
      %v3063 = vunpack.c.l.b16 %v3025
      %v3064 = vunpack.c.h.b16 %v3025
      %v3065 = vunpack.c.l.b16 %v3026
      %v3066 = vunpack.c.h.b16 %v3026
      %v3067 = vunpack.c.l.b16 %v3027
      %v3068 = vunpack.c.h.b16 %v3027
      %v3069 = vunpack.c.l.b16 %v3028
      %v3070 = vunpack.c.h.b16 %v3028
      %v3071 = vunpack.c.l.b16 %v3029
      %v3072 = vunpack.c.h.b16 %v3029
      %v3073 = vunpack.c.l.b16 %v3030
      %v3074 = vunpack.c.h.b16 %v3030
      %v3075 = vunpack.c.l.b16 %v3031
      %v3076 = vunpack.c.h.b16 %v3031
      %v3077 = vunpack.c.l.b16 %v3032
      %v3078 = vunpack.c.h.b16 %v3032
      %v3079 = vunpack.c.l.b16 %v3033
      %v3080 = vunpack.c.h.b16 %v3033
      %v3081 = vunpack.c.l.b16 %v3034
      %v3082 = vunpack.c.h.b16 %v3034
      %v3083 = vunpack.c.l.b16 %v3035
      %v3084 = vunpack.c.h.b16 %v3035
      %v3085 = vunpack.c.l.b16 %v3036
      %v3086 = vunpack.c.h.b16 %v3036
      %v3087 = vunpack.c.l.b16 %v3037
      %v3088 = vunpack.c.h.b16 %v3037
      %v3089 = vunpack.c.l.b16 %v3038
      %v3090 = vunpack.c.h.b16 %v3038
      %v3091 = vunpack.c.l.b16 %v3039
      %v3092 = vunpack.c.h.b16 %v3039
      %v3093 = vunpack.c.l.b16 %v3040
      %v3094 = vunpack.c.h.b16 %v3040
      %v3095 = vpack.c.b16 %v3059, %v3059
      %v3096 = vpack.c.b16 %v3060, %v3060
      %v3097 = vpack.c.b16 %v3061, %v3061
      %v3098 = vpack.c.b16 %v3062, %v3062
      %v3099 = vpack.c.b16 %v3063, %v3063
      %v3100 = vpack.c.b16 %v3064, %v3064
      %v3101 = vpack.c.b16 %v3065, %v3065
      %v3102 = vpack.c.b16 %v3066, %v3066
      %v3103 = vpack.c.b16 %v3067, %v3067
      %v3104 = vpack.c.b16 %v3068, %v3068
      %v3105 = vpack.c.b16 %v3069, %v3069
      %v3106 = vpack.c.b16 %v3070, %v3070
      %v3107 = vpack.c.b16 %v3071, %v3071
      %v3108 = vpack.c.b16 %v3072, %v3072
      %v3109 = vpack.c.b16 %v3073, %v3073
      %v3110 = vpack.c.b16 %v3074, %v3074
      %v3111 = vpack.c.b16 %v3075, %v3075
      %v3112 = vpack.c.b16 %v3076, %v3076
      %v3113 = vpack.c.b16 %v3077, %v3077
      %v3114 = vpack.c.b16 %v3078, %v3078
      %v3115 = vpack.c.b16 %v3079, %v3079
      %v3116 = vpack.c.b16 %v3080, %v3080
      %v3117 = vpack.c.b16 %v3081, %v3081
      %v3118 = vpack.c.b16 %v3082, %v3082
      %v3119 = vpack.c.b16 %v3083, %v3083
      %v3120 = vpack.c.b16 %v3084, %v3084
      %v3121 = vpack.c.b16 %v3085, %v3085
      %v3122 = vpack.c.b16 %v3086, %v3086
      %v3123 = vpack.c.b16 %v3087, %v3087
      %v3124 = vpack.c.b16 %v3088, %v3088
      %v3125 = vpack.c.b16 %v3089, %v3089
      %v3126 = vpack.c.b16 %v3090, %v3090
      %v3127 = vpack.c.b16 %v3091, %v3091
      %v3128 = vpack.c.b16 %v3092, %v3092
      %v3129 = vpack.c.b16 %v3093, %v3093
      %v3130 = vpack.c.b16 %v3094, %v3094
      %3167 = vst [vmem:[%s258] sm:$0xf] %v3095
      %3168 = vst [vmem:[%s258 + $0x4] sm:$0xf] %v3096
      %3169 = vst [vmem:[%s258 + $0x8] sm:$0xf] %v3097
      %3170 = vst [vmem:[%s258 + $0xc] sm:$0xf] %v3098
      %3171 = vst [vmem:[%s258 + $0x10] sm:$0xf] %v3099
      %3172 = vst [vmem:[%s258 + $0x14] sm:$0xf] %v3100
      %3173 = vst [vmem:[%s258 + $0x18] sm:$0xf] %v3101
      %3174 = vst [vmem:[%s258 + $0x1c] sm:$0xf] %v3102
      %3175 = vst [vmem:[%s258 + $0x20] sm:$0xf] %v3103
      %3176 = vst [vmem:[%s258 + $0x24] sm:$0xf] %v3104
      %3177 = vst [vmem:[%s258 + $0x28] sm:$0xf] %v3105
      %3178 = vst [vmem:[%s258 + $0x2c] sm:$0xf] %v3106
      %3179 = vst [vmem:[%s258 + $0x30] sm:$0xf] %v3107
      %3180 = vst [vmem:[%s258 + $0x34] sm:$0xf] %v3108
      %3181 = vst [vmem:[%s258 + $0x38] sm:$0xf] %v3109
      %3182 = vst [vmem:[%s258 + $0x3c] sm:$0xf] %v3110
      %3183 = vst [vmem:[%s258 + $0x40] sm:$0xf] %v3111
      %3184 = vst [vmem:[%s258 + $0x44] sm:$0xf] %v3112
      %3185 = vst [vmem:[%s258 + $0x48] sm:$0xf] %v3113
      %3186 = vst [vmem:[%s258 + $0x4c] sm:$0xf] %v3114
      %3187 = vst [vmem:[%s258 + $0x50] sm:$0xf] %v3115
      %3188 = vst [vmem:[%s258 + $0x54] sm:$0xf] %v3116
      %3189 = vst [vmem:[%s258 + $0x58] sm:$0xf] %v3117
      %3190 = vst [vmem:[%s258 + $0x5c] sm:$0xf] %v3118
      %3191 = vst [vmem:[%s258 + $0x60] sm:$0xf] %v3119
      %3192 = vst [vmem:[%s258 + $0x64] sm:$0xf] %v3120
      %3193 = vst [vmem:[%s258 + $0x68] sm:$0xf] %v3121
      %3194 = vst [vmem:[%s258 + $0x6c] sm:$0xf] %v3122
      %3195 = vst [vmem:[%s258 + $0x70] sm:$0xf] %v3123
      %3196 = vst [vmem:[%s258 + $0x74] sm:$0xf] %v3124
      %3197 = vst [vmem:[%s258 + $0x78] sm:$0xf] %v3125
      %3198 = vst [vmem:[%s258 + $0x7c] sm:$0xf] %v3126
      %3199 = vst [vmem:[%s258 + $0x80] sm:$0xf] %v3127
      %3200 = vst [vmem:[%s258 + $0x84] sm:$0xf] %v3128
      %3201 = vst [vmem:[%s258 + $0x88] sm:$0xf] %v3129
      %3202 = vst [vmem:[%s258 + $0x8c] sm:$0xf] %v3130
      %v3203 = vmul.f32 %v2881, %v497
      %v3204 = vmul.f32 %v2884, %v502
      %v3205 = vmul.f32 %v2889, %v507
      %v3206 = vmul.f32 %v2892, %v512
      %v3207 = vmul.f32 %v2897, %v517
      %v3208 = vmul.f32 %v2900, %v522
      %v3209 = vmul.f32 %v2905, %v527
      %v3210 = vmul.f32 %v2908, %v532
      %v3211 = vmul.f32 %v2913, %v537
      %v3212 = vmul.f32 %v2916, %v542
      %v3213 = vmul.f32 %v2921, %v547
      %v3214 = vmul.f32 %v2924, %v552
      %v3215 = vmul.f32 %v2929, %v557
      %v3216 = vmul.f32 %v2932, %v562
      %v3217 = vmul.f32 %v2937, %v567
      %v3218 = vmul.f32 %v2940, %v572
      %v3219 = vmul.f32 %v2945, %v577
      %v3220 = vmul.f32 %v2948, %v582
      %v3221 = vmul.f32 %v2953, %v587
      %v3222 = vmul.f32 %v2956, %v592
      %v3223 = vmul.f32 %v2961, %v597
      %v3224 = vmul.f32 %v2964, %v602
      %v3225 = vmul.f32 %v2969, %v607
      %v3226 = vmul.f32 %v2972, %v612
      %v3227 = vmul.f32 %v2977, %v617
      %v3228 = vmul.f32 %v2980, %v622
      %v3229 = vmul.f32 %v2985, %v627
      %v3230 = vmul.f32 %v2988, %v632
      %v3231 = vmul.f32 %v2993, %v637
      %v3232 = vmul.f32 %v2996, %v642
      %v3233 = vmul.f32 %v3001, %v647
      %v3234 = vmul.f32 %v3004, %v652
      %v3235 = vmul.f32 %v3009, %v657
      %v3236 = vmul.f32 %v3012, %v662
      %v3237 = vmul.f32 %v3017, %v667
      %v3238 = vmul.f32 %v3020, %v672
      %v3239 = vadd.f32 %v3203, %v3204
      %v3240 = vadd.f32 %v3239, %v3205
      %v3241 = vadd.f32 %v3240, %v3206
      %v3242 = vadd.f32 %v3241, %v3207
      %v3243 = vadd.f32 %v3242, %v3208
      %v3244 = vadd.f32 %v3243, %v3209
      %v3245 = vadd.f32 %v3244, %v3210
      %v3246 = vadd.f32 %v3245, %v3211
      %v3247 = vadd.f32 %v3246, %v3212
      %v3248 = vadd.f32 %v3247, %v3213
      %v3249 = vadd.f32 %v3248, %v3214
      %v3250 = vadd.f32 %v3249, %v3215
      %v3251 = vadd.f32 %v3250, %v3216
      %v3252 = vadd.f32 %v3251, %v3217
      %v3253 = vadd.f32 %v3252, %v3218
      %v3254 = vadd.f32 %v3253, %v3219
      %v3255 = vadd.f32 %v3254, %v3220
      %v3256 = vadd.f32 %v3255, %v3221
      %v3257 = vadd.f32 %v3256, %v3222
      %v3258 = vadd.f32 %v3257, %v3223
      %v3259 = vadd.f32 %v3258, %v3224
      %v3260 = vadd.f32 %v3259, %v3225
      %v3261 = vadd.f32 %v3260, %v3226
      %v3262 = vadd.f32 %v3261, %v3227
      %v3263 = vadd.f32 %v3262, %v3228
      %v3264 = vadd.f32 %v3263, %v3229
      %v3265 = vadd.f32 %v3264, %v3230
      %v3266 = vadd.f32 %v3265, %v3231
      %v3267 = vadd.f32 %v3266, %v3232
      %v3268 = vadd.f32 %v3267, %v3233
      %v3269 = vadd.f32 %v3268, %v3234
      %v3270 = vadd.f32 %v3269, %v3235
      %v3271 = vadd.f32 %v3270, %v3236
      %v3272 = vadd.f32 %v3271, %v3237
      %v3273 = vadd.f32 %v3272, %v3238
      %v3274 = vrot.slane %v3273, 4
      %v3275 = vadd.f32 %v3273, %v3274
      %v3276 = vrot.slane %v3275, 2
      %v3277 = vadd.f32 %v3275, %v3276
      %v3278 = vrot.slane %v3277, 1
      %v3279 = vadd.f32 %v3277, %v3278
      %3280 = vst [vmem:[%s262] sm:$0x1] %v3279
      %v3281 = vmul.f32 %v3203, %v2881
      %v3282 = vmul.f32 %v3204, %v2884
      %v3283 = vmul.f32 %v3205, %v2889
      %v3284 = vmul.f32 %v3206, %v2892
      %v3285 = vmul.f32 %v3207, %v2897
      %v3286 = vmul.f32 %v3208, %v2900
      %v3287 = vmul.f32 %v3209, %v2905
      %v3288 = vmul.f32 %v3210, %v2908
      %v3289 = vmul.f32 %v3211, %v2913
      %v3290 = vmul.f32 %v3212, %v2916
      %v3291 = vmul.f32 %v3213, %v2921
      %v3292 = vmul.f32 %v3214, %v2924
      %v3293 = vmul.f32 %v3215, %v2929
      %v3294 = vmul.f32 %v3216, %v2932
      %v3295 = vmul.f32 %v3217, %v2937
      %v3296 = vmul.f32 %v3218, %v2940
      %v3297 = vmul.f32 %v3219, %v2945
      %v3298 = vmul.f32 %v3220, %v2948
      %v3299 = vmul.f32 %v3221, %v2953
      %v3300 = vmul.f32 %v3222, %v2956
      %v3301 = vmul.f32 %v3223, %v2961
      %v3302 = vmul.f32 %v3224, %v2964
      %v3303 = vmul.f32 %v3225, %v2969
      %v3304 = vmul.f32 %v3226, %v2972
      %v3305 = vmul.f32 %v3227, %v2977
      %v3306 = vmul.f32 %v3228, %v2980
      %v3307 = vmul.f32 %v3229, %v2985
      %v3308 = vmul.f32 %v3230, %v2988
      %v3309 = vmul.f32 %v3231, %v2993
      %v3310 = vmul.f32 %v3232, %v2996
      %v3311 = vmul.f32 %v3233, %v3001
      %v3312 = vmul.f32 %v3234, %v3004
      %v3313 = vmul.f32 %v3235, %v3009
      %v3314 = vmul.f32 %v3236, %v3012
      %v3315 = vmul.f32 %v3237, %v3017
      %v3316 = vmul.f32 %v3238, %v3020
      %v3317 = vadd.f32 %v3281, %v3282
      %v3318 = vadd.f32 %v3317, %v3283
      %v3319 = vadd.f32 %v3318, %v3284
      %v3320 = vadd.f32 %v3319, %v3285
      %v3321 = vadd.f32 %v3320, %v3286
      %v3322 = vadd.f32 %v3321, %v3287
      %v3323 = vadd.f32 %v3322, %v3288
      %v3324 = vadd.f32 %v3323, %v3289
      %v3325 = vadd.f32 %v3324, %v3290
      %v3326 = vadd.f32 %v3325, %v3291
      %v3327 = vadd.f32 %v3326, %v3292
      %v3328 = vadd.f32 %v3327, %v3293
      %v3329 = vadd.f32 %v3328, %v3294
      %v3330 = vadd.f32 %v3329, %v3295
      %v3331 = vadd.f32 %v3330, %v3296
      %v3332 = vadd.f32 %v3331, %v3297
      %v3333 = vadd.f32 %v3332, %v3298
      %v3334 = vadd.f32 %v3333, %v3299
      %v3335 = vadd.f32 %v3334, %v3300
      %v3336 = vadd.f32 %v3335, %v3301
      %v3337 = vadd.f32 %v3336, %v3302
      %v3338 = vadd.f32 %v3337, %v3303
      %v3339 = vadd.f32 %v3338, %v3304
      %v3340 = vadd.f32 %v3339, %v3305
      %v3341 = vadd.f32 %v3340, %v3306
      %v3342 = vadd.f32 %v3341, %v3307
      %v3343 = vadd.f32 %v3342, %v3308
      %v3344 = vadd.f32 %v3343, %v3309
      %v3345 = vadd.f32 %v3344, %v3310
      %v3346 = vadd.f32 %v3345, %v3311
      %v3347 = vadd.f32 %v3346, %v3312
      %v3348 = vadd.f32 %v3347, %v3313
      %v3349 = vadd.f32 %v3348, %v3314
      %v3350 = vadd.f32 %v3349, %v3315
      %v3351 = vadd.f32 %v3350, %v3316
      %v3352 = vrot.slane %v3351, 4
      %v3353 = vadd.f32 %v3351, %v3352
      %v3354 = vrot.slane %v3353, 2
      %v3355 = vadd.f32 %v3353, %v3354
      %v3356 = vrot.slane %v3355, 1
      %v3357 = vadd.f32 %v3355, %v3356
      %3358 = vst [vmem:[%s262 + $0x1] sm:$0x1] %v3357
      %p3359 = scmp.lt.s32.totalorder %s18, 1
      %s3360 = scalar_select %p3359, %s18, 1
      %s3361 = smul.addr %s3360, 36
      %s3362 = smul.addr %s3361, 4
      %s3363 = scalar_lea.vmem %s5, %s3362
      %p3364 = scmp.lt.s32.totalorder %s18, 1
      %s3365 = scalar_select %p3364, %s18, 1
      %s3366 = smul.addr %s3365, 2
      %s3367 = scalar_lea.vmem %s6, %s3366
      // Predicated region
      $region41: #{block_forward.4} parent=39 // pred_check
        %p3368 = pneg %p146
      $region42: #{block_forward.4} parent=39 // pred_check_branch
        %3370 = sbr.rel (%p3368) target = $region44
      $region43: #{block_forward.4} parent=39 // pred_region
        _
      $region44: #{block_forward.4} parent=39 // pred_fallthru
        _
      // Predicated region
      $region45: #{block_forward.4} parent=39 // pred_check
        %p3371 = pneg %p172
      $region46: #{block_forward.4} parent=39 // pred_check_branch
        %3373 = sbr.rel (%p3371) target = $region48
      $region47: #{block_forward.4} parent=39 // pred_region
        _
      $region48: #{block_forward.4} parent=39 // pred_fallthru
        _
    $region40: #{block_forward.4} parent=5 // pred_fallthru
      _
    %p3374 = scmp.le.s32.totalorder 2, %s13
    // Predicated region
    $region49: #{block_forward.4} parent=5 // pred_check
      %p3375 = pneg %p3374
    $region50: #{block_forward.4} parent=5 // pred_check_branch
      %3377 = sbr.rel (%p3375) target = $region52
    $region51: #{block_forward.4} parent=5 // pred_region
      %s3378 = ssub.s32 %s13, 2
      // Predicated region
      $region53: #{block_forward.4} parent=51 // pred_check
        %p3379 = pneg %p152
      $region54: #{block_forward.4} parent=51 // pred_check_branch
        %3381 = sbr.rel (%p3379) target = $region56
      $region55: #{block_forward.4} parent=51 // pred_region
        %p3382 = scmp.lt.s32.totalorder %s19, 1
        %s3383 = scalar_select %p3382, %s19, 1
        %s3384 = smul.addr %s3383, 36
        %s3385 = smul.addr %s3384, 4
        %s3386 = scalar_lea.vmem %s5, %s3385
      $region56: #{block_forward.4} parent=51 // pred_fallthru
        _
      // Predicated region
      $region57: #{block_forward.4} parent=51 // pred_check
        %p3387 = pneg %p178
      $region58: #{block_forward.4} parent=51 // pred_check_branch
        %3389 = sbr.rel (%p3387) target = $region60
      $region59: #{block_forward.4} parent=51 // pred_region
        %p3390 = scmp.lt.s32.totalorder %s19, 1
        %s3391 = scalar_select %p3390, %s19, 1
        %s3392 = smul.addr %s3391, 2
        %s3393 = scalar_lea.vmem %s6, %s3392
      $region60: #{block_forward.4} parent=51 // pred_fallthru
        _
    $region52: #{block_forward.4} parent=5 // pred_fallthru
      _
  $region6: #{block_forward.4} parent=0 // loop_footer
    %s17 = sadd.s32 1, %s13
  $region7: #{block_forward.4} parent=0 // loop_footer_branch
    %12 = sbr.rel target = $region3
  $region8: #{block_forward.4} parent=0 // loop_exit
    _

</llo_original>
